<compile_context>
chip_gen: v6e
topology: v6e:2x2x1
jax: 0.10.0
libtpu: 0.0.40
codegen_flags: <defaults>
</compile_context>

<pallas_src>
import math
import warnings

import jax
import jax.numpy as jnp
from jax.experimental import pallas as pl
from jax.experimental.pallas import tpu as pltpu


def _pick_block_q(q, hf, g):
    """Smallest divisor of Q keeping both the x lanes (qb*HF) and the output
    lanes (qb*G) multiples of 128.

    Smallest (not largest) aligned divisor ==> most grid steps (>=2 per
    TensorCore lets BlockSpec double-buffering hide the x-slab DMA) and the
    smallest block-diagonal weight (its size grows with block_q**2).  Falls
    back to the whole batch (block == full array dims, always legal) with a
    warning: that fallback produces sub-128-lane masked output stores.
    """
    for qb in range(1, q + 1):
        if q % qb == 0 and (qb * hf) % 128 == 0 and (qb * g) % 128 == 0:
            return qb
    warnings.warn(
        "TGCNCheb_H: no lane-aligned q-block divisor found; falling back to "
        "block_q=Q, which produces masked (sub-128-lane) output stores.")
    return q


def _make_tgcn_cheb_kernel(filter_order):
    """Kernel runs once per q-block (grid axis 0).

    Block shapes seen by the kernel:
      x_ref : (N, QB*HF)          wide input  (rows = vertices, lanes = (q,h,f))
      l_ref : (N, N)              graph Laplacian (grid-invariant)
      w_ref : (K, QB*HF, QB*G)    block-diagonal weights (grid-invariant)
      b_ref : (N, QB*G)           bias pre-tiled to the wide output layout
      o_ref : (N, QB*G)           wide output block (lane-dense)
    """
    highest = jax.lax.Precision.HIGHEST

    def dot(a, b):
        return jnp.dot(a, b, precision=highest,
                       preferred_element_type=jnp.float32)

    def kernel(x_ref, l_ref, w_ref, b_ref, o_ref):
        # Local accumulator (a handful of vregs) -- no o_ref RMW traffic.
        acc = b_ref[...]                              # (N, QB*G)

        # k = 0 term: T_0 = X.  One lane-dense matmul thanks to the
        # block-diagonal weight.
        x0 = x_ref[...]                               # (N, QB*HF)
        acc = acc + dot(x0, w_ref[0])

        if filter_order > 1:
            lap = l_ref[...]                          # (N, N)
            # One wide (N,N)@(N, QB*HF) matmul per Chebyshev order, shared
            # across the whole q-block.
            x_run = dot(lap, x0)                      # L @ X0  (== Xt[1])
            acc = acc + dot(x_run, w_ref[1])

            # NOTE: this mirrors the PyTorch module exactly -- the running X is
            # never reset, so Xt[k] = 2*L^k*X0 - Xt[k-2] (not the textbook
            # Chebyshev recurrence).  History is kept in registers (jnp values),
            # not VMEM scratch.  K is small -> static unroll.
            xt_km2 = x0                               # Xt[k-2]
            xt_km1 = x_run                            # Xt[k-1]
            for k in range(2, filter_order):
                x_run = dot(lap, x_run)               # L^k @ X0
                xt_k = 2.0 * x_run - xt_km2
                acc = acc + dot(xt_k, w_ref[k])
                xt_km2, xt_km1 = xt_km1, xt_k

        # Single full-width, lane-dense store.
        o_ref[...] = acc

    return kernel


def tgcn_cheb_h_forward(x, lap, weight, bias, filter_order, block_q=None):
    """x: (Q, N, H, F); lap: (N, N); weight: (K, H, F, G); bias: (1, N, G) or None."""
    q_batch, n_vert, horizon, f_in = x.shape
    k_order, h_w, f_w, g_out = weight.shape
    assert k_order == filter_order and h_w == horizon and f_w == f_in
    hf = horizon * f_in
    f32 = jnp.float32

    if block_q is None:
        block_q = _pick_block_q(q_batch, hf, g_out)
    assert q_batch % block_q == 0
    n_blocks = q_batch // block_q

    # ---- Wide layouts built once in the wrapper (plain XLA ops). ----
    # x: (Q, N, H, F) -> (N, Q*HF), lanes ordered (q, h, f).
    x_wide = jnp.transpose(x, (1, 0, 2, 3)).reshape(
        n_vert, q_batch * hf).astype(f32)
    # Block-diagonal weights: W'[k, a*HF+h, b*G+g] = (a==b) * W[k, h, g].
    # Lets the per-example contraction run as one lane-dense matmul per k.
    w_flat = weight.reshape(k_order, hf, g_out).astype(f32)
    eye_q = jnp.eye(block_q, dtype=f32)
    w_blk = jnp.einsum('ab,khg->kahbg', eye_q, w_flat).reshape(
        k_order, block_q * hf, block_q * g_out)
    # Bias pre-tiled to the wide output layout.
    if bias is None:
        b_wide = jnp.zeros((n_vert, block_q * g_out), f32)
    else:
        b_wide = jnp.tile(bias.reshape(n_vert, g_out).astype(f32),
                          (1, block_q))
    lap = lap.astype(f32)

    # ---- VMEM budget (inputs/output double-buffered by the pipeline). ----
    bpe = 4
    resident = 2 * (n_vert * block_q * hf              # x block
                    + n_vert * block_q * g_out         # out block
                    + k_order * block_q * hf * block_q * g_out  # W'
                    + n_vert * n_vert                  # L
                    + n_vert * block_q * g_out) * bpe  # bias
    cp_kwargs = dict(dimension_semantics=("parallel",))
    if resident > (16 << 20):   # only override the scoped default when needed
        cp_kwargs["vmem_limit_bytes"] = min(int(resident * 1.25), 64 << 20)

    out_wide = pl.pallas_call(
        _make_tgcn_cheb_kernel(filter_order),
        out_shape=jax.ShapeDtypeStruct((n_vert, q_batch * g_out), f32),
        grid_spec=pltpu.PrefetchScalarGridSpec(
            num_scalar_prefetch=0,
            grid=(n_blocks,),
            in_specs=[
                # x: one lane-aligned (N, QB*HF) slab per q-block.
                pl.BlockSpec((n_vert, block_q * hf), lambda qb: (0, qb)),
                # Laplacian / block-diag weights / bias: grid-invariant.
                pl.BlockSpec((n_vert, n_vert), lambda qb: (0, 0)),
                pl.BlockSpec((k_order, block_q * hf, block_q * g_out),
                             lambda qb: (0, 0, 0)),
                pl.BlockSpec((n_vert, block_q * g_out), lambda qb: (0, 0)),
            ],
            out_specs=pl.BlockSpec((n_vert, block_q * g_out),
                                   lambda qb: (0, qb)),
        ),
        compiler_params=pltpu.CompilerParams(**cp_kwargs),
    )(x_wide, lap, w_blk, b_wide)

    # (N, Q*G) -> (Q, N, G)
    return out_wide.reshape(n_vert, q_batch, g_out).transpose(1, 0, 2)


def _reference(x, lap, weight, bias, filter_order):
    """Pure-JAX transcription of the PyTorch forward (for checking)."""
    X = x
    Xt = [X]
    if filter_order > 1:
        Xr = jnp.einsum('nm,qmhf->qnhf', lap, X,
                        precision=jax.lax.Precision.HIGHEST)
        Xt.append(Xr)
        for k in range(2, filter_order):
            Xr = jnp.einsum('nm,qmhf->qnhf', lap, Xr,
                            precision=jax.lax.Precision.HIGHEST)
            Xt.append(2.0 * Xr - Xt[k - 2])
    Xc = jnp.stack(Xt, axis=0)
    out = jnp.einsum('kqnhf,khfg->qng', Xc, weight,
                     precision=jax.lax.Precision.HIGHEST)
    if bias is not None:
        out = out + bias
    return out


if __name__ == "__main__":
    # Small, module-consistent shapes.  Q=32 so the chosen block_q=8 gives a
    # grid of 4 steps (>= 2 per TensorCore on megacore chips, letting the
    # pipeline overlap x-slab DMAs with compute).
    Q = 32         # batch (examples)
    N = 16         # graph vertices (L is N x N)
    H = 8          # horizon
    F = 4          # in_channels
    G = 16         # out_channels
    K = 3          # filter_order

    key = jax.random.PRNGKey(0)
    k_x, k_l, k_w, k_b = jax.random.split(key, 4)

    # Deterministic parameter init mirroring reset_parameters():
    # stdv = 1 / sqrt(in_channels * filter_order)
    stdv = 1.0 / math.sqrt(F * K)
    weight = jax.random.uniform(k_w, (K, H, F, G), jnp.float32, -stdv, stdv)
    bias = jax.random.uniform(k_b, (1, N, G), jnp.float32, -stdv, stdv)

    # Synthetic (scaled, symmetric) graph Laplacian and input signal.
    lap = jax.random.uniform(k_l, (N, N), jnp.float32, -1.0, 1.0) / math.sqrt(N)
    lap = 0.5 * (lap + lap.T)
    x = jax.random.normal(k_x, (Q, N, H, F), jnp.float32)

    out = tgcn_cheb_h_forward(x, lap, weight, bias, K)
    out = jax.block_until_ready(out)

    ref = _reference(x, lap, weight, bias, K)
    assert out.shape == (Q, N, G), out.shape
    max_err = float(jnp.max(jnp.abs(out - ref)))
    # Tight (all-f32, HIGHEST precision) tolerance so layout changes cannot
    # silently hide real errors.
    assert jnp.allclose(out, ref, atol=1e-4, rtol=1e-4), max_err

    print("KERNEL_OK")
</pallas_src>

<mosaic_0001>
module attributes {stable_mosaic.version = 11 : i64} {
  func.func @kernel(%arg0: i32, %arg1: memref<16x256xf32, #tpu.memory_space<vmem>>, %arg2: memref<16x16xf32, #tpu.memory_space<vmem>>, %arg3: memref<3x256x128xf32, #tpu.memory_space<vmem>>, %arg4: memref<16x128xf32, #tpu.memory_space<vmem>>, %arg5: memref<16x128xf32, #tpu.memory_space<vmem>>) attributes {dimension_semantics = [#tpu.dimension_semantics<parallel>], iteration_bounds = array<i64: 4>, scalar_prefetch = 0 : i64, scratch_operands = 0 : i64, tpu.core_type = #tpu.core_type<tc>, window_params = [{transform_indices = @transform_0, window_bounds = array<i64: 16, 256>}, {pipeline_mode = #tpu.pipeline_mode<synchronous>, transform_indices = @transform_1, window_bounds = array<i64: 16, 16>}, {pipeline_mode = #tpu.pipeline_mode<synchronous>, transform_indices = @transform_2, window_bounds = array<i64: 3, 256, 128>}, {pipeline_mode = #tpu.pipeline_mode<synchronous>, transform_indices = @transform_3, window_bounds = array<i64: 16, 128>}, {transform_indices = @transform_4, window_bounds = array<i64: 16, 128>}]} {
    %c0 = arith.constant 0 : index
    %c0_0 = arith.constant 0 : index
    %0 = vector.load %arg4[%c0, %c0_0] : memref<16x128xf32, #tpu.memory_space<vmem>>, vector<16x128xf32>
    %c0_1 = arith.constant 0 : index
    %c0_2 = arith.constant 0 : index
    %1 = vector.load %arg1[%c0_1, %c0_2] : memref<16x256xf32, #tpu.memory_space<vmem>>, vector<16x256xf32>
    %c0_3 = arith.constant 0 : index
    %c0_4 = arith.constant 0 : index
    %c0_5 = arith.constant 0 : index
    %2 = vector.load %arg3[%c0_3, %c0_4, %c0_5] : memref<3x256x128xf32, #tpu.memory_space<vmem>>, vector<1x256x128xf32>
    %3 = vector.shape_cast %2 : vector<1x256x128xf32> to vector<256x128xf32>
    %cst = arith.constant dense<0.000000e+00> : vector<16x128xf32>
    %4 = tpu.matmul %1, %3, %cst {dimension_numbers = #tpu.dot_dimension_numbers<[1], [0], [0], [1], [0, 0, 1, 1], [], []>, precision = #tpu.contract_precision<fp32>} : vector<16x256xf32>, vector<256x128xf32>, vector<16x128xf32> -> vector<16x128xf32>
    %5 = arith.addf %0, %4 : vector<16x128xf32>
    %c0_6 = arith.constant 0 : index
    %c0_7 = arith.constant 0 : index
    %6 = vector.load %arg2[%c0_6, %c0_7] : memref<16x16xf32, #tpu.memory_space<vmem>>, vector<16x16xf32>
    %cst_8 = arith.constant dense<0.000000e+00> : vector<16x256xf32>
    %7 = tpu.matmul %6, %1, %cst_8 {dimension_numbers = #tpu.dot_dimension_numbers<[1], [0], [0], [1], [0, 0, 1, 1], [], []>, precision = #tpu.contract_precision<fp32>} : vector<16x16xf32>, vector<16x256xf32>, vector<16x256xf32> -> vector<16x256xf32>
    %c1 = arith.constant 1 : index
    %c0_9 = arith.constant 0 : index
    %c0_10 = arith.constant 0 : index
    %8 = vector.load %arg3[%c1, %c0_9, %c0_10] : memref<3x256x128xf32, #tpu.memory_space<vmem>>, vector<1x256x128xf32>
    %9 = vector.shape_cast %8 : vector<1x256x128xf32> to vector<256x128xf32>
    %cst_11 = arith.constant dense<0.000000e+00> : vector<16x128xf32>
    %10 = tpu.matmul %7, %9, %cst_11 {dimension_numbers = #tpu.dot_dimension_numbers<[1], [0], [0], [1], [0, 0, 1, 1], [], []>, precision = #tpu.contract_precision<fp32>} : vector<16x256xf32>, vector<256x128xf32>, vector<16x128xf32> -> vector<16x128xf32>
    %11 = arith.addf %5, %10 : vector<16x128xf32>
    %cst_12 = arith.constant dense<0.000000e+00> : vector<16x256xf32>
    %12 = tpu.matmul %6, %7, %cst_12 {dimension_numbers = #tpu.dot_dimension_numbers<[1], [0], [0], [1], [0, 0, 1, 1], [], []>, precision = #tpu.contract_precision<fp32>} : vector<16x16xf32>, vector<16x256xf32>, vector<16x256xf32> -> vector<16x256xf32>
    %cst_13 = arith.constant 2.000000e+00 : f32
    %13 = vector.broadcast %cst_13 : f32 to vector<16x256xf32>
    %14 = arith.mulf %13, %12 : vector<16x256xf32>
    %15 = arith.subf %14, %1 : vector<16x256xf32>
    %c2 = arith.constant 2 : index
    %c0_14 = arith.constant 0 : index
    %c0_15 = arith.constant 0 : index
    %16 = vector.load %arg3[%c2, %c0_14, %c0_15] : memref<3x256x128xf32, #tpu.memory_space<vmem>>, vector<1x256x128xf32>
    %17 = vector.shape_cast %16 : vector<1x256x128xf32> to vector<256x128xf32>
    %cst_16 = arith.constant dense<0.000000e+00> : vector<16x128xf32>
    %18 = tpu.matmul %15, %17, %cst_16 {dimension_numbers = #tpu.dot_dimension_numbers<[1], [0], [0], [1], [0, 0, 1, 1], [], []>, precision = #tpu.contract_precision<fp32>} : vector<16x256xf32>, vector<256x128xf32>, vector<16x128xf32> -> vector<16x128xf32>
    %19 = arith.addf %11, %18 : vector<16x128xf32>
    %c0_17 = arith.constant 0 : index
    %c0_18 = arith.constant 0 : index
    %20 = vector.load %arg5[%c0_17, %c0_18] : memref<16x128xf32, #tpu.memory_space<vmem>>, vector<16x128xf32>
    tpu.vector_store %arg5[%c0_17, %c0_18], %19 {strides = array<i32>} : memref<16x128xf32, #tpu.memory_space<vmem>>, vector<16x128xf32>,
    return
  }
  func.func @transform_0(%arg0: i32) -> (i32, i32) {
    %c0_i32 = arith.constant 0 : i32
    %c0_i32_0 = arith.constant 0 : i32
    return %c0_i32, %arg0 : i32, i32
  }
  func.func @transform_1(%arg0: i32) -> (i32, i32) {
    %c0_i32 = arith.constant 0 : i32
    %c0_i32_0 = arith.constant 0 : i32
    %c0_i32_1 = arith.constant 0 : i32
    return %c0_i32, %c0_i32_0 : i32, i32
  }
  func.func @transform_2(%arg0: i32) -> (i32, i32, i32) {
    %c0_i32 = arith.constant 0 : i32
    %c0_i32_0 = arith.constant 0 : i32
    %c0_i32_1 = arith.constant 0 : i32
    %c0_i32_2 = arith.constant 0 : i32
    return %c0_i32, %c0_i32_0, %c0_i32_1 : i32, i32, i32
  }
  func.func @transform_3(%arg0: i32) -> (i32, i32) {
    %c0_i32 = arith.constant 0 : i32
    %c0_i32_0 = arith.constant 0 : i32
    %c0_i32_1 = arith.constant 0 : i32
    return %c0_i32, %c0_i32_0 : i32, i32
  }
  func.func @transform_4(%arg0: i32) -> (i32, i32) {
    %c0_i32 = arith.constant 0 : i32
    %c0_i32_0 = arith.constant 0 : i32
    return %c0_i32, %arg0 : i32, i32
  }
}

</mosaic_0001>

<llo_original>
// kernel: tpu_custom_call.1
$region0: #{tpu_custom_call.1}
  #allocation0 [shape = 'u32[]', space=smem, size = 0x4, offset = 0x4, fixed_abs, tag = 'smem constant byte address 0x4 - core index']
  #allocation1 [shape = 'u32[144,128]{1,0:T(1,128)}', space=vmem, size = 0x12000, scoped, tag = 'internal scratch']
  %s0 = inlined_call_operand.hbm [shape: f32[16,1024], index: 0, kind: input, shape index: {}]
  %s1 = inlined_call_operand.hbm [shape: f32[16,16], index: 1, kind: input, shape index: {}]
  %s2 = inlined_call_operand.hbm [shape: f32[3,256,128], index: 2, kind: input, shape index: {}]
  %s3 = inlined_call_operand.hbm [shape: f32[16,128], index: 3, kind: input, shape index: {}]
  %s4 = inlined_call_operand.hbm [shape: f32[16,512], index: 4, kind: output, shape index: {}]
  %s5 = sld [smem:[#allocation0]]
  $region65: #{tpu_custom_call.1} parent=0
    _
  %s7 = ssub.s32 1, %s5
  %s8 = scalar_select 0, %s7, %s5
  $region1: #{tpu_custom_call.1} parent=0
    #allocation2 [shape = 'u8[32768]{0}', space=vmem, size = 0x8000, scoped, tag = 'input window, operand 0']
    #allocation3 [shape = 's32[2]{0}', space=sflag, size = 0x8, scoped, tag = 'scoped memory for tpu_custom_call.1']
    #allocation4 [shape = 's32[2]{0}', space=sflag, size = 0x8, scoped, tag = 'scoped memory for tpu_custom_call.1']
    #allocation5 [shape = 'u8[8192]{0}', space=vmem, size = 0x2000, scoped, tag = 'input window, operand 1, single buffered']
    #allocation6 [shape = 's32[1]{0}', space=sflag, size = 0x4, scoped, tag = 'scoped memory for tpu_custom_call.1']
    #allocation7 [shape = 'u8[393216]{0}', space=vmem, size = 0x60000, scoped, tag = 'input window, operand 2, single buffered']
    #allocation8 [shape = 'u8[8192]{0}', space=vmem, size = 0x2000, scoped, tag = 'input window, operand 3, single buffered']
    #allocation9 [shape = 's32[1]{0}', space=sflag, size = 0x4, scoped, tag = 'scoped memory for tpu_custom_call.1']
    #allocation10 [shape = 'u8[16384]{0}', space=vmem, size = 0x4000, scoped, tag = 'output window, operand 0']
    %9 = vsyncpa [#allocation3], 0
    %s10 = scalar_lea.sflag [#allocation3], 1
    %11 = vsyncpa %s10, 0
    %12 = vsyncpa [#allocation6], 0
    %13 = vsyncpa [#allocation9], 0
    %14 = vsyncpa [#allocation4], 0
    %s15 = scalar_lea.sflag [#allocation4], 1
    %16 = vsyncpa %s15, 0
    loop: start=0, step=1, limit=6
    $region2: #{tpu_custom_call.1} parent=1 // loop_pre_header
      _
    $region3: #{tpu_custom_call.1} parent=1 // loop_header
      %s18 = sphi 0, %s22
      %p19 = scmp.ge.s32.totalorder %s18, 6
      %s28 = sphi 0, %s30
      %s31 = sphi 0, %s28
      %s32 = sphi 0, %s31
      %s48 = sphi 0, %s32
      %s52 = sphi 0, %s52
      %s54 = sphi 0, %s52
      %s55 = sphi 0, %s54
      %s69 = sphi 0, %s55
      %s73 = sphi 0, %s73
      %s75 = sphi 0, %s73
      %s76 = sphi 0, %s75
      %s90 = sphi 0, %s76
      %s94 = sphi 0, %s94
      %s96 = sphi 0, %s94
      %s97 = sphi 0, %s96
      %s111 = sphi 0, %s97
      %s117 = sphi 0, %s119
      %s120 = sphi 0, %s117
      %s121 = sphi 0, %s120
      %s137 = sphi 0, %s121
    $region4: #{tpu_custom_call.1} parent=1 // loop_header_branch
      %21 = sbr.rel (%p19) target = $region8
    $region5: #{tpu_custom_call.1} parent=1 // loop_body
      %s23 = ssub.s32 %s18, 1
      %s24 = ssub.s32 %s18, 2
      %s25 = sadd.s32 %s18, 1
      %s26 = ssub.s32 %s18, %s25
      %p27 = scmp.eq.s32.totalorder %s26, 0
      %s29 = sadd.s32 %s28, 1
      %s30 = scalar_select %p27, %s28, %s29
      %p33 = pneg %p27
      %p34 = scmp.eq.s32.totalorder %s18, 3
      %p35 = por %p33, %p34
      %p36 = scmp.ne.s32.totalorder %s28, %s31
      %p37 = scmp.eq.s32.totalorder %s18, 0
      %p38 = por %p36, %p37
      %p39 = scmp.ne.s32.totalorder %s28, %s31
      %p40 = scmp.eq.s32.totalorder %s23, 3
      %p41 = por %p39, %p40
      %p42 = scmp.ne.s32.totalorder %s31, %s32
      %p43 = scmp.eq.s32.totalorder %s23, 0
      %p44 = por %p42, %p43
      %p45 = scmp.ne.s32.totalorder %s31, %s32
      %p46 = scmp.eq.s32.totalorder %s24, 3
      %p47 = por %p45, %p46
      %p49 = scmp.ne.s32.totalorder %s32, %s48
      %p50 = scmp.eq.s32.totalorder %s24, 0
      %p51 = por %p49, %p50
      %s53 = sadd.s32 %s52, 1
      %p56 = scmp.eq.s32.totalorder %s18, 3
      %p57 = scmp.ne.s32.totalorder %s52, %s54
      %p58 = scmp.eq.s32.totalorder %s18, 0
      %p59 = por %p57, %p58
      %p60 = scmp.ne.s32.totalorder %s52, %s54
      %p61 = scmp.eq.s32.totalorder %s23, 3
      %p62 = por %p60, %p61
      %p63 = scmp.ne.s32.totalorder %s54, %s55
      %p64 = scmp.eq.s32.totalorder %s23, 0
      %p65 = por %p63, %p64
      %p66 = scmp.ne.s32.totalorder %s54, %s55
      %p67 = scmp.eq.s32.totalorder %s24, 3
      %p68 = por %p66, %p67
      %p70 = scmp.ne.s32.totalorder %s55, %s69
      %p71 = scmp.eq.s32.totalorder %s24, 0
      %p72 = por %p70, %p71
      %s74 = sadd.s32 %s73, 1
      %p77 = scmp.eq.s32.totalorder %s18, 3
      %p78 = scmp.ne.s32.totalorder %s73, %s75
      %p79 = scmp.eq.s32.totalorder %s18, 0
      %p80 = por %p78, %p79
      %p81 = scmp.ne.s32.totalorder %s73, %s75
      %p82 = scmp.eq.s32.totalorder %s23, 3
      %p83 = por %p81, %p82
      %p84 = scmp.ne.s32.totalorder %s75, %s76
      %p85 = scmp.eq.s32.totalorder %s23, 0
      %p86 = por %p84, %p85
      %p87 = scmp.ne.s32.totalorder %s75, %s76
      %p88 = scmp.eq.s32.totalorder %s24, 3
      %p89 = por %p87, %p88
      %p91 = scmp.ne.s32.totalorder %s76, %s90
      %p92 = scmp.eq.s32.totalorder %s24, 0
      %p93 = por %p91, %p92
      %s95 = sadd.s32 %s94, 1
      %p98 = scmp.eq.s32.totalorder %s18, 3
      %p99 = scmp.ne.s32.totalorder %s94, %s96
      %p100 = scmp.eq.s32.totalorder %s18, 0
      %p101 = por %p99, %p100
      %p102 = scmp.ne.s32.totalorder %s94, %s96
      %p103 = scmp.eq.s32.totalorder %s23, 3
      %p104 = por %p102, %p103
      %p105 = scmp.ne.s32.totalorder %s96, %s97
      %p106 = scmp.eq.s32.totalorder %s23, 0
      %p107 = por %p105, %p106
      %p108 = scmp.ne.s32.totalorder %s96, %s97
      %p109 = scmp.eq.s32.totalorder %s24, 3
      %p110 = por %p108, %p109
      %p112 = scmp.ne.s32.totalorder %s97, %s111
      %p113 = scmp.eq.s32.totalorder %s24, 0
      %p114 = por %p112, %p113
      %s115 = ssub.s32 %s18, %s25
      %p116 = scmp.eq.s32.totalorder %s115, 0
      %s118 = sadd.s32 %s117, 1
      %s119 = scalar_select %p116, %s117, %s118
      %p122 = pneg %p116
      %p123 = scmp.eq.s32.totalorder %s18, 3
      %p124 = por %p122, %p123
      %p125 = scmp.ne.s32.totalorder %s117, %s120
      %p126 = scmp.eq.s32.totalorder %s18, 0
      %p127 = por %p125, %p126
      %p128 = scmp.ne.s32.totalorder %s117, %s120
      %p129 = scmp.eq.s32.totalorder %s23, 3
      %p130 = por %p128, %p129
      %p131 = scmp.ne.s32.totalorder %s120, %s121
      %p132 = scmp.eq.s32.totalorder %s23, 0
      %p133 = por %p131, %p132
      %p134 = scmp.ne.s32.totalorder %s120, %s121
      %p135 = scmp.eq.s32.totalorder %s24, 3
      %p136 = por %p134, %p135
      %p138 = scmp.ne.s32.totalorder %s121, %s137
      %p139 = scmp.eq.s32.totalorder %s24, 0
      %p140 = por %p138, %p139
      %p141 = scmp.le.s32.totalorder 1, %s18
      %p142 = scmp.lt.s32.totalorder %s18, 5
      %p143 = pnand %p141, %p142
      %p144 = pneg %p143
      // Predicated region
      $region9: #{tpu_custom_call.1} parent=5 // pred_check
        _
      $region10: #{tpu_custom_call.1} parent=5 // pred_check_branch
        %146 = sbr.rel (%p143) target = $region12
      $region11: #{tpu_custom_call.1} parent=5 // pred_region
        %s147 = ssub.s32 %s18, 1
        // Predicated region
        $region13: #{tpu_custom_call.1} parent=11 // pred_check
          %p148 = pneg %p65
        $region14: #{tpu_custom_call.1} parent=11 // pred_check_branch
          %150 = sbr.rel (%p148) target = $region16
        $region15: #{tpu_custom_call.1} parent=11 // pred_region
          %s152 = ssub.s32 256, 256
          %153 = vsyncadd [#allocation6], %s152
          %s154 = sshll.u32 [#allocation5], 4
          %s155 = int_to_ptr.vmem [resolvable:$true] %s154
          %160 = dma.hbm_to_vmem [thread:$0]  %s1, 256, %s155, [#allocation6], 128, 128, 8
        $region16: #{tpu_custom_call.1} parent=11 // pred_fallthru
          _
        // Predicated region
        $region17: #{tpu_custom_call.1} parent=11 // pred_check
          %p161 = pneg %p86
        $region18: #{tpu_custom_call.1} parent=11 // pred_check_branch
          %163 = sbr.rel (%p161) target = $region20
        $region19: #{tpu_custom_call.1} parent=11 // pred_region
          %s165 = ssub.s32 12288, 12288
          %166 = vsyncadd [#allocation6], %s165
          %s167 = sshll.u32 [#allocation7], 4
          %s168 = int_to_ptr.vmem [resolvable:$true] %s167
          %173 = dma.hbm_to_vmem [thread:$0]  %s2, 12288, %s168, [#allocation6], 128, 128, 8
        $region20: #{tpu_custom_call.1} parent=11 // pred_fallthru
          _
        // Predicated region
        $region21: #{tpu_custom_call.1} parent=11 // pred_check
          %p174 = pneg %p107
        $region22: #{tpu_custom_call.1} parent=11 // pred_check_branch
          %176 = sbr.rel (%p174) target = $region24
        $region23: #{tpu_custom_call.1} parent=11 // pred_region
          %s178 = ssub.s32 256, 256
          %179 = vsyncadd [#allocation9], %s178
          %s180 = sshll.u32 [#allocation8], 4
          %s181 = int_to_ptr.vmem [resolvable:$true] %s180
          %186 = dma.hbm_to_vmem [thread:$0]  %s3, 256, %s181, [#allocation9], 128, 128, 8
        $region24: #{tpu_custom_call.1} parent=11 // pred_fallthru
          _
      $region12: #{tpu_custom_call.1} parent=5 // pred_fallthru
        _
      %p187 = scmp.lt.s32.totalorder %s18, 4
      // Predicated region
      $region25: #{tpu_custom_call.1} parent=5 // pred_check
        %p188 = pneg %p187
      $region26: #{tpu_custom_call.1} parent=5 // pred_check_branch
        %190 = sbr.rel (%p188) target = $region28
      $region27: #{tpu_custom_call.1} parent=5 // pred_region
        // Predicated region
        $region29: #{tpu_custom_call.1} parent=27 // pred_check
          %p191 = pneg %p38
        $region30: #{tpu_custom_call.1} parent=27 // pred_check_branch
          %193 = sbr.rel (%p191) target = $region32
        $region31: #{tpu_custom_call.1} parent=27 // pred_region
          %s194 = sand.u32 %s28, 1
          %s195 = scalar_lea.sflag [#allocation3], %s194
          %s196 = sand.u32 %s28, 1
          %s197 = smul.addr %s196, 32
          %s198 = scalar_lea.vmem [#allocation2], %s197
          %s199 = smul.u32 2, %s18
          %s201 = ssub.s32 512, 512
          %202 = vsyncadd %s195, %s201
          %s203 = smul.addr %s199, 128
          %s204 = scalar_lea.hbm %s0, %s203
          %s205 = sshll.u32 %s198, 4
          %s206 = int_to_ptr.vmem [resolvable:$true] %s205
          %211 = dma.hbm_to_vmem [thread:$0]  %s204, 512, %s206, %s195, 1024, 256, 16
        $region32: #{tpu_custom_call.1} parent=27 // pred_fallthru
          _
      $region28: #{tpu_custom_call.1} parent=5 // pred_fallthru
        _
      %p212 = scmp.le.s32.totalorder 1, %s18
      %p213 = scmp.lt.s32.totalorder %s18, 5
      %p214 = pnand %p212, %p213
      %p215 = pneg %p214
      // Predicated region
      $region33: #{tpu_custom_call.1} parent=5 // pred_check
        _
      $region34: #{tpu_custom_call.1} parent=5 // pred_check_branch
        %217 = sbr.rel (%p214) target = $region36
      $region35: #{tpu_custom_call.1} parent=5 // pred_region
        %s218 = ssub.s32 %s18, 1
        %s219 = sand.u32 %s31, 1
        %s220 = scalar_lea.sflag [#allocation3], %s219
        %s221 = sand.u32 %s31, 1
        %s222 = smul.addr %s221, 32
        %s223 = scalar_lea.vmem [#allocation2], %s222
        // Predicated region
        $region37: #{tpu_custom_call.1} parent=35 // pred_check
          %p224 = pneg %p44
        $region38: #{tpu_custom_call.1} parent=35 // pred_check_branch
          %226 = sbr.rel (%p224) target = $region40
        $region39: #{tpu_custom_call.1} parent=35 // pred_region
          %227 = dma.done %s220, 512
        $region40: #{tpu_custom_call.1} parent=35 // pred_fallthru
          _
        // Predicated region
        $region41: #{tpu_custom_call.1} parent=35 // pred_check
          %p228 = pneg %p65
        $region42: #{tpu_custom_call.1} parent=35 // pred_check_branch
          %230 = sbr.rel (%p228) target = $region44
        $region43: #{tpu_custom_call.1} parent=35 // pred_region
          %231 = dma.done [#allocation6], 256
        $region44: #{tpu_custom_call.1} parent=35 // pred_fallthru
          _
        // Predicated region
        $region45: #{tpu_custom_call.1} parent=35 // pred_check
          %p232 = pneg %p86
        $region46: #{tpu_custom_call.1} parent=35 // pred_check_branch
          %234 = sbr.rel (%p232) target = $region48
        $region47: #{tpu_custom_call.1} parent=35 // pred_region
          %235 = dma.done [#allocation6], 12288
        $region48: #{tpu_custom_call.1} parent=35 // pred_fallthru
          _
        // Predicated region
        $region49: #{tpu_custom_call.1} parent=35 // pred_check
          %p236 = pneg %p107
        $region50: #{tpu_custom_call.1} parent=35 // pred_check_branch
          %238 = sbr.rel (%p236) target = $region52
        $region51: #{tpu_custom_call.1} parent=35 // pred_region
          %239 = dma.done [#allocation9], 256
        $region52: #{tpu_custom_call.1} parent=35 // pred_fallthru
          _
        %s240 = sand.u32 %s31, 1
        %s241 = scalar_lea.sflag [#allocation3], %s240
        %s242 = sand.u32 %s31, 1
        %s243 = smul.addr %s242, 32
        %s244 = scalar_lea.vmem [#allocation2], %s243
        %p245 = pneg %p44
        %p246 = pneg %p41
        %p247 = pneg %p65
        %p248 = pneg %p62
        %p249 = pneg %p86
        %p250 = pneg %p83
        %p251 = pneg %p107
        %p252 = pneg %p104
        %p253 = pneg %p133
        %p254 = pneg %p130
        %s255 = sand.u32 %s120, 1
        %s256 = scalar_lea.sflag [#allocation4], %s255
        %s257 = sand.u32 %s120, 1
        %s258 = smul.addr %s257, 16
        %s259 = scalar_lea.vmem [#allocation10], %s258
        %s260 = smul.u32 2, %s23
        %v261 = vld [vmem:[#allocation8] sm:$0xff]
        %v262 = vld [vmem:[#allocation8 + $0x8] sm:$0xff]
        %v263 = vld [vmem:[%s223] sm:$0xff]
        %v264 = vld [vmem:[%s223 + $0x8] sm:$0xff]
        %v265 = vld [vmem:[%s223 + $0x10] sm:$0xff]
        %v266 = vld [vmem:[%s223 + $0x18] sm:$0xff]
        %v267 = vld [vmem:[#allocation7] sm:$0xff]
        %v268 = vld [vmem:[#allocation7 + $0x8] sm:$0xff]
        %v269 = vld [vmem:[#allocation7 + $0x10] sm:$0xff]
        %v270 = vld [vmem:[#allocation7 + $0x18] sm:$0xff]
        %v271 = vld [vmem:[#allocation7 + $0x20] sm:$0xff]
        %v272 = vld [vmem:[#allocation7 + $0x28] sm:$0xff]
        %v273 = vld [vmem:[#allocation7 + $0x30] sm:$0xff]
        %v274 = vld [vmem:[#allocation7 + $0x38] sm:$0xff]
        %v275 = vld [vmem:[#allocation7 + $0x40] sm:$0xff]
        %v276 = vld [vmem:[#allocation7 + $0x48] sm:$0xff]
        %v277 = vld [vmem:[#allocation7 + $0x50] sm:$0xff]
        %v278 = vld [vmem:[#allocation7 + $0x58] sm:$0xff]
        %v279 = vld [vmem:[#allocation7 + $0x60] sm:$0xff]
        %v280 = vld [vmem:[#allocation7 + $0x68] sm:$0xff]
        %v281 = vld [vmem:[#allocation7 + $0x70] sm:$0xff]
        %v282 = vld [vmem:[#allocation7 + $0x78] sm:$0xff]
        %v283 = vld [vmem:[#allocation7 + $0x80] sm:$0xff]
        %v284 = vld [vmem:[#allocation7 + $0x88] sm:$0xff]
        %v285 = vld [vmem:[#allocation7 + $0x90] sm:$0xff]
        %v286 = vld [vmem:[#allocation7 + $0x98] sm:$0xff]
        %v287 = vld [vmem:[#allocation7 + $0xa0] sm:$0xff]
        %v288 = vld [vmem:[#allocation7 + $0xa8] sm:$0xff]
        %v289 = vld [vmem:[#allocation7 + $0xb0] sm:$0xff]
        %v290 = vld [vmem:[#allocation7 + $0xb8] sm:$0xff]
        %v291 = vld [vmem:[#allocation7 + $0xc0] sm:$0xff]
        %v292 = vld [vmem:[#allocation7 + $0xc8] sm:$0xff]
        %v293 = vld [vmem:[#allocation7 + $0xd0] sm:$0xff]
        %v294 = vld [vmem:[#allocation7 + $0xd8] sm:$0xff]
        %v295 = vld [vmem:[#allocation7 + $0xe0] sm:$0xff]
        %v296 = vld [vmem:[#allocation7 + $0xe8] sm:$0xff]
        %v297 = vld [vmem:[#allocation7 + $0xf0] sm:$0xff]
        %v298 = vld [vmem:[#allocation7 + $0xf8] sm:$0xff]
        %299 = vmatprep.subr.mxu0 0.0
        %v300 = vand.u32 %v282, 4294901760
        %301 = vmatpush1.msra.mxu0 %v300
        %302 = vmatprep.subr.mxu0 0.0
        %v303 = vand.u32 %v281, 4294901760
        %304 = vmatpush1.msra.mxu0 %v303
        %305 = vmatprep.subr.mxu0 0.0
        %v306 = vand.u32 %v280, 4294901760
        %307 = vmatpush1.msra.mxu0 %v306
        %308 = vmatprep.subr.mxu0 0.0
        %v309 = vand.u32 %v279, 4294901760
        %310 = vmatpush1.msra.mxu0 %v309
        %311 = vmatprep.subr.mxu0 0.0
        %v312 = vand.u32 %v278, 4294901760
        %313 = vmatpush1.msra.mxu0 %v312
        %314 = vmatprep.subr.mxu0 0.0
        %v315 = vand.u32 %v277, 4294901760
        %316 = vmatpush1.msra.mxu0 %v315
        %317 = vmatprep.subr.mxu0 0.0
        %v318 = vand.u32 %v276, 4294901760
        %319 = vmatpush1.msra.mxu0 %v318
        %320 = vmatprep.subr.mxu0 0.0
        %v321 = vand.u32 %v275, 4294901760
        %322 = vmatpush1.msra.mxu0 %v321
        %323 = vmatprep.subr.mxu0 0.0
        %v324 = vand.u32 %v274, 4294901760
        %325 = vmatpush1.msra.mxu0 %v324
        %326 = vmatprep.subr.mxu0 0.0
        %v327 = vand.u32 %v273, 4294901760
        %328 = vmatpush1.msra.mxu0 %v327
        %329 = vmatprep.subr.mxu0 0.0
        %v330 = vand.u32 %v272, 4294901760
        %331 = vmatpush1.msra.mxu0 %v330
        %332 = vmatprep.subr.mxu0 0.0
        %v333 = vand.u32 %v271, 4294901760
        %334 = vmatpush1.msra.mxu0 %v333
        %335 = vmatprep.subr.mxu0 0.0
        %v336 = vand.u32 %v270, 4294901760
        %337 = vmatpush1.msra.mxu0 %v336
        %338 = vmatprep.subr.mxu0 0.0
        %v339 = vand.u32 %v269, 4294901760
        %340 = vmatpush1.msra.mxu0 %v339
        %341 = vmatprep.subr.mxu0 0.0
        %v342 = vand.u32 %v268, 4294901760
        %343 = vmatpush1.msra.mxu0 %v342
        %344 = vmatprep.subr.mxu0 0.0
        %v345 = vand.u32 %v267, 4294901760
        %346 = vmatpush1.msra.mxu0 %v345
        %347 = vmatprep.subr.mxu0 0.0
        %v348 = vand.u32 %v298, 4294901760
        %349 = vmatpush2.msra.mxu0 %v348
        %350 = vmatprep.subr.mxu0 0.0
        %v351 = vand.u32 %v297, 4294901760
        %352 = vmatpush2.msra.mxu0 %v351
        %353 = vmatprep.subr.mxu0 0.0
        %v354 = vand.u32 %v296, 4294901760
        %355 = vmatpush2.msra.mxu0 %v354
        %356 = vmatprep.subr.mxu0 0.0
        %v357 = vand.u32 %v295, 4294901760
        %358 = vmatpush2.msra.mxu0 %v357
        %359 = vmatprep.subr.mxu0 0.0
        %v360 = vand.u32 %v294, 4294901760
        %361 = vmatpush2.msra.mxu0 %v360
        %362 = vmatprep.subr.mxu0 0.0
        %v363 = vand.u32 %v293, 4294901760
        %364 = vmatpush2.msra.mxu0 %v363
        %365 = vmatprep.subr.mxu0 0.0
        %v366 = vand.u32 %v292, 4294901760
        %367 = vmatpush2.msra.mxu0 %v366
        %368 = vmatprep.subr.mxu0 0.0
        %v369 = vand.u32 %v291, 4294901760
        %370 = vmatpush2.msra.mxu0 %v369
        %371 = vmatprep.subr.mxu0 0.0
        %v372 = vand.u32 %v290, 4294901760
        %373 = vmatpush2.msra.mxu0 %v372
        %374 = vmatprep.subr.mxu0 0.0
        %v375 = vand.u32 %v289, 4294901760
        %376 = vmatpush2.msra.mxu0 %v375
        %377 = vmatprep.subr.mxu0 0.0
        %v378 = vand.u32 %v288, 4294901760
        %379 = vmatpush2.msra.mxu0 %v378
        %380 = vmatprep.subr.mxu0 0.0
        %v381 = vand.u32 %v287, 4294901760
        %382 = vmatpush2.msra.mxu0 %v381
        %383 = vmatprep.subr.mxu0 0.0
        %v384 = vand.u32 %v286, 4294901760
        %385 = vmatpush2.msra.mxu0 %v384
        %386 = vmatprep.subr.mxu0 0.0
        %v387 = vand.u32 %v285, 4294901760
        %388 = vmatpush2.msra.mxu0 %v387
        %389 = vmatprep.subr.mxu0 0.0
        %v390 = vand.u32 %v284, 4294901760
        %391 = vmatpush2.msra.mxu0 %v390
        %392 = vmatprep.subr.mxu0 0.0
        %v393 = vand.u32 %v283, 4294901760
        %394 = vmatpush2.msra.mxu0 %v393
        %v395 = vand.u32 %v264, 4294901760
        %v396 = vsub.f32 %v264, %v395
        %v397 = vand.u32 %v396, 4294901760
        %v398 = vsub.f32 %v396, %v397
        %v399 = vand.u32 %v398, 4294901760
        %400 = vmatprep.mubr.f32.mxu0 %v399
        %v401 = vand.u32 %v263, 4294901760
        %v402 = vsub.f32 %v263, %v401
        %v403 = vand.u32 %v402, 4294901760
        %v404 = vsub.f32 %v402, %v403
        %v405 = vand.u32 %v404, 4294901760
        %406 = vmatmul.mubr.f32.gmra.mxu0 %v405
        %v407 = vpop.f32.mrf.mxu0
        %v408 = vadd.f32 0.0, %v407
        %v409 = vpop.f32.mrf.mxu0
        %v410 = vand.u32 %v266, 4294901760
        %v411 = vsub.f32 %v266, %v410
        %v412 = vand.u32 %v411, 4294901760
        %v413 = vsub.f32 %v411, %v412
        %v414 = vand.u32 %v413, 4294901760
        %415 = vmatprep.mubr.f32.mxu0 %v414
        %v416 = vand.u32 %v265, 4294901760
        %v417 = vsub.f32 %v265, %v416
        %v418 = vand.u32 %v417, 4294901760
        %v419 = vsub.f32 %v417, %v418
        %v420 = vand.u32 %v419, 4294901760
        %421 = vmatmul.mubr.f32.gmra.mxu0 %v420
        %v422 = vpop.f32.mrf.mxu0
        %v423 = vadd.f32 0.0, %v422
        %v424 = vpop.f32.mrf.mxu0
        %425 = vdwg.mxu0
        %426 = vmatprep.subr.mxu0 0.0
        %v427 = vand.u32 %v282, 4294901760
        %v428 = vsub.f32 %v282, %v427
        %v429 = vand.u32 %v428, 4294901760
        %v430 = vsub.f32 %v428, %v429
        %v431 = vand.u32 %v430, 4294901760
        %432 = vmatpush1.msra.mxu0 %v431
        %433 = vmatprep.subr.mxu0 0.0
        %v434 = vand.u32 %v281, 4294901760
        %v435 = vsub.f32 %v281, %v434
        %v436 = vand.u32 %v435, 4294901760
        %v437 = vsub.f32 %v435, %v436
        %v438 = vand.u32 %v437, 4294901760
        %439 = vmatpush1.msra.mxu0 %v438
        %440 = vmatprep.subr.mxu0 0.0
        %v441 = vand.u32 %v280, 4294901760
        %v442 = vsub.f32 %v280, %v441
        %v443 = vand.u32 %v442, 4294901760
        %v444 = vsub.f32 %v442, %v443
        %v445 = vand.u32 %v444, 4294901760
        %446 = vmatpush1.msra.mxu0 %v445
        %447 = vmatprep.subr.mxu0 0.0
        %v448 = vand.u32 %v279, 4294901760
        %v449 = vsub.f32 %v279, %v448
        %v450 = vand.u32 %v449, 4294901760
        %v451 = vsub.f32 %v449, %v450
        %v452 = vand.u32 %v451, 4294901760
        %453 = vmatpush1.msra.mxu0 %v452
        %454 = vmatprep.subr.mxu0 0.0
        %v455 = vand.u32 %v278, 4294901760
        %v456 = vsub.f32 %v278, %v455
        %v457 = vand.u32 %v456, 4294901760
        %v458 = vsub.f32 %v456, %v457
        %v459 = vand.u32 %v458, 4294901760
        %460 = vmatpush1.msra.mxu0 %v459
        %461 = vmatprep.subr.mxu0 0.0
        %v462 = vand.u32 %v277, 4294901760
        %v463 = vsub.f32 %v277, %v462
        %v464 = vand.u32 %v463, 4294901760
        %v465 = vsub.f32 %v463, %v464
        %v466 = vand.u32 %v465, 4294901760
        %467 = vmatpush1.msra.mxu0 %v466
        %468 = vmatprep.subr.mxu0 0.0
        %v469 = vand.u32 %v276, 4294901760
        %v470 = vsub.f32 %v276, %v469
        %v471 = vand.u32 %v470, 4294901760
        %v472 = vsub.f32 %v470, %v471
        %v473 = vand.u32 %v472, 4294901760
        %474 = vmatpush1.msra.mxu0 %v473
        %475 = vmatprep.subr.mxu0 0.0
        %v476 = vand.u32 %v275, 4294901760
        %v477 = vsub.f32 %v275, %v476
        %v478 = vand.u32 %v477, 4294901760
        %v479 = vsub.f32 %v477, %v478
        %v480 = vand.u32 %v479, 4294901760
        %481 = vmatpush1.msra.mxu0 %v480
        %482 = vmatprep.subr.mxu0 0.0
        %v483 = vand.u32 %v274, 4294901760
        %v484 = vsub.f32 %v274, %v483
        %v485 = vand.u32 %v484, 4294901760
        %v486 = vsub.f32 %v484, %v485
        %v487 = vand.u32 %v486, 4294901760
        %488 = vmatpush1.msra.mxu0 %v487
        %489 = vmatprep.subr.mxu0 0.0
        %v490 = vand.u32 %v273, 4294901760
        %v491 = vsub.f32 %v273, %v490
        %v492 = vand.u32 %v491, 4294901760
        %v493 = vsub.f32 %v491, %v492
        %v494 = vand.u32 %v493, 4294901760
        %495 = vmatpush1.msra.mxu0 %v494
        %496 = vmatprep.subr.mxu0 0.0
        %v497 = vand.u32 %v272, 4294901760
        %v498 = vsub.f32 %v272, %v497
        %v499 = vand.u32 %v498, 4294901760
        %v500 = vsub.f32 %v498, %v499
        %v501 = vand.u32 %v500, 4294901760
        %502 = vmatpush1.msra.mxu0 %v501
        %503 = vmatprep.subr.mxu0 0.0
        %v504 = vand.u32 %v271, 4294901760
        %v505 = vsub.f32 %v271, %v504
        %v506 = vand.u32 %v505, 4294901760
        %v507 = vsub.f32 %v505, %v506
        %v508 = vand.u32 %v507, 4294901760
        %509 = vmatpush1.msra.mxu0 %v508
        %510 = vmatprep.subr.mxu0 0.0
        %v511 = vand.u32 %v270, 4294901760
        %v512 = vsub.f32 %v270, %v511
        %v513 = vand.u32 %v512, 4294901760
        %v514 = vsub.f32 %v512, %v513
        %v515 = vand.u32 %v514, 4294901760
        %516 = vmatpush1.msra.mxu0 %v515
        %517 = vmatprep.subr.mxu0 0.0
        %v518 = vand.u32 %v269, 4294901760
        %v519 = vsub.f32 %v269, %v518
        %v520 = vand.u32 %v519, 4294901760
        %v521 = vsub.f32 %v519, %v520
        %v522 = vand.u32 %v521, 4294901760
        %523 = vmatpush1.msra.mxu0 %v522
        %524 = vmatprep.subr.mxu0 0.0
        %v525 = vand.u32 %v268, 4294901760
        %v526 = vsub.f32 %v268, %v525
        %v527 = vand.u32 %v526, 4294901760
        %v528 = vsub.f32 %v526, %v527
        %v529 = vand.u32 %v528, 4294901760
        %530 = vmatpush1.msra.mxu0 %v529
        %531 = vmatprep.subr.mxu0 0.0
        %v532 = vand.u32 %v267, 4294901760
        %v533 = vsub.f32 %v267, %v532
        %v534 = vand.u32 %v533, 4294901760
        %v535 = vsub.f32 %v533, %v534
        %v536 = vand.u32 %v535, 4294901760
        %537 = vmatpush1.msra.mxu0 %v536
        %538 = vmatprep.subr.mxu0 0.0
        %v539 = vand.u32 %v298, 4294901760
        %v540 = vsub.f32 %v298, %v539
        %v541 = vand.u32 %v540, 4294901760
        %v542 = vsub.f32 %v540, %v541
        %v543 = vand.u32 %v542, 4294901760
        %544 = vmatpush2.msra.mxu0 %v543
        %545 = vmatprep.subr.mxu0 0.0
        %v546 = vand.u32 %v297, 4294901760
        %v547 = vsub.f32 %v297, %v546
        %v548 = vand.u32 %v547, 4294901760
        %v549 = vsub.f32 %v547, %v548
        %v550 = vand.u32 %v549, 4294901760
        %551 = vmatpush2.msra.mxu0 %v550
        %552 = vmatprep.subr.mxu0 0.0
        %v553 = vand.u32 %v296, 4294901760
        %v554 = vsub.f32 %v296, %v553
        %v555 = vand.u32 %v554, 4294901760
        %v556 = vsub.f32 %v554, %v555
        %v557 = vand.u32 %v556, 4294901760
        %558 = vmatpush2.msra.mxu0 %v557
        %559 = vmatprep.subr.mxu0 0.0
        %v560 = vand.u32 %v295, 4294901760
        %v561 = vsub.f32 %v295, %v560
        %v562 = vand.u32 %v561, 4294901760
        %v563 = vsub.f32 %v561, %v562
        %v564 = vand.u32 %v563, 4294901760
        %565 = vmatpush2.msra.mxu0 %v564
        %566 = vmatprep.subr.mxu0 0.0
        %v567 = vand.u32 %v294, 4294901760
        %v568 = vsub.f32 %v294, %v567
        %v569 = vand.u32 %v568, 4294901760
        %v570 = vsub.f32 %v568, %v569
        %v571 = vand.u32 %v570, 4294901760
        %572 = vmatpush2.msra.mxu0 %v571
        %573 = vmatprep.subr.mxu0 0.0
        %v574 = vand.u32 %v293, 4294901760
        %v575 = vsub.f32 %v293, %v574
        %v576 = vand.u32 %v575, 4294901760
        %v577 = vsub.f32 %v575, %v576
        %v578 = vand.u32 %v577, 4294901760
        %579 = vmatpush2.msra.mxu0 %v578
        %580 = vmatprep.subr.mxu0 0.0
        %v581 = vand.u32 %v292, 4294901760
        %v582 = vsub.f32 %v292, %v581
        %v583 = vand.u32 %v582, 4294901760
        %v584 = vsub.f32 %v582, %v583
        %v585 = vand.u32 %v584, 4294901760
        %586 = vmatpush2.msra.mxu0 %v585
        %587 = vmatprep.subr.mxu0 0.0
        %v588 = vand.u32 %v291, 4294901760
        %v589 = vsub.f32 %v291, %v588
        %v590 = vand.u32 %v589, 4294901760
        %v591 = vsub.f32 %v589, %v590
        %v592 = vand.u32 %v591, 4294901760
        %593 = vmatpush2.msra.mxu0 %v592
        %594 = vmatprep.subr.mxu0 0.0
        %v595 = vand.u32 %v290, 4294901760
        %v596 = vsub.f32 %v290, %v595
        %v597 = vand.u32 %v596, 4294901760
        %v598 = vsub.f32 %v596, %v597
        %v599 = vand.u32 %v598, 4294901760
        %600 = vmatpush2.msra.mxu0 %v599
        %601 = vmatprep.subr.mxu0 0.0
        %v602 = vand.u32 %v289, 4294901760
        %v603 = vsub.f32 %v289, %v602
        %v604 = vand.u32 %v603, 4294901760
        %v605 = vsub.f32 %v603, %v604
        %v606 = vand.u32 %v605, 4294901760
        %607 = vmatpush2.msra.mxu0 %v606
        %608 = vmatprep.subr.mxu0 0.0
        %v609 = vand.u32 %v288, 4294901760
        %v610 = vsub.f32 %v288, %v609
        %v611 = vand.u32 %v610, 4294901760
        %v612 = vsub.f32 %v610, %v611
        %v613 = vand.u32 %v612, 4294901760
        %614 = vmatpush2.msra.mxu0 %v613
        %615 = vmatprep.subr.mxu0 0.0
        %v616 = vand.u32 %v287, 4294901760
        %v617 = vsub.f32 %v287, %v616
        %v618 = vand.u32 %v617, 4294901760
        %v619 = vsub.f32 %v617, %v618
        %v620 = vand.u32 %v619, 4294901760
        %621 = vmatpush2.msra.mxu0 %v620
        %622 = vmatprep.subr.mxu0 0.0
        %v623 = vand.u32 %v286, 4294901760
        %v624 = vsub.f32 %v286, %v623
        %v625 = vand.u32 %v624, 4294901760
        %v626 = vsub.f32 %v624, %v625
        %v627 = vand.u32 %v626, 4294901760
        %628 = vmatpush2.msra.mxu0 %v627
        %629 = vmatprep.subr.mxu0 0.0
        %v630 = vand.u32 %v285, 4294901760
        %v631 = vsub.f32 %v285, %v630
        %v632 = vand.u32 %v631, 4294901760
        %v633 = vsub.f32 %v631, %v632
        %v634 = vand.u32 %v633, 4294901760
        %635 = vmatpush2.msra.mxu0 %v634
        %636 = vmatprep.subr.mxu0 0.0
        %v637 = vand.u32 %v284, 4294901760
        %v638 = vsub.f32 %v284, %v637
        %v639 = vand.u32 %v638, 4294901760
        %v640 = vsub.f32 %v638, %v639
        %v641 = vand.u32 %v640, 4294901760
        %642 = vmatpush2.msra.mxu0 %v641
        %643 = vmatprep.subr.mxu0 0.0
        %v644 = vand.u32 %v283, 4294901760
        %v645 = vsub.f32 %v283, %v644
        %v646 = vand.u32 %v645, 4294901760
        %v647 = vsub.f32 %v645, %v646
        %v648 = vand.u32 %v647, 4294901760
        %649 = vmatpush2.msra.mxu0 %v648
        %v650 = vand.u32 %v264, 4294901760
        %651 = vmatprep.mubr.f32.mxu0 %v650
        %v652 = vand.u32 %v263, 4294901760
        %653 = vmatmul.mubr.f32.gmra.mxu0 %v652
        %v654 = vpop.f32.mrf.mxu0
        %v655 = vadd.f32 %v408, %v654
        %v656 = vpop.f32.mrf.mxu0
        %v657 = vand.u32 %v266, 4294901760
        %658 = vmatprep.mubr.f32.mxu0 %v657
        %v659 = vand.u32 %v265, 4294901760
        %660 = vmatmul.mubr.f32.gmra.mxu0 %v659
        %v661 = vpop.f32.mrf.mxu0
        %v662 = vadd.f32 %v423, %v661
        %v663 = vpop.f32.mrf.mxu0
        %664 = vdwg.mxu0
        %665 = vmatprep.subr.mxu0 0.0
        %v666 = vand.u32 %v282, 4294901760
        %v667 = vsub.f32 %v282, %v666
        %668 = vmatpush1.msra.mxu0 %v667
        %669 = vmatprep.subr.mxu0 0.0
        %v670 = vand.u32 %v281, 4294901760
        %v671 = vsub.f32 %v281, %v670
        %672 = vmatpush1.msra.mxu0 %v671
        %673 = vmatprep.subr.mxu0 0.0
        %v674 = vand.u32 %v280, 4294901760
        %v675 = vsub.f32 %v280, %v674
        %676 = vmatpush1.msra.mxu0 %v675
        %677 = vmatprep.subr.mxu0 0.0
        %v678 = vand.u32 %v279, 4294901760
        %v679 = vsub.f32 %v279, %v678
        %680 = vmatpush1.msra.mxu0 %v679
        %681 = vmatprep.subr.mxu0 0.0
        %v682 = vand.u32 %v278, 4294901760
        %v683 = vsub.f32 %v278, %v682
        %684 = vmatpush1.msra.mxu0 %v683
        %685 = vmatprep.subr.mxu0 0.0
        %v686 = vand.u32 %v277, 4294901760
        %v687 = vsub.f32 %v277, %v686
        %688 = vmatpush1.msra.mxu0 %v687
        %689 = vmatprep.subr.mxu0 0.0
        %v690 = vand.u32 %v276, 4294901760
        %v691 = vsub.f32 %v276, %v690
        %692 = vmatpush1.msra.mxu0 %v691
        %693 = vmatprep.subr.mxu0 0.0
        %v694 = vand.u32 %v275, 4294901760
        %v695 = vsub.f32 %v275, %v694
        %696 = vmatpush1.msra.mxu0 %v695
        %697 = vmatprep.subr.mxu0 0.0
        %v698 = vand.u32 %v274, 4294901760
        %v699 = vsub.f32 %v274, %v698
        %700 = vmatpush1.msra.mxu0 %v699
        %701 = vmatprep.subr.mxu0 0.0
        %v702 = vand.u32 %v273, 4294901760
        %v703 = vsub.f32 %v273, %v702
        %704 = vmatpush1.msra.mxu0 %v703
        %705 = vmatprep.subr.mxu0 0.0
        %v706 = vand.u32 %v272, 4294901760
        %v707 = vsub.f32 %v272, %v706
        %708 = vmatpush1.msra.mxu0 %v707
        %709 = vmatprep.subr.mxu0 0.0
        %v710 = vand.u32 %v271, 4294901760
        %v711 = vsub.f32 %v271, %v710
        %712 = vmatpush1.msra.mxu0 %v711
        %713 = vmatprep.subr.mxu0 0.0
        %v714 = vand.u32 %v270, 4294901760
        %v715 = vsub.f32 %v270, %v714
        %716 = vmatpush1.msra.mxu0 %v715
        %717 = vmatprep.subr.mxu0 0.0
        %v718 = vand.u32 %v269, 4294901760
        %v719 = vsub.f32 %v269, %v718
        %720 = vmatpush1.msra.mxu0 %v719
        %721 = vmatprep.subr.mxu0 0.0
        %v722 = vand.u32 %v268, 4294901760
        %v723 = vsub.f32 %v268, %v722
        %724 = vmatpush1.msra.mxu0 %v723
        %725 = vmatprep.subr.mxu0 0.0
        %v726 = vand.u32 %v267, 4294901760
        %v727 = vsub.f32 %v267, %v726
        %728 = vmatpush1.msra.mxu0 %v727
        %729 = vmatprep.subr.mxu0 0.0
        %v730 = vand.u32 %v298, 4294901760
        %v731 = vsub.f32 %v298, %v730
        %732 = vmatpush2.msra.mxu0 %v731
        %733 = vmatprep.subr.mxu0 0.0
        %v734 = vand.u32 %v297, 4294901760
        %v735 = vsub.f32 %v297, %v734
        %736 = vmatpush2.msra.mxu0 %v735
        %737 = vmatprep.subr.mxu0 0.0
        %v738 = vand.u32 %v296, 4294901760
        %v739 = vsub.f32 %v296, %v738
        %740 = vmatpush2.msra.mxu0 %v739
        %741 = vmatprep.subr.mxu0 0.0
        %v742 = vand.u32 %v295, 4294901760
        %v743 = vsub.f32 %v295, %v742
        %744 = vmatpush2.msra.mxu0 %v743
        %745 = vmatprep.subr.mxu0 0.0
        %v746 = vand.u32 %v294, 4294901760
        %v747 = vsub.f32 %v294, %v746
        %748 = vmatpush2.msra.mxu0 %v747
        %749 = vmatprep.subr.mxu0 0.0
        %v750 = vand.u32 %v293, 4294901760
        %v751 = vsub.f32 %v293, %v750
        %752 = vmatpush2.msra.mxu0 %v751
        %753 = vmatprep.subr.mxu0 0.0
        %v754 = vand.u32 %v292, 4294901760
        %v755 = vsub.f32 %v292, %v754
        %756 = vmatpush2.msra.mxu0 %v755
        %757 = vmatprep.subr.mxu0 0.0
        %v758 = vand.u32 %v291, 4294901760
        %v759 = vsub.f32 %v291, %v758
        %760 = vmatpush2.msra.mxu0 %v759
        %761 = vmatprep.subr.mxu0 0.0
        %v762 = vand.u32 %v290, 4294901760
        %v763 = vsub.f32 %v290, %v762
        %764 = vmatpush2.msra.mxu0 %v763
        %765 = vmatprep.subr.mxu0 0.0
        %v766 = vand.u32 %v289, 4294901760
        %v767 = vsub.f32 %v289, %v766
        %768 = vmatpush2.msra.mxu0 %v767
        %769 = vmatprep.subr.mxu0 0.0
        %v770 = vand.u32 %v288, 4294901760
        %v771 = vsub.f32 %v288, %v770
        %772 = vmatpush2.msra.mxu0 %v771
        %773 = vmatprep.subr.mxu0 0.0
        %v774 = vand.u32 %v287, 4294901760
        %v775 = vsub.f32 %v287, %v774
        %776 = vmatpush2.msra.mxu0 %v775
        %777 = vmatprep.subr.mxu0 0.0
        %v778 = vand.u32 %v286, 4294901760
        %v779 = vsub.f32 %v286, %v778
        %780 = vmatpush2.msra.mxu0 %v779
        %781 = vmatprep.subr.mxu0 0.0
        %v782 = vand.u32 %v285, 4294901760
        %v783 = vsub.f32 %v285, %v782
        %784 = vmatpush2.msra.mxu0 %v783
        %785 = vmatprep.subr.mxu0 0.0
        %v786 = vand.u32 %v284, 4294901760
        %v787 = vsub.f32 %v284, %v786
        %788 = vmatpush2.msra.mxu0 %v787
        %789 = vmatprep.subr.mxu0 0.0
        %v790 = vand.u32 %v283, 4294901760
        %v791 = vsub.f32 %v283, %v790
        %792 = vmatpush2.msra.mxu0 %v791
        %v793 = vand.u32 %v264, 4294901760
        %v794 = vsub.f32 %v264, %v793
        %795 = vmatprep.mubr.f32.mxu0 %v794
        %v796 = vand.u32 %v263, 4294901760
        %v797 = vsub.f32 %v263, %v796
        %798 = vmatmul.mubr.f32.gmra.mxu0 %v797
        %v799 = vpop.f32.mrf.mxu0
        %v800 = vadd.f32 %v655, %v799
        %v801 = vpop.f32.mrf.mxu0
        %v802 = vand.u32 %v266, 4294901760
        %v803 = vsub.f32 %v266, %v802
        %804 = vmatprep.mubr.f32.mxu0 %v803
        %v805 = vand.u32 %v265, 4294901760
        %v806 = vsub.f32 %v265, %v805
        %807 = vmatmul.mubr.f32.gmra.mxu0 %v806
        %v808 = vpop.f32.mrf.mxu0
        %v809 = vadd.f32 %v662, %v808
        %v810 = vpop.f32.mrf.mxu0
        %811 = vdwg.mxu0
        %812 = vmatprep.subr.mxu0 0.0
        %v813 = vand.u32 %v282, 4294901760
        %814 = vmatpush1.msra.mxu0 %v813
        %815 = vmatprep.subr.mxu0 0.0
        %v816 = vand.u32 %v281, 4294901760
        %817 = vmatpush1.msra.mxu0 %v816
        %818 = vmatprep.subr.mxu0 0.0
        %v819 = vand.u32 %v280, 4294901760
        %820 = vmatpush1.msra.mxu0 %v819
        %821 = vmatprep.subr.mxu0 0.0
        %v822 = vand.u32 %v279, 4294901760
        %823 = vmatpush1.msra.mxu0 %v822
        %824 = vmatprep.subr.mxu0 0.0
        %v825 = vand.u32 %v278, 4294901760
        %826 = vmatpush1.msra.mxu0 %v825
        %827 = vmatprep.subr.mxu0 0.0
        %v828 = vand.u32 %v277, 4294901760
        %829 = vmatpush1.msra.mxu0 %v828
        %830 = vmatprep.subr.mxu0 0.0
        %v831 = vand.u32 %v276, 4294901760
        %832 = vmatpush1.msra.mxu0 %v831
        %833 = vmatprep.subr.mxu0 0.0
        %v834 = vand.u32 %v275, 4294901760
        %835 = vmatpush1.msra.mxu0 %v834
        %836 = vmatprep.subr.mxu0 0.0
        %v837 = vand.u32 %v274, 4294901760
        %838 = vmatpush1.msra.mxu0 %v837
        %839 = vmatprep.subr.mxu0 0.0
        %v840 = vand.u32 %v273, 4294901760
        %841 = vmatpush1.msra.mxu0 %v840
        %842 = vmatprep.subr.mxu0 0.0
        %v843 = vand.u32 %v272, 4294901760
        %844 = vmatpush1.msra.mxu0 %v843
        %845 = vmatprep.subr.mxu0 0.0
        %v846 = vand.u32 %v271, 4294901760
        %847 = vmatpush1.msra.mxu0 %v846
        %848 = vmatprep.subr.mxu0 0.0
        %v849 = vand.u32 %v270, 4294901760
        %850 = vmatpush1.msra.mxu0 %v849
        %851 = vmatprep.subr.mxu0 0.0
        %v852 = vand.u32 %v269, 4294901760
        %853 = vmatpush1.msra.mxu0 %v852
        %854 = vmatprep.subr.mxu0 0.0
        %v855 = vand.u32 %v268, 4294901760
        %856 = vmatpush1.msra.mxu0 %v855
        %857 = vmatprep.subr.mxu0 0.0
        %v858 = vand.u32 %v267, 4294901760
        %859 = vmatpush1.msra.mxu0 %v858
        %860 = vmatprep.subr.mxu0 0.0
        %v861 = vand.u32 %v298, 4294901760
        %862 = vmatpush2.msra.mxu0 %v861
        %863 = vmatprep.subr.mxu0 0.0
        %v864 = vand.u32 %v297, 4294901760
        %865 = vmatpush2.msra.mxu0 %v864
        %866 = vmatprep.subr.mxu0 0.0
        %v867 = vand.u32 %v296, 4294901760
        %868 = vmatpush2.msra.mxu0 %v867
        %869 = vmatprep.subr.mxu0 0.0
        %v870 = vand.u32 %v295, 4294901760
        %871 = vmatpush2.msra.mxu0 %v870
        %872 = vmatprep.subr.mxu0 0.0
        %v873 = vand.u32 %v294, 4294901760
        %874 = vmatpush2.msra.mxu0 %v873
        %875 = vmatprep.subr.mxu0 0.0
        %v876 = vand.u32 %v293, 4294901760
        %877 = vmatpush2.msra.mxu0 %v876
        %878 = vmatprep.subr.mxu0 0.0
        %v879 = vand.u32 %v292, 4294901760
        %880 = vmatpush2.msra.mxu0 %v879
        %881 = vmatprep.subr.mxu0 0.0
        %v882 = vand.u32 %v291, 4294901760
        %883 = vmatpush2.msra.mxu0 %v882
        %884 = vmatprep.subr.mxu0 0.0
        %v885 = vand.u32 %v290, 4294901760
        %886 = vmatpush2.msra.mxu0 %v885
        %887 = vmatprep.subr.mxu0 0.0
        %v888 = vand.u32 %v289, 4294901760
        %889 = vmatpush2.msra.mxu0 %v888
        %890 = vmatprep.subr.mxu0 0.0
        %v891 = vand.u32 %v288, 4294901760
        %892 = vmatpush2.msra.mxu0 %v891
        %893 = vmatprep.subr.mxu0 0.0
        %v894 = vand.u32 %v287, 4294901760
        %895 = vmatpush2.msra.mxu0 %v894
        %896 = vmatprep.subr.mxu0 0.0
        %v897 = vand.u32 %v286, 4294901760
        %898 = vmatpush2.msra.mxu0 %v897
        %899 = vmatprep.subr.mxu0 0.0
        %v900 = vand.u32 %v285, 4294901760
        %901 = vmatpush2.msra.mxu0 %v900
        %902 = vmatprep.subr.mxu0 0.0
        %v903 = vand.u32 %v284, 4294901760
        %904 = vmatpush2.msra.mxu0 %v903
        %905 = vmatprep.subr.mxu0 0.0
        %v906 = vand.u32 %v283, 4294901760
        %907 = vmatpush2.msra.mxu0 %v906
        %v908 = vand.u32 %v264, 4294901760
        %v909 = vsub.f32 %v264, %v908
        %v910 = vand.u32 %v909, 4294901760
        %911 = vmatprep.mubr.f32.mxu0 %v910
        %v912 = vand.u32 %v263, 4294901760
        %v913 = vsub.f32 %v263, %v912
        %v914 = vand.u32 %v913, 4294901760
        %915 = vmatmul.mubr.f32.gmra.mxu0 %v914
        %v916 = vpop.f32.mrf.mxu0
        %v917 = vadd.f32 %v800, %v916
        %v918 = vpop.f32.mrf.mxu0
        %v919 = vand.u32 %v266, 4294901760
        %v920 = vsub.f32 %v266, %v919
        %v921 = vand.u32 %v920, 4294901760
        %922 = vmatprep.mubr.f32.mxu0 %v921
        %v923 = vand.u32 %v265, 4294901760
        %v924 = vsub.f32 %v265, %v923
        %v925 = vand.u32 %v924, 4294901760
        %926 = vmatmul.mubr.f32.gmra.mxu0 %v925
        %v927 = vpop.f32.mrf.mxu0
        %v928 = vadd.f32 %v809, %v927
        %v929 = vpop.f32.mrf.mxu0
        %930 = vdwg.mxu0
        %931 = vmatprep.subr.mxu0 0.0
        %v932 = vand.u32 %v282, 4294901760
        %v933 = vsub.f32 %v282, %v932
        %v934 = vand.u32 %v933, 4294901760
        %935 = vmatpush1.msra.mxu0 %v934
        %936 = vmatprep.subr.mxu0 0.0
        %v937 = vand.u32 %v281, 4294901760
        %v938 = vsub.f32 %v281, %v937
        %v939 = vand.u32 %v938, 4294901760
        %940 = vmatpush1.msra.mxu0 %v939
        %941 = vmatprep.subr.mxu0 0.0
        %v942 = vand.u32 %v280, 4294901760
        %v943 = vsub.f32 %v280, %v942
        %v944 = vand.u32 %v943, 4294901760
        %945 = vmatpush1.msra.mxu0 %v944
        %946 = vmatprep.subr.mxu0 0.0
        %v947 = vand.u32 %v279, 4294901760
        %v948 = vsub.f32 %v279, %v947
        %v949 = vand.u32 %v948, 4294901760
        %950 = vmatpush1.msra.mxu0 %v949
        %951 = vmatprep.subr.mxu0 0.0
        %v952 = vand.u32 %v278, 4294901760
        %v953 = vsub.f32 %v278, %v952
        %v954 = vand.u32 %v953, 4294901760
        %955 = vmatpush1.msra.mxu0 %v954
        %956 = vmatprep.subr.mxu0 0.0
        %v957 = vand.u32 %v277, 4294901760
        %v958 = vsub.f32 %v277, %v957
        %v959 = vand.u32 %v958, 4294901760
        %960 = vmatpush1.msra.mxu0 %v959
        %961 = vmatprep.subr.mxu0 0.0
        %v962 = vand.u32 %v276, 4294901760
        %v963 = vsub.f32 %v276, %v962
        %v964 = vand.u32 %v963, 4294901760
        %965 = vmatpush1.msra.mxu0 %v964
        %966 = vmatprep.subr.mxu0 0.0
        %v967 = vand.u32 %v275, 4294901760
        %v968 = vsub.f32 %v275, %v967
        %v969 = vand.u32 %v968, 4294901760
        %970 = vmatpush1.msra.mxu0 %v969
        %971 = vmatprep.subr.mxu0 0.0
        %v972 = vand.u32 %v274, 4294901760
        %v973 = vsub.f32 %v274, %v972
        %v974 = vand.u32 %v973, 4294901760
        %975 = vmatpush1.msra.mxu0 %v974
        %976 = vmatprep.subr.mxu0 0.0
        %v977 = vand.u32 %v273, 4294901760
        %v978 = vsub.f32 %v273, %v977
        %v979 = vand.u32 %v978, 4294901760
        %980 = vmatpush1.msra.mxu0 %v979
        %981 = vmatprep.subr.mxu0 0.0
        %v982 = vand.u32 %v272, 4294901760
        %v983 = vsub.f32 %v272, %v982
        %v984 = vand.u32 %v983, 4294901760
        %985 = vmatpush1.msra.mxu0 %v984
        %986 = vmatprep.subr.mxu0 0.0
        %v987 = vand.u32 %v271, 4294901760
        %v988 = vsub.f32 %v271, %v987
        %v989 = vand.u32 %v988, 4294901760
        %990 = vmatpush1.msra.mxu0 %v989
        %991 = vmatprep.subr.mxu0 0.0
        %v992 = vand.u32 %v270, 4294901760
        %v993 = vsub.f32 %v270, %v992
        %v994 = vand.u32 %v993, 4294901760
        %995 = vmatpush1.msra.mxu0 %v994
        %996 = vmatprep.subr.mxu0 0.0
        %v997 = vand.u32 %v269, 4294901760
        %v998 = vsub.f32 %v269, %v997
        %v999 = vand.u32 %v998, 4294901760
        %1000 = vmatpush1.msra.mxu0 %v999
        %1001 = vmatprep.subr.mxu0 0.0
        %v1002 = vand.u32 %v268, 4294901760
        %v1003 = vsub.f32 %v268, %v1002
        %v1004 = vand.u32 %v1003, 4294901760
        %1005 = vmatpush1.msra.mxu0 %v1004
        %1006 = vmatprep.subr.mxu0 0.0
        %v1007 = vand.u32 %v267, 4294901760
        %v1008 = vsub.f32 %v267, %v1007
        %v1009 = vand.u32 %v1008, 4294901760
        %1010 = vmatpush1.msra.mxu0 %v1009
        %1011 = vmatprep.subr.mxu0 0.0
        %v1012 = vand.u32 %v298, 4294901760
        %v1013 = vsub.f32 %v298, %v1012
        %v1014 = vand.u32 %v1013, 4294901760
        %1015 = vmatpush2.msra.mxu0 %v1014
        %1016 = vmatprep.subr.mxu0 0.0
        %v1017 = vand.u32 %v297, 4294901760
        %v1018 = vsub.f32 %v297, %v1017
        %v1019 = vand.u32 %v1018, 4294901760
        %1020 = vmatpush2.msra.mxu0 %v1019
        %1021 = vmatprep.subr.mxu0 0.0
        %v1022 = vand.u32 %v296, 4294901760
        %v1023 = vsub.f32 %v296, %v1022
        %v1024 = vand.u32 %v1023, 4294901760
        %1025 = vmatpush2.msra.mxu0 %v1024
        %1026 = vmatprep.subr.mxu0 0.0
        %v1027 = vand.u32 %v295, 4294901760
        %v1028 = vsub.f32 %v295, %v1027
        %v1029 = vand.u32 %v1028, 4294901760
        %1030 = vmatpush2.msra.mxu0 %v1029
        %1031 = vmatprep.subr.mxu0 0.0
        %v1032 = vand.u32 %v294, 4294901760
        %v1033 = vsub.f32 %v294, %v1032
        %v1034 = vand.u32 %v1033, 4294901760
        %1035 = vmatpush2.msra.mxu0 %v1034
        %1036 = vmatprep.subr.mxu0 0.0
        %v1037 = vand.u32 %v293, 4294901760
        %v1038 = vsub.f32 %v293, %v1037
        %v1039 = vand.u32 %v1038, 4294901760
        %1040 = vmatpush2.msra.mxu0 %v1039
        %1041 = vmatprep.subr.mxu0 0.0
        %v1042 = vand.u32 %v292, 4294901760
        %v1043 = vsub.f32 %v292, %v1042
        %v1044 = vand.u32 %v1043, 4294901760
        %1045 = vmatpush2.msra.mxu0 %v1044
        %1046 = vmatprep.subr.mxu0 0.0
        %v1047 = vand.u32 %v291, 4294901760
        %v1048 = vsub.f32 %v291, %v1047
        %v1049 = vand.u32 %v1048, 4294901760
        %1050 = vmatpush2.msra.mxu0 %v1049
        %1051 = vmatprep.subr.mxu0 0.0
        %v1052 = vand.u32 %v290, 4294901760
        %v1053 = vsub.f32 %v290, %v1052
        %v1054 = vand.u32 %v1053, 4294901760
        %1055 = vmatpush2.msra.mxu0 %v1054
        %1056 = vmatprep.subr.mxu0 0.0
        %v1057 = vand.u32 %v289, 4294901760
        %v1058 = vsub.f32 %v289, %v1057
        %v1059 = vand.u32 %v1058, 4294901760
        %1060 = vmatpush2.msra.mxu0 %v1059
        %1061 = vmatprep.subr.mxu0 0.0
        %v1062 = vand.u32 %v288, 4294901760
        %v1063 = vsub.f32 %v288, %v1062
        %v1064 = vand.u32 %v1063, 4294901760
        %1065 = vmatpush2.msra.mxu0 %v1064
        %1066 = vmatprep.subr.mxu0 0.0
        %v1067 = vand.u32 %v287, 4294901760
        %v1068 = vsub.f32 %v287, %v1067
        %v1069 = vand.u32 %v1068, 4294901760
        %1070 = vmatpush2.msra.mxu0 %v1069
        %1071 = vmatprep.subr.mxu0 0.0
        %v1072 = vand.u32 %v286, 4294901760
        %v1073 = vsub.f32 %v286, %v1072
        %v1074 = vand.u32 %v1073, 4294901760
        %1075 = vmatpush2.msra.mxu0 %v1074
        %1076 = vmatprep.subr.mxu0 0.0
        %v1077 = vand.u32 %v285, 4294901760
        %v1078 = vsub.f32 %v285, %v1077
        %v1079 = vand.u32 %v1078, 4294901760
        %1080 = vmatpush2.msra.mxu0 %v1079
        %1081 = vmatprep.subr.mxu0 0.0
        %v1082 = vand.u32 %v284, 4294901760
        %v1083 = vsub.f32 %v284, %v1082
        %v1084 = vand.u32 %v1083, 4294901760
        %1085 = vmatpush2.msra.mxu0 %v1084
        %1086 = vmatprep.subr.mxu0 0.0
        %v1087 = vand.u32 %v283, 4294901760
        %v1088 = vsub.f32 %v283, %v1087
        %v1089 = vand.u32 %v1088, 4294901760
        %1090 = vmatpush2.msra.mxu0 %v1089
        %v1091 = vand.u32 %v264, 4294901760
        %1092 = vmatprep.mubr.f32.mxu0 %v1091
        %v1093 = vand.u32 %v263, 4294901760
        %1094 = vmatmul.mubr.f32.gmra.mxu0 %v1093
        %v1095 = vpop.f32.mrf.mxu0
        %v1096 = vadd.f32 %v917, %v1095
        %v1097 = vpop.f32.mrf.mxu0
        %v1098 = vand.u32 %v266, 4294901760
        %1099 = vmatprep.mubr.f32.mxu0 %v1098
        %v1100 = vand.u32 %v265, 4294901760
        %1101 = vmatmul.mubr.f32.gmra.mxu0 %v1100
        %v1102 = vpop.f32.mrf.mxu0
        %v1103 = vadd.f32 %v928, %v1102
        %v1104 = vpop.f32.mrf.mxu0
        %1105 = vdwg.mxu0
        %1106 = vmatprep.subr.mxu0 0.0
        %v1107 = vand.u32 %v282, 4294901760
        %1108 = vmatpush1.msra.mxu0 %v1107
        %1109 = vmatprep.subr.mxu0 0.0
        %v1110 = vand.u32 %v281, 4294901760
        %1111 = vmatpush1.msra.mxu0 %v1110
        %1112 = vmatprep.subr.mxu0 0.0
        %v1113 = vand.u32 %v280, 4294901760
        %1114 = vmatpush1.msra.mxu0 %v1113
        %1115 = vmatprep.subr.mxu0 0.0
        %v1116 = vand.u32 %v279, 4294901760
        %1117 = vmatpush1.msra.mxu0 %v1116
        %1118 = vmatprep.subr.mxu0 0.0
        %v1119 = vand.u32 %v278, 4294901760
        %1120 = vmatpush1.msra.mxu0 %v1119
        %1121 = vmatprep.subr.mxu0 0.0
        %v1122 = vand.u32 %v277, 4294901760
        %1123 = vmatpush1.msra.mxu0 %v1122
        %1124 = vmatprep.subr.mxu0 0.0
        %v1125 = vand.u32 %v276, 4294901760
        %1126 = vmatpush1.msra.mxu0 %v1125
        %1127 = vmatprep.subr.mxu0 0.0
        %v1128 = vand.u32 %v275, 4294901760
        %1129 = vmatpush1.msra.mxu0 %v1128
        %1130 = vmatprep.subr.mxu0 0.0
        %v1131 = vand.u32 %v274, 4294901760
        %1132 = vmatpush1.msra.mxu0 %v1131
        %1133 = vmatprep.subr.mxu0 0.0
        %v1134 = vand.u32 %v273, 4294901760
        %1135 = vmatpush1.msra.mxu0 %v1134
        %1136 = vmatprep.subr.mxu0 0.0
        %v1137 = vand.u32 %v272, 4294901760
        %1138 = vmatpush1.msra.mxu0 %v1137
        %1139 = vmatprep.subr.mxu0 0.0
        %v1140 = vand.u32 %v271, 4294901760
        %1141 = vmatpush1.msra.mxu0 %v1140
        %1142 = vmatprep.subr.mxu0 0.0
        %v1143 = vand.u32 %v270, 4294901760
        %1144 = vmatpush1.msra.mxu0 %v1143
        %1145 = vmatprep.subr.mxu0 0.0
        %v1146 = vand.u32 %v269, 4294901760
        %1147 = vmatpush1.msra.mxu0 %v1146
        %1148 = vmatprep.subr.mxu0 0.0
        %v1149 = vand.u32 %v268, 4294901760
        %1150 = vmatpush1.msra.mxu0 %v1149
        %1151 = vmatprep.subr.mxu0 0.0
        %v1152 = vand.u32 %v267, 4294901760
        %1153 = vmatpush1.msra.mxu0 %v1152
        %1154 = vmatprep.subr.mxu0 0.0
        %v1155 = vand.u32 %v298, 4294901760
        %1156 = vmatpush2.msra.mxu0 %v1155
        %1157 = vmatprep.subr.mxu0 0.0
        %v1158 = vand.u32 %v297, 4294901760
        %1159 = vmatpush2.msra.mxu0 %v1158
        %1160 = vmatprep.subr.mxu0 0.0
        %v1161 = vand.u32 %v296, 4294901760
        %1162 = vmatpush2.msra.mxu0 %v1161
        %1163 = vmatprep.subr.mxu0 0.0
        %v1164 = vand.u32 %v295, 4294901760
        %1165 = vmatpush2.msra.mxu0 %v1164
        %1166 = vmatprep.subr.mxu0 0.0
        %v1167 = vand.u32 %v294, 4294901760
        %1168 = vmatpush2.msra.mxu0 %v1167
        %1169 = vmatprep.subr.mxu0 0.0
        %v1170 = vand.u32 %v293, 4294901760
        %1171 = vmatpush2.msra.mxu0 %v1170
        %1172 = vmatprep.subr.mxu0 0.0
        %v1173 = vand.u32 %v292, 4294901760
        %1174 = vmatpush2.msra.mxu0 %v1173
        %1175 = vmatprep.subr.mxu0 0.0
        %v1176 = vand.u32 %v291, 4294901760
        %1177 = vmatpush2.msra.mxu0 %v1176
        %1178 = vmatprep.subr.mxu0 0.0
        %v1179 = vand.u32 %v290, 4294901760
        %1180 = vmatpush2.msra.mxu0 %v1179
        %1181 = vmatprep.subr.mxu0 0.0
        %v1182 = vand.u32 %v289, 4294901760
        %1183 = vmatpush2.msra.mxu0 %v1182
        %1184 = vmatprep.subr.mxu0 0.0
        %v1185 = vand.u32 %v288, 4294901760
        %1186 = vmatpush2.msra.mxu0 %v1185
        %1187 = vmatprep.subr.mxu0 0.0
        %v1188 = vand.u32 %v287, 4294901760
        %1189 = vmatpush2.msra.mxu0 %v1188
        %1190 = vmatprep.subr.mxu0 0.0
        %v1191 = vand.u32 %v286, 4294901760
        %1192 = vmatpush2.msra.mxu0 %v1191
        %1193 = vmatprep.subr.mxu0 0.0
        %v1194 = vand.u32 %v285, 4294901760
        %1195 = vmatpush2.msra.mxu0 %v1194
        %1196 = vmatprep.subr.mxu0 0.0
        %v1197 = vand.u32 %v284, 4294901760
        %1198 = vmatpush2.msra.mxu0 %v1197
        %1199 = vmatprep.subr.mxu0 0.0
        %v1200 = vand.u32 %v283, 4294901760
        %1201 = vmatpush2.msra.mxu0 %v1200
        %v1202 = vand.u32 %v264, 4294901760
        %1203 = vmatprep.mubr.f32.mxu0 %v1202
        %v1204 = vand.u32 %v263, 4294901760
        %1205 = vmatmul.mubr.f32.gmra.mxu0 %v1204
        %v1206 = vpop.f32.mrf.mxu0
        %v1207 = vadd.f32 %v1096, %v1206
        %v1208 = vpop.f32.mrf.mxu0
        %v1209 = vand.u32 %v266, 4294901760
        %1210 = vmatprep.mubr.f32.mxu0 %v1209
        %v1211 = vand.u32 %v265, 4294901760
        %1212 = vmatmul.mubr.f32.gmra.mxu0 %v1211
        %v1213 = vpop.f32.mrf.mxu0
        %v1214 = vadd.f32 %v1103, %v1213
        %v1215 = vpop.f32.mrf.mxu0
        %1216 = vdwg.mxu0
        %v1217 = vadd.f32 %v261, %v1207
        %v1218 = vadd.f32 %v262, %v1214
        %v1219 = vld [vmem:[#allocation5] sm:$0xff]
        %v1220 = vld [vmem:[#allocation5 + $0x8] sm:$0xff]
        %vm1221 = vcmask 130048
        %v1223 = vsel %vm1221, %v1219, 0
        %v1226 = vsel %vm1221, %v1220, 0
        %1228 = vmatprep.subr.mxu0 0.0
        %1229 = vmatpush1.msra.mxu0 0.0
        %1230 = vmatprep.subr.mxu0 0.0
        %1231 = vmatpush1.msra.mxu0 0.0
        %1232 = vmatprep.subr.mxu0 0.0
        %1233 = vmatpush1.msra.mxu0 0.0
        %1234 = vmatprep.subr.mxu0 0.0
        %1235 = vmatpush1.msra.mxu0 0.0
        %1236 = vmatprep.subr.mxu0 0.0
        %1237 = vmatpush1.msra.mxu0 0.0
        %1238 = vmatprep.subr.mxu0 0.0
        %1239 = vmatpush1.msra.mxu0 0.0
        %1240 = vmatprep.subr.mxu0 0.0
        %1241 = vmatpush1.msra.mxu0 0.0
        %1242 = vmatprep.subr.mxu0 0.0
        %1243 = vmatpush1.msra.mxu0 0.0
        %1244 = vmatprep.subr.mxu0 0.0
        %1245 = vmatpush1.msra.mxu0 0.0
        %1246 = vmatprep.subr.mxu0 0.0
        %1247 = vmatpush1.msra.mxu0 0.0
        %1248 = vmatprep.subr.mxu0 0.0
        %1249 = vmatpush1.msra.mxu0 0.0
        %1250 = vmatprep.subr.mxu0 0.0
        %1251 = vmatpush1.msra.mxu0 0.0
        %1252 = vmatprep.subr.mxu0 0.0
        %1253 = vmatpush1.msra.mxu0 0.0
        %1254 = vmatprep.subr.mxu0 0.0
        %1255 = vmatpush1.msra.mxu0 0.0
        %v1256 = vand.u32 %v266, 4294901760
        %1257 = vmatprep.subr.mxu0 %v1256
        %v1258 = vand.u32 %v265, 4294901760
        %1259 = vmatpush1.msra.mxu0 %v1258
        %v1260 = vand.u32 %v264, 4294901760
        %1261 = vmatprep.subr.mxu0 %v1260
        %v1262 = vand.u32 %v263, 4294901760
        %1263 = vmatpush1.msra.mxu0 %v1262
        %1264 = vmatprep.subr.mxu0 0.0
        %1265 = vmatpush2.msra.mxu0 0.0
        %1266 = vmatprep.subr.mxu0 0.0
        %1267 = vmatpush2.msra.mxu0 0.0
        %1268 = vmatprep.subr.mxu0 0.0
        %1269 = vmatpush2.msra.mxu0 0.0
        %1270 = vmatprep.subr.mxu0 0.0
        %1271 = vmatpush2.msra.mxu0 0.0
        %1272 = vmatprep.subr.mxu0 0.0
        %1273 = vmatpush2.msra.mxu0 0.0
        %1274 = vmatprep.subr.mxu0 0.0
        %1275 = vmatpush2.msra.mxu0 0.0
        %1276 = vmatprep.subr.mxu0 0.0
        %1277 = vmatpush2.msra.mxu0 0.0
        %1278 = vmatprep.subr.mxu0 0.0
        %1279 = vmatpush2.msra.mxu0 0.0
        %1280 = vmatprep.subr.mxu0 0.0
        %1281 = vmatpush2.msra.mxu0 0.0
        %1282 = vmatprep.subr.mxu0 0.0
        %1283 = vmatpush2.msra.mxu0 0.0
        %1284 = vmatprep.subr.mxu0 0.0
        %1285 = vmatpush2.msra.mxu0 0.0
        %1286 = vmatprep.subr.mxu0 0.0
        %1287 = vmatpush2.msra.mxu0 0.0
        %1288 = vmatprep.subr.mxu0 0.0
        %1289 = vmatpush2.msra.mxu0 0.0
        %1290 = vmatprep.subr.mxu0 0.0
        %1291 = vmatpush2.msra.mxu0 0.0
        %1292 = vmatprep.subr.mxu0 0.0
        %1293 = vmatpush2.msra.mxu0 0.0
        %1294 = vmatprep.subr.mxu0 0.0
        %1295 = vmatpush2.msra.mxu0 0.0
        %1296 = vmatprep.mubr.f32.mxu0 0.0
        %v1297 = vand.u32 %v1223, 4294901760
        %v1298 = vsub.f32 %v1223, %v1297
        %v1299 = vand.u32 %v1298, 4294901760
        %v1300 = vsub.f32 %v1298, %v1299
        %v1301 = vand.u32 %v1300, 4294901760
        %1302 = vmatmul.mubr.f32.gmra.mxu0 %v1301
        %v1303 = vpop.f32.mrf.mxu0
        %v1304 = vadd.f32 0.0, %v1303
        %v1305 = vpop.f32.mrf.mxu0
        %v1306 = vadd.f32 0.0, %v1305
        %1307 = vmatprep.mubr.f32.mxu0 0.0
        %v1308 = vand.u32 %v1226, 4294901760
        %v1309 = vsub.f32 %v1226, %v1308
        %v1310 = vand.u32 %v1309, 4294901760
        %v1311 = vsub.f32 %v1309, %v1310
        %v1312 = vand.u32 %v1311, 4294901760
        %1313 = vmatmul.mubr.f32.gmra.mxu0 %v1312
        %v1314 = vpop.f32.mrf.mxu0
        %v1315 = vadd.f32 0.0, %v1314
        %v1316 = vpop.f32.mrf.mxu0
        %v1317 = vadd.f32 0.0, %v1316
        %1318 = vdwg.mxu0
        %1319 = vmatprep.subr.mxu0 0.0
        %1320 = vmatpush1.msra.mxu0 0.0
        %1321 = vmatprep.subr.mxu0 0.0
        %1322 = vmatpush1.msra.mxu0 0.0
        %1323 = vmatprep.subr.mxu0 0.0
        %1324 = vmatpush1.msra.mxu0 0.0
        %1325 = vmatprep.subr.mxu0 0.0
        %1326 = vmatpush1.msra.mxu0 0.0
        %1327 = vmatprep.subr.mxu0 0.0
        %1328 = vmatpush1.msra.mxu0 0.0
        %1329 = vmatprep.subr.mxu0 0.0
        %1330 = vmatpush1.msra.mxu0 0.0
        %1331 = vmatprep.subr.mxu0 0.0
        %1332 = vmatpush1.msra.mxu0 0.0
        %1333 = vmatprep.subr.mxu0 0.0
        %1334 = vmatpush1.msra.mxu0 0.0
        %1335 = vmatprep.subr.mxu0 0.0
        %1336 = vmatpush1.msra.mxu0 0.0
        %1337 = vmatprep.subr.mxu0 0.0
        %1338 = vmatpush1.msra.mxu0 0.0
        %1339 = vmatprep.subr.mxu0 0.0
        %1340 = vmatpush1.msra.mxu0 0.0
        %1341 = vmatprep.subr.mxu0 0.0
        %1342 = vmatpush1.msra.mxu0 0.0
        %1343 = vmatprep.subr.mxu0 0.0
        %1344 = vmatpush1.msra.mxu0 0.0
        %1345 = vmatprep.subr.mxu0 0.0
        %1346 = vmatpush1.msra.mxu0 0.0
        %v1347 = vand.u32 %v266, 4294901760
        %v1348 = vsub.f32 %v266, %v1347
        %v1349 = vand.u32 %v1348, 4294901760
        %v1350 = vsub.f32 %v1348, %v1349
        %v1351 = vand.u32 %v1350, 4294901760
        %1352 = vmatprep.subr.mxu0 %v1351
        %v1353 = vand.u32 %v265, 4294901760
        %v1354 = vsub.f32 %v265, %v1353
        %v1355 = vand.u32 %v1354, 4294901760
        %v1356 = vsub.f32 %v1354, %v1355
        %v1357 = vand.u32 %v1356, 4294901760
        %1358 = vmatpush1.msra.mxu0 %v1357
        %v1359 = vand.u32 %v264, 4294901760
        %v1360 = vsub.f32 %v264, %v1359
        %v1361 = vand.u32 %v1360, 4294901760
        %v1362 = vsub.f32 %v1360, %v1361
        %v1363 = vand.u32 %v1362, 4294901760
        %1364 = vmatprep.subr.mxu0 %v1363
        %v1365 = vand.u32 %v263, 4294901760
        %v1366 = vsub.f32 %v263, %v1365
        %v1367 = vand.u32 %v1366, 4294901760
        %v1368 = vsub.f32 %v1366, %v1367
        %v1369 = vand.u32 %v1368, 4294901760
        %1370 = vmatpush1.msra.mxu0 %v1369
        %1371 = vmatprep.subr.mxu0 0.0
        %1372 = vmatpush2.msra.mxu0 0.0
        %1373 = vmatprep.subr.mxu0 0.0
        %1374 = vmatpush2.msra.mxu0 0.0
        %1375 = vmatprep.subr.mxu0 0.0
        %1376 = vmatpush2.msra.mxu0 0.0
        %1377 = vmatprep.subr.mxu0 0.0
        %1378 = vmatpush2.msra.mxu0 0.0
        %1379 = vmatprep.subr.mxu0 0.0
        %1380 = vmatpush2.msra.mxu0 0.0
        %1381 = vmatprep.subr.mxu0 0.0
        %1382 = vmatpush2.msra.mxu0 0.0
        %1383 = vmatprep.subr.mxu0 0.0
        %1384 = vmatpush2.msra.mxu0 0.0
        %1385 = vmatprep.subr.mxu0 0.0
        %1386 = vmatpush2.msra.mxu0 0.0
        %1387 = vmatprep.subr.mxu0 0.0
        %1388 = vmatpush2.msra.mxu0 0.0
        %1389 = vmatprep.subr.mxu0 0.0
        %1390 = vmatpush2.msra.mxu0 0.0
        %1391 = vmatprep.subr.mxu0 0.0
        %1392 = vmatpush2.msra.mxu0 0.0
        %1393 = vmatprep.subr.mxu0 0.0
        %1394 = vmatpush2.msra.mxu0 0.0
        %1395 = vmatprep.subr.mxu0 0.0
        %1396 = vmatpush2.msra.mxu0 0.0
        %1397 = vmatprep.subr.mxu0 0.0
        %1398 = vmatpush2.msra.mxu0 0.0
        %1399 = vmatprep.subr.mxu0 0.0
        %1400 = vmatpush2.msra.mxu0 0.0
        %1401 = vmatprep.subr.mxu0 0.0
        %1402 = vmatpush2.msra.mxu0 0.0
        %1403 = vmatprep.mubr.f32.mxu0 0.0
        %v1404 = vand.u32 %v1223, 4294901760
        %1405 = vmatmul.mubr.f32.gmra.mxu0 %v1404
        %v1406 = vpop.f32.mrf.mxu0
        %v1407 = vadd.f32 %v1304, %v1406
        %v1408 = vpop.f32.mrf.mxu0
        %v1409 = vadd.f32 %v1306, %v1408
        %1410 = vmatprep.mubr.f32.mxu0 0.0
        %v1411 = vand.u32 %v1226, 4294901760
        %1412 = vmatmul.mubr.f32.gmra.mxu0 %v1411
        %v1413 = vpop.f32.mrf.mxu0
        %v1414 = vadd.f32 %v1315, %v1413
        %v1415 = vpop.f32.mrf.mxu0
        %v1416 = vadd.f32 %v1317, %v1415
        %1417 = vdwg.mxu0
        %1418 = vmatprep.subr.mxu0 0.0
        %1419 = vmatpush1.msra.mxu0 0.0
        %1420 = vmatprep.subr.mxu0 0.0
        %1421 = vmatpush1.msra.mxu0 0.0
        %1422 = vmatprep.subr.mxu0 0.0
        %1423 = vmatpush1.msra.mxu0 0.0
        %1424 = vmatprep.subr.mxu0 0.0
        %1425 = vmatpush1.msra.mxu0 0.0
        %1426 = vmatprep.subr.mxu0 0.0
        %1427 = vmatpush1.msra.mxu0 0.0
        %1428 = vmatprep.subr.mxu0 0.0
        %1429 = vmatpush1.msra.mxu0 0.0
        %1430 = vmatprep.subr.mxu0 0.0
        %1431 = vmatpush1.msra.mxu0 0.0
        %1432 = vmatprep.subr.mxu0 0.0
        %1433 = vmatpush1.msra.mxu0 0.0
        %1434 = vmatprep.subr.mxu0 0.0
        %1435 = vmatpush1.msra.mxu0 0.0
        %1436 = vmatprep.subr.mxu0 0.0
        %1437 = vmatpush1.msra.mxu0 0.0
        %1438 = vmatprep.subr.mxu0 0.0
        %1439 = vmatpush1.msra.mxu0 0.0
        %1440 = vmatprep.subr.mxu0 0.0
        %1441 = vmatpush1.msra.mxu0 0.0
        %1442 = vmatprep.subr.mxu0 0.0
        %1443 = vmatpush1.msra.mxu0 0.0
        %1444 = vmatprep.subr.mxu0 0.0
        %1445 = vmatpush1.msra.mxu0 0.0
        %v1446 = vand.u32 %v266, 4294901760
        %v1447 = vsub.f32 %v266, %v1446
        %1448 = vmatprep.subr.mxu0 %v1447
        %v1449 = vand.u32 %v265, 4294901760
        %v1450 = vsub.f32 %v265, %v1449
        %1451 = vmatpush1.msra.mxu0 %v1450
        %v1452 = vand.u32 %v264, 4294901760
        %v1453 = vsub.f32 %v264, %v1452
        %1454 = vmatprep.subr.mxu0 %v1453
        %v1455 = vand.u32 %v263, 4294901760
        %v1456 = vsub.f32 %v263, %v1455
        %1457 = vmatpush1.msra.mxu0 %v1456
        %1458 = vmatprep.subr.mxu0 0.0
        %1459 = vmatpush2.msra.mxu0 0.0
        %1460 = vmatprep.subr.mxu0 0.0
        %1461 = vmatpush2.msra.mxu0 0.0
        %1462 = vmatprep.subr.mxu0 0.0
        %1463 = vmatpush2.msra.mxu0 0.0
        %1464 = vmatprep.subr.mxu0 0.0
        %1465 = vmatpush2.msra.mxu0 0.0
        %1466 = vmatprep.subr.mxu0 0.0
        %1467 = vmatpush2.msra.mxu0 0.0
        %1468 = vmatprep.subr.mxu0 0.0
        %1469 = vmatpush2.msra.mxu0 0.0
        %1470 = vmatprep.subr.mxu0 0.0
        %1471 = vmatpush2.msra.mxu0 0.0
        %1472 = vmatprep.subr.mxu0 0.0
        %1473 = vmatpush2.msra.mxu0 0.0
        %1474 = vmatprep.subr.mxu0 0.0
        %1475 = vmatpush2.msra.mxu0 0.0
        %1476 = vmatprep.subr.mxu0 0.0
        %1477 = vmatpush2.msra.mxu0 0.0
        %1478 = vmatprep.subr.mxu0 0.0
        %1479 = vmatpush2.msra.mxu0 0.0
        %1480 = vmatprep.subr.mxu0 0.0
        %1481 = vmatpush2.msra.mxu0 0.0
        %1482 = vmatprep.subr.mxu0 0.0
        %1483 = vmatpush2.msra.mxu0 0.0
        %1484 = vmatprep.subr.mxu0 0.0
        %1485 = vmatpush2.msra.mxu0 0.0
        %1486 = vmatprep.subr.mxu0 0.0
        %1487 = vmatpush2.msra.mxu0 0.0
        %1488 = vmatprep.subr.mxu0 0.0
        %1489 = vmatpush2.msra.mxu0 0.0
        %1490 = vmatprep.mubr.f32.mxu0 0.0
        %v1491 = vand.u32 %v1223, 4294901760
        %v1492 = vsub.f32 %v1223, %v1491
        %1493 = vmatmul.mubr.f32.gmra.mxu0 %v1492
        %v1494 = vpop.f32.mrf.mxu0
        %v1495 = vadd.f32 %v1407, %v1494
        %v1496 = vpop.f32.mrf.mxu0
        %v1497 = vadd.f32 %v1409, %v1496
        %1498 = vmatprep.mubr.f32.mxu0 0.0
        %v1499 = vand.u32 %v1226, 4294901760
        %v1500 = vsub.f32 %v1226, %v1499
        %1501 = vmatmul.mubr.f32.gmra.mxu0 %v1500
        %v1502 = vpop.f32.mrf.mxu0
        %v1503 = vadd.f32 %v1414, %v1502
        %v1504 = vpop.f32.mrf.mxu0
        %v1505 = vadd.f32 %v1416, %v1504
        %1506 = vdwg.mxu0
        %1507 = vmatprep.subr.mxu0 0.0
        %1508 = vmatpush1.msra.mxu0 0.0
        %1509 = vmatprep.subr.mxu0 0.0
        %1510 = vmatpush1.msra.mxu0 0.0
        %1511 = vmatprep.subr.mxu0 0.0
        %1512 = vmatpush1.msra.mxu0 0.0
        %1513 = vmatprep.subr.mxu0 0.0
        %1514 = vmatpush1.msra.mxu0 0.0
        %1515 = vmatprep.subr.mxu0 0.0
        %1516 = vmatpush1.msra.mxu0 0.0
        %1517 = vmatprep.subr.mxu0 0.0
        %1518 = vmatpush1.msra.mxu0 0.0
        %1519 = vmatprep.subr.mxu0 0.0
        %1520 = vmatpush1.msra.mxu0 0.0
        %1521 = vmatprep.subr.mxu0 0.0
        %1522 = vmatpush1.msra.mxu0 0.0
        %1523 = vmatprep.subr.mxu0 0.0
        %1524 = vmatpush1.msra.mxu0 0.0
        %1525 = vmatprep.subr.mxu0 0.0
        %1526 = vmatpush1.msra.mxu0 0.0
        %1527 = vmatprep.subr.mxu0 0.0
        %1528 = vmatpush1.msra.mxu0 0.0
        %1529 = vmatprep.subr.mxu0 0.0
        %1530 = vmatpush1.msra.mxu0 0.0
        %1531 = vmatprep.subr.mxu0 0.0
        %1532 = vmatpush1.msra.mxu0 0.0
        %1533 = vmatprep.subr.mxu0 0.0
        %1534 = vmatpush1.msra.mxu0 0.0
        %v1535 = vand.u32 %v266, 4294901760
        %1536 = vmatprep.subr.mxu0 %v1535
        %v1537 = vand.u32 %v265, 4294901760
        %1538 = vmatpush1.msra.mxu0 %v1537
        %v1539 = vand.u32 %v264, 4294901760
        %1540 = vmatprep.subr.mxu0 %v1539
        %v1541 = vand.u32 %v263, 4294901760
        %1542 = vmatpush1.msra.mxu0 %v1541
        %1543 = vmatprep.subr.mxu0 0.0
        %1544 = vmatpush2.msra.mxu0 0.0
        %1545 = vmatprep.subr.mxu0 0.0
        %1546 = vmatpush2.msra.mxu0 0.0
        %1547 = vmatprep.subr.mxu0 0.0
        %1548 = vmatpush2.msra.mxu0 0.0
        %1549 = vmatprep.subr.mxu0 0.0
        %1550 = vmatpush2.msra.mxu0 0.0
        %1551 = vmatprep.subr.mxu0 0.0
        %1552 = vmatpush2.msra.mxu0 0.0
        %1553 = vmatprep.subr.mxu0 0.0
        %1554 = vmatpush2.msra.mxu0 0.0
        %1555 = vmatprep.subr.mxu0 0.0
        %1556 = vmatpush2.msra.mxu0 0.0
        %1557 = vmatprep.subr.mxu0 0.0
        %1558 = vmatpush2.msra.mxu0 0.0
        %1559 = vmatprep.subr.mxu0 0.0
        %1560 = vmatpush2.msra.mxu0 0.0
        %1561 = vmatprep.subr.mxu0 0.0
        %1562 = vmatpush2.msra.mxu0 0.0
        %1563 = vmatprep.subr.mxu0 0.0
        %1564 = vmatpush2.msra.mxu0 0.0
        %1565 = vmatprep.subr.mxu0 0.0
        %1566 = vmatpush2.msra.mxu0 0.0
        %1567 = vmatprep.subr.mxu0 0.0
        %1568 = vmatpush2.msra.mxu0 0.0
        %1569 = vmatprep.subr.mxu0 0.0
        %1570 = vmatpush2.msra.mxu0 0.0
        %1571 = vmatprep.subr.mxu0 0.0
        %1572 = vmatpush2.msra.mxu0 0.0
        %1573 = vmatprep.subr.mxu0 0.0
        %1574 = vmatpush2.msra.mxu0 0.0
        %1575 = vmatprep.mubr.f32.mxu0 0.0
        %v1576 = vand.u32 %v1223, 4294901760
        %v1577 = vsub.f32 %v1223, %v1576
        %v1578 = vand.u32 %v1577, 4294901760
        %1579 = vmatmul.mubr.f32.gmra.mxu0 %v1578
        %v1580 = vpop.f32.mrf.mxu0
        %v1581 = vadd.f32 %v1495, %v1580
        %v1582 = vpop.f32.mrf.mxu0
        %v1583 = vadd.f32 %v1497, %v1582
        %1584 = vmatprep.mubr.f32.mxu0 0.0
        %v1585 = vand.u32 %v1226, 4294901760
        %v1586 = vsub.f32 %v1226, %v1585
        %v1587 = vand.u32 %v1586, 4294901760
        %1588 = vmatmul.mubr.f32.gmra.mxu0 %v1587
        %v1589 = vpop.f32.mrf.mxu0
        %v1590 = vadd.f32 %v1503, %v1589
        %v1591 = vpop.f32.mrf.mxu0
        %v1592 = vadd.f32 %v1505, %v1591
        %1593 = vdwg.mxu0
        %1594 = vmatprep.subr.mxu0 0.0
        %1595 = vmatpush1.msra.mxu0 0.0
        %1596 = vmatprep.subr.mxu0 0.0
        %1597 = vmatpush1.msra.mxu0 0.0
        %1598 = vmatprep.subr.mxu0 0.0
        %1599 = vmatpush1.msra.mxu0 0.0
        %1600 = vmatprep.subr.mxu0 0.0
        %1601 = vmatpush1.msra.mxu0 0.0
        %1602 = vmatprep.subr.mxu0 0.0
        %1603 = vmatpush1.msra.mxu0 0.0
        %1604 = vmatprep.subr.mxu0 0.0
        %1605 = vmatpush1.msra.mxu0 0.0
        %1606 = vmatprep.subr.mxu0 0.0
        %1607 = vmatpush1.msra.mxu0 0.0
        %1608 = vmatprep.subr.mxu0 0.0
        %1609 = vmatpush1.msra.mxu0 0.0
        %1610 = vmatprep.subr.mxu0 0.0
        %1611 = vmatpush1.msra.mxu0 0.0
        %1612 = vmatprep.subr.mxu0 0.0
        %1613 = vmatpush1.msra.mxu0 0.0
        %1614 = vmatprep.subr.mxu0 0.0
        %1615 = vmatpush1.msra.mxu0 0.0
        %1616 = vmatprep.subr.mxu0 0.0
        %1617 = vmatpush1.msra.mxu0 0.0
        %1618 = vmatprep.subr.mxu0 0.0
        %1619 = vmatpush1.msra.mxu0 0.0
        %1620 = vmatprep.subr.mxu0 0.0
        %1621 = vmatpush1.msra.mxu0 0.0
        %v1622 = vand.u32 %v266, 4294901760
        %v1623 = vsub.f32 %v266, %v1622
        %v1624 = vand.u32 %v1623, 4294901760
        %1625 = vmatprep.subr.mxu0 %v1624
        %v1626 = vand.u32 %v265, 4294901760
        %v1627 = vsub.f32 %v265, %v1626
        %v1628 = vand.u32 %v1627, 4294901760
        %1629 = vmatpush1.msra.mxu0 %v1628
        %v1630 = vand.u32 %v264, 4294901760
        %v1631 = vsub.f32 %v264, %v1630
        %v1632 = vand.u32 %v1631, 4294901760
        %1633 = vmatprep.subr.mxu0 %v1632
        %v1634 = vand.u32 %v263, 4294901760
        %v1635 = vsub.f32 %v263, %v1634
        %v1636 = vand.u32 %v1635, 4294901760
        %1637 = vmatpush1.msra.mxu0 %v1636
        %1638 = vmatprep.subr.mxu0 0.0
        %1639 = vmatpush2.msra.mxu0 0.0
        %1640 = vmatprep.subr.mxu0 0.0
        %1641 = vmatpush2.msra.mxu0 0.0
        %1642 = vmatprep.subr.mxu0 0.0
        %1643 = vmatpush2.msra.mxu0 0.0
        %1644 = vmatprep.subr.mxu0 0.0
        %1645 = vmatpush2.msra.mxu0 0.0
        %1646 = vmatprep.subr.mxu0 0.0
        %1647 = vmatpush2.msra.mxu0 0.0
        %1648 = vmatprep.subr.mxu0 0.0
        %1649 = vmatpush2.msra.mxu0 0.0
        %1650 = vmatprep.subr.mxu0 0.0
        %1651 = vmatpush2.msra.mxu0 0.0
        %1652 = vmatprep.subr.mxu0 0.0
        %1653 = vmatpush2.msra.mxu0 0.0
        %1654 = vmatprep.subr.mxu0 0.0
        %1655 = vmatpush2.msra.mxu0 0.0
        %1656 = vmatprep.subr.mxu0 0.0
        %1657 = vmatpush2.msra.mxu0 0.0
        %1658 = vmatprep.subr.mxu0 0.0
        %1659 = vmatpush2.msra.mxu0 0.0
        %1660 = vmatprep.subr.mxu0 0.0
        %1661 = vmatpush2.msra.mxu0 0.0
        %1662 = vmatprep.subr.mxu0 0.0
        %1663 = vmatpush2.msra.mxu0 0.0
        %1664 = vmatprep.subr.mxu0 0.0
        %1665 = vmatpush2.msra.mxu0 0.0
        %1666 = vmatprep.subr.mxu0 0.0
        %1667 = vmatpush2.msra.mxu0 0.0
        %1668 = vmatprep.subr.mxu0 0.0
        %1669 = vmatpush2.msra.mxu0 0.0
        %1670 = vmatprep.mubr.f32.mxu0 0.0
        %v1671 = vand.u32 %v1223, 4294901760
        %1672 = vmatmul.mubr.f32.gmra.mxu0 %v1671
        %v1673 = vpop.f32.mrf.mxu0
        %v1674 = vadd.f32 %v1581, %v1673
        %v1675 = vpop.f32.mrf.mxu0
        %v1676 = vadd.f32 %v1583, %v1675
        %1677 = vmatprep.mubr.f32.mxu0 0.0
        %v1678 = vand.u32 %v1226, 4294901760
        %1679 = vmatmul.mubr.f32.gmra.mxu0 %v1678
        %v1680 = vpop.f32.mrf.mxu0
        %v1681 = vadd.f32 %v1590, %v1680
        %v1682 = vpop.f32.mrf.mxu0
        %v1683 = vadd.f32 %v1592, %v1682
        %1684 = vdwg.mxu0
        %1685 = vmatprep.subr.mxu0 0.0
        %1686 = vmatpush1.msra.mxu0 0.0
        %1687 = vmatprep.subr.mxu0 0.0
        %1688 = vmatpush1.msra.mxu0 0.0
        %1689 = vmatprep.subr.mxu0 0.0
        %1690 = vmatpush1.msra.mxu0 0.0
        %1691 = vmatprep.subr.mxu0 0.0
        %1692 = vmatpush1.msra.mxu0 0.0
        %1693 = vmatprep.subr.mxu0 0.0
        %1694 = vmatpush1.msra.mxu0 0.0
        %1695 = vmatprep.subr.mxu0 0.0
        %1696 = vmatpush1.msra.mxu0 0.0
        %1697 = vmatprep.subr.mxu0 0.0
        %1698 = vmatpush1.msra.mxu0 0.0
        %1699 = vmatprep.subr.mxu0 0.0
        %1700 = vmatpush1.msra.mxu0 0.0
        %1701 = vmatprep.subr.mxu0 0.0
        %1702 = vmatpush1.msra.mxu0 0.0
        %1703 = vmatprep.subr.mxu0 0.0
        %1704 = vmatpush1.msra.mxu0 0.0
        %1705 = vmatprep.subr.mxu0 0.0
        %1706 = vmatpush1.msra.mxu0 0.0
        %1707 = vmatprep.subr.mxu0 0.0
        %1708 = vmatpush1.msra.mxu0 0.0
        %1709 = vmatprep.subr.mxu0 0.0
        %1710 = vmatpush1.msra.mxu0 0.0
        %1711 = vmatprep.subr.mxu0 0.0
        %1712 = vmatpush1.msra.mxu0 0.0
        %v1713 = vand.u32 %v266, 4294901760
        %1714 = vmatprep.subr.mxu0 %v1713
        %v1715 = vand.u32 %v265, 4294901760
        %1716 = vmatpush1.msra.mxu0 %v1715
        %v1717 = vand.u32 %v264, 4294901760
        %1718 = vmatprep.subr.mxu0 %v1717
        %v1719 = vand.u32 %v263, 4294901760
        %1720 = vmatpush1.msra.mxu0 %v1719
        %1721 = vmatprep.subr.mxu0 0.0
        %1722 = vmatpush2.msra.mxu0 0.0
        %1723 = vmatprep.subr.mxu0 0.0
        %1724 = vmatpush2.msra.mxu0 0.0
        %1725 = vmatprep.subr.mxu0 0.0
        %1726 = vmatpush2.msra.mxu0 0.0
        %1727 = vmatprep.subr.mxu0 0.0
        %1728 = vmatpush2.msra.mxu0 0.0
        %1729 = vmatprep.subr.mxu0 0.0
        %1730 = vmatpush2.msra.mxu0 0.0
        %1731 = vmatprep.subr.mxu0 0.0
        %1732 = vmatpush2.msra.mxu0 0.0
        %1733 = vmatprep.subr.mxu0 0.0
        %1734 = vmatpush2.msra.mxu0 0.0
        %1735 = vmatprep.subr.mxu0 0.0
        %1736 = vmatpush2.msra.mxu0 0.0
        %1737 = vmatprep.subr.mxu0 0.0
        %1738 = vmatpush2.msra.mxu0 0.0
        %1739 = vmatprep.subr.mxu0 0.0
        %1740 = vmatpush2.msra.mxu0 0.0
        %1741 = vmatprep.subr.mxu0 0.0
        %1742 = vmatpush2.msra.mxu0 0.0
        %1743 = vmatprep.subr.mxu0 0.0
        %1744 = vmatpush2.msra.mxu0 0.0
        %1745 = vmatprep.subr.mxu0 0.0
        %1746 = vmatpush2.msra.mxu0 0.0
        %1747 = vmatprep.subr.mxu0 0.0
        %1748 = vmatpush2.msra.mxu0 0.0
        %1749 = vmatprep.subr.mxu0 0.0
        %1750 = vmatpush2.msra.mxu0 0.0
        %1751 = vmatprep.subr.mxu0 0.0
        %1752 = vmatpush2.msra.mxu0 0.0
        %1753 = vmatprep.mubr.f32.mxu0 0.0
        %v1754 = vand.u32 %v1223, 4294901760
        %1755 = vmatmul.mubr.f32.gmra.mxu0 %v1754
        %v1756 = vpop.f32.mrf.mxu0
        %v1757 = vadd.f32 %v1674, %v1756
        %v1758 = vpop.f32.mrf.mxu0
        %v1759 = vadd.f32 %v1676, %v1758
        %1760 = vmatprep.mubr.f32.mxu0 0.0
        %v1761 = vand.u32 %v1226, 4294901760
        %1762 = vmatmul.mubr.f32.gmra.mxu0 %v1761
        %v1763 = vpop.f32.mrf.mxu0
        %v1764 = vadd.f32 %v1681, %v1763
        %v1765 = vpop.f32.mrf.mxu0
        %v1766 = vadd.f32 %v1683, %v1765
        %1767 = vdwg.mxu0
        %s1768 = scalar_lea.vmem [#allocation7], 256
        %v1769 = vld [vmem:[%s1768] sm:$0xff]
        %v1770 = vld [vmem:[%s1768 + $0x8] sm:$0xff]
        %v1771 = vld [vmem:[%s1768 + $0x10] sm:$0xff]
        %v1772 = vld [vmem:[%s1768 + $0x18] sm:$0xff]
        %v1773 = vld [vmem:[%s1768 + $0x20] sm:$0xff]
        %v1774 = vld [vmem:[%s1768 + $0x28] sm:$0xff]
        %v1775 = vld [vmem:[%s1768 + $0x30] sm:$0xff]
        %v1776 = vld [vmem:[%s1768 + $0x38] sm:$0xff]
        %v1777 = vld [vmem:[%s1768 + $0x40] sm:$0xff]
        %v1778 = vld [vmem:[%s1768 + $0x48] sm:$0xff]
        %v1779 = vld [vmem:[%s1768 + $0x50] sm:$0xff]
        %v1780 = vld [vmem:[%s1768 + $0x58] sm:$0xff]
        %v1781 = vld [vmem:[%s1768 + $0x60] sm:$0xff]
        %v1782 = vld [vmem:[%s1768 + $0x68] sm:$0xff]
        %v1783 = vld [vmem:[%s1768 + $0x70] sm:$0xff]
        %v1784 = vld [vmem:[%s1768 + $0x78] sm:$0xff]
        %v1785 = vld [vmem:[%s1768 + $0x80] sm:$0xff]
        %v1786 = vld [vmem:[%s1768 + $0x88] sm:$0xff]
        %v1787 = vld [vmem:[%s1768 + $0x90] sm:$0xff]
        %v1788 = vld [vmem:[%s1768 + $0x98] sm:$0xff]
        %v1789 = vld [vmem:[%s1768 + $0xa0] sm:$0xff]
        %v1790 = vld [vmem:[%s1768 + $0xa8] sm:$0xff]
        %v1791 = vld [vmem:[%s1768 + $0xb0] sm:$0xff]
        %v1792 = vld [vmem:[%s1768 + $0xb8] sm:$0xff]
        %v1793 = vld [vmem:[%s1768 + $0xc0] sm:$0xff]
        %v1794 = vld [vmem:[%s1768 + $0xc8] sm:$0xff]
        %v1795 = vld [vmem:[%s1768 + $0xd0] sm:$0xff]
        %v1796 = vld [vmem:[%s1768 + $0xd8] sm:$0xff]
        %v1797 = vld [vmem:[%s1768 + $0xe0] sm:$0xff]
        %v1798 = vld [vmem:[%s1768 + $0xe8] sm:$0xff]
        %v1799 = vld [vmem:[%s1768 + $0xf0] sm:$0xff]
        %v1800 = vld [vmem:[%s1768 + $0xf8] sm:$0xff]
        %1801 = vmatprep.subr.mxu0 0.0
        %v1802 = vand.u32 %v1784, 4294901760
        %1803 = vmatpush1.msra.mxu0 %v1802
        %1804 = vmatprep.subr.mxu0 0.0
        %v1805 = vand.u32 %v1783, 4294901760
        %1806 = vmatpush1.msra.mxu0 %v1805
        %1807 = vmatprep.subr.mxu0 0.0
        %v1808 = vand.u32 %v1782, 4294901760
        %1809 = vmatpush1.msra.mxu0 %v1808
        %1810 = vmatprep.subr.mxu0 0.0
        %v1811 = vand.u32 %v1781, 4294901760
        %1812 = vmatpush1.msra.mxu0 %v1811
        %1813 = vmatprep.subr.mxu0 0.0
        %v1814 = vand.u32 %v1780, 4294901760
        %1815 = vmatpush1.msra.mxu0 %v1814
        %1816 = vmatprep.subr.mxu0 0.0
        %v1817 = vand.u32 %v1779, 4294901760
        %1818 = vmatpush1.msra.mxu0 %v1817
        %1819 = vmatprep.subr.mxu0 0.0
        %v1820 = vand.u32 %v1778, 4294901760
        %1821 = vmatpush1.msra.mxu0 %v1820
        %1822 = vmatprep.subr.mxu0 0.0
        %v1823 = vand.u32 %v1777, 4294901760
        %1824 = vmatpush1.msra.mxu0 %v1823
        %1825 = vmatprep.subr.mxu0 0.0
        %v1826 = vand.u32 %v1776, 4294901760
        %1827 = vmatpush1.msra.mxu0 %v1826
        %1828 = vmatprep.subr.mxu0 0.0
        %v1829 = vand.u32 %v1775, 4294901760
        %1830 = vmatpush1.msra.mxu0 %v1829
        %1831 = vmatprep.subr.mxu0 0.0
        %v1832 = vand.u32 %v1774, 4294901760
        %1833 = vmatpush1.msra.mxu0 %v1832
        %1834 = vmatprep.subr.mxu0 0.0
        %v1835 = vand.u32 %v1773, 4294901760
        %1836 = vmatpush1.msra.mxu0 %v1835
        %1837 = vmatprep.subr.mxu0 0.0
        %v1838 = vand.u32 %v1772, 4294901760
        %1839 = vmatpush1.msra.mxu0 %v1838
        %1840 = vmatprep.subr.mxu0 0.0
        %v1841 = vand.u32 %v1771, 4294901760
        %1842 = vmatpush1.msra.mxu0 %v1841
        %1843 = vmatprep.subr.mxu0 0.0
        %v1844 = vand.u32 %v1770, 4294901760
        %1845 = vmatpush1.msra.mxu0 %v1844
        %1846 = vmatprep.subr.mxu0 0.0
        %v1847 = vand.u32 %v1769, 4294901760
        %1848 = vmatpush1.msra.mxu0 %v1847
        %1849 = vmatprep.subr.mxu0 0.0
        %v1850 = vand.u32 %v1800, 4294901760
        %1851 = vmatpush2.msra.mxu0 %v1850
        %1852 = vmatprep.subr.mxu0 0.0
        %v1853 = vand.u32 %v1799, 4294901760
        %1854 = vmatpush2.msra.mxu0 %v1853
        %1855 = vmatprep.subr.mxu0 0.0
        %v1856 = vand.u32 %v1798, 4294901760
        %1857 = vmatpush2.msra.mxu0 %v1856
        %1858 = vmatprep.subr.mxu0 0.0
        %v1859 = vand.u32 %v1797, 4294901760
        %1860 = vmatpush2.msra.mxu0 %v1859
        %1861 = vmatprep.subr.mxu0 0.0
        %v1862 = vand.u32 %v1796, 4294901760
        %1863 = vmatpush2.msra.mxu0 %v1862
        %1864 = vmatprep.subr.mxu0 0.0
        %v1865 = vand.u32 %v1795, 4294901760
        %1866 = vmatpush2.msra.mxu0 %v1865
        %1867 = vmatprep.subr.mxu0 0.0
        %v1868 = vand.u32 %v1794, 4294901760
        %1869 = vmatpush2.msra.mxu0 %v1868
        %1870 = vmatprep.subr.mxu0 0.0
        %v1871 = vand.u32 %v1793, 4294901760
        %1872 = vmatpush2.msra.mxu0 %v1871
        %1873 = vmatprep.subr.mxu0 0.0
        %v1874 = vand.u32 %v1792, 4294901760
        %1875 = vmatpush2.msra.mxu0 %v1874
        %1876 = vmatprep.subr.mxu0 0.0
        %v1877 = vand.u32 %v1791, 4294901760
        %1878 = vmatpush2.msra.mxu0 %v1877
        %1879 = vmatprep.subr.mxu0 0.0
        %v1880 = vand.u32 %v1790, 4294901760
        %1881 = vmatpush2.msra.mxu0 %v1880
        %1882 = vmatprep.subr.mxu0 0.0
        %v1883 = vand.u32 %v1789, 4294901760
        %1884 = vmatpush2.msra.mxu0 %v1883
        %1885 = vmatprep.subr.mxu0 0.0
        %v1886 = vand.u32 %v1788, 4294901760
        %1887 = vmatpush2.msra.mxu0 %v1886
        %1888 = vmatprep.subr.mxu0 0.0
        %v1889 = vand.u32 %v1787, 4294901760
        %1890 = vmatpush2.msra.mxu0 %v1889
        %1891 = vmatprep.subr.mxu0 0.0
        %v1892 = vand.u32 %v1786, 4294901760
        %1893 = vmatpush2.msra.mxu0 %v1892
        %1894 = vmatprep.subr.mxu0 0.0
        %v1895 = vand.u32 %v1785, 4294901760
        %1896 = vmatpush2.msra.mxu0 %v1895
        %v1897 = vand.u32 %v1759, 4294901760
        %v1898 = vsub.f32 %v1759, %v1897
        %v1899 = vand.u32 %v1898, 4294901760
        %v1900 = vsub.f32 %v1898, %v1899
        %v1901 = vand.u32 %v1900, 4294901760
        %1902 = vmatprep.mubr.f32.mxu0 %v1901
        %v1903 = vand.u32 %v1757, 4294901760
        %v1904 = vsub.f32 %v1757, %v1903
        %v1905 = vand.u32 %v1904, 4294901760
        %v1906 = vsub.f32 %v1904, %v1905
        %v1907 = vand.u32 %v1906, 4294901760
        %1908 = vmatmul.mubr.f32.gmra.mxu0 %v1907
        %v1909 = vpop.f32.mrf.mxu0
        %v1910 = vadd.f32 0.0, %v1909
        %v1911 = vpop.f32.mrf.mxu0
        %v1912 = vand.u32 %v1766, 4294901760
        %v1913 = vsub.f32 %v1766, %v1912
        %v1914 = vand.u32 %v1913, 4294901760
        %v1915 = vsub.f32 %v1913, %v1914
        %v1916 = vand.u32 %v1915, 4294901760
        %1917 = vmatprep.mubr.f32.mxu0 %v1916
        %v1918 = vand.u32 %v1764, 4294901760
        %v1919 = vsub.f32 %v1764, %v1918
        %v1920 = vand.u32 %v1919, 4294901760
        %v1921 = vsub.f32 %v1919, %v1920
        %v1922 = vand.u32 %v1921, 4294901760
        %1923 = vmatmul.mubr.f32.gmra.mxu0 %v1922
        %v1924 = vpop.f32.mrf.mxu0
        %v1925 = vadd.f32 0.0, %v1924
        %v1926 = vpop.f32.mrf.mxu0
        %1927 = vdwg.mxu0
        %1928 = vmatprep.subr.mxu0 0.0
        %v1929 = vand.u32 %v1784, 4294901760
        %v1930 = vsub.f32 %v1784, %v1929
        %v1931 = vand.u32 %v1930, 4294901760
        %v1932 = vsub.f32 %v1930, %v1931
        %v1933 = vand.u32 %v1932, 4294901760
        %1934 = vmatpush1.msra.mxu0 %v1933
        %1935 = vmatprep.subr.mxu0 0.0
        %v1936 = vand.u32 %v1783, 4294901760
        %v1937 = vsub.f32 %v1783, %v1936
        %v1938 = vand.u32 %v1937, 4294901760
        %v1939 = vsub.f32 %v1937, %v1938
        %v1940 = vand.u32 %v1939, 4294901760
        %1941 = vmatpush1.msra.mxu0 %v1940
        %1942 = vmatprep.subr.mxu0 0.0
        %v1943 = vand.u32 %v1782, 4294901760
        %v1944 = vsub.f32 %v1782, %v1943
        %v1945 = vand.u32 %v1944, 4294901760
        %v1946 = vsub.f32 %v1944, %v1945
        %v1947 = vand.u32 %v1946, 4294901760
        %1948 = vmatpush1.msra.mxu0 %v1947
        %1949 = vmatprep.subr.mxu0 0.0
        %v1950 = vand.u32 %v1781, 4294901760
        %v1951 = vsub.f32 %v1781, %v1950
        %v1952 = vand.u32 %v1951, 4294901760
        %v1953 = vsub.f32 %v1951, %v1952
        %v1954 = vand.u32 %v1953, 4294901760
        %1955 = vmatpush1.msra.mxu0 %v1954
        %1956 = vmatprep.subr.mxu0 0.0
        %v1957 = vand.u32 %v1780, 4294901760
        %v1958 = vsub.f32 %v1780, %v1957
        %v1959 = vand.u32 %v1958, 4294901760
        %v1960 = vsub.f32 %v1958, %v1959
        %v1961 = vand.u32 %v1960, 4294901760
        %1962 = vmatpush1.msra.mxu0 %v1961
        %1963 = vmatprep.subr.mxu0 0.0
        %v1964 = vand.u32 %v1779, 4294901760
        %v1965 = vsub.f32 %v1779, %v1964
        %v1966 = vand.u32 %v1965, 4294901760
        %v1967 = vsub.f32 %v1965, %v1966
        %v1968 = vand.u32 %v1967, 4294901760
        %1969 = vmatpush1.msra.mxu0 %v1968
        %1970 = vmatprep.subr.mxu0 0.0
        %v1971 = vand.u32 %v1778, 4294901760
        %v1972 = vsub.f32 %v1778, %v1971
        %v1973 = vand.u32 %v1972, 4294901760
        %v1974 = vsub.f32 %v1972, %v1973
        %v1975 = vand.u32 %v1974, 4294901760
        %1976 = vmatpush1.msra.mxu0 %v1975
        %1977 = vmatprep.subr.mxu0 0.0
        %v1978 = vand.u32 %v1777, 4294901760
        %v1979 = vsub.f32 %v1777, %v1978
        %v1980 = vand.u32 %v1979, 4294901760
        %v1981 = vsub.f32 %v1979, %v1980
        %v1982 = vand.u32 %v1981, 4294901760
        %1983 = vmatpush1.msra.mxu0 %v1982
        %1984 = vmatprep.subr.mxu0 0.0
        %v1985 = vand.u32 %v1776, 4294901760
        %v1986 = vsub.f32 %v1776, %v1985
        %v1987 = vand.u32 %v1986, 4294901760
        %v1988 = vsub.f32 %v1986, %v1987
        %v1989 = vand.u32 %v1988, 4294901760
        %1990 = vmatpush1.msra.mxu0 %v1989
        %1991 = vmatprep.subr.mxu0 0.0
        %v1992 = vand.u32 %v1775, 4294901760
        %v1993 = vsub.f32 %v1775, %v1992
        %v1994 = vand.u32 %v1993, 4294901760
        %v1995 = vsub.f32 %v1993, %v1994
        %v1996 = vand.u32 %v1995, 4294901760
        %1997 = vmatpush1.msra.mxu0 %v1996
        %1998 = vmatprep.subr.mxu0 0.0
        %v1999 = vand.u32 %v1774, 4294901760
        %v2000 = vsub.f32 %v1774, %v1999
        %v2001 = vand.u32 %v2000, 4294901760
        %v2002 = vsub.f32 %v2000, %v2001
        %v2003 = vand.u32 %v2002, 4294901760
        %2004 = vmatpush1.msra.mxu0 %v2003
        %2005 = vmatprep.subr.mxu0 0.0
        %v2006 = vand.u32 %v1773, 4294901760
        %v2007 = vsub.f32 %v1773, %v2006
        %v2008 = vand.u32 %v2007, 4294901760
        %v2009 = vsub.f32 %v2007, %v2008
        %v2010 = vand.u32 %v2009, 4294901760
        %2011 = vmatpush1.msra.mxu0 %v2010
        %2012 = vmatprep.subr.mxu0 0.0
        %v2013 = vand.u32 %v1772, 4294901760
        %v2014 = vsub.f32 %v1772, %v2013
        %v2015 = vand.u32 %v2014, 4294901760
        %v2016 = vsub.f32 %v2014, %v2015
        %v2017 = vand.u32 %v2016, 4294901760
        %2018 = vmatpush1.msra.mxu0 %v2017
        %2019 = vmatprep.subr.mxu0 0.0
        %v2020 = vand.u32 %v1771, 4294901760
        %v2021 = vsub.f32 %v1771, %v2020
        %v2022 = vand.u32 %v2021, 4294901760
        %v2023 = vsub.f32 %v2021, %v2022
        %v2024 = vand.u32 %v2023, 4294901760
        %2025 = vmatpush1.msra.mxu0 %v2024
        %2026 = vmatprep.subr.mxu0 0.0
        %v2027 = vand.u32 %v1770, 4294901760
        %v2028 = vsub.f32 %v1770, %v2027
        %v2029 = vand.u32 %v2028, 4294901760
        %v2030 = vsub.f32 %v2028, %v2029
        %v2031 = vand.u32 %v2030, 4294901760
        %2032 = vmatpush1.msra.mxu0 %v2031
        %2033 = vmatprep.subr.mxu0 0.0
        %v2034 = vand.u32 %v1769, 4294901760
        %v2035 = vsub.f32 %v1769, %v2034
        %v2036 = vand.u32 %v2035, 4294901760
        %v2037 = vsub.f32 %v2035, %v2036
        %v2038 = vand.u32 %v2037, 4294901760
        %2039 = vmatpush1.msra.mxu0 %v2038
        %2040 = vmatprep.subr.mxu0 0.0
        %v2041 = vand.u32 %v1800, 4294901760
        %v2042 = vsub.f32 %v1800, %v2041
        %v2043 = vand.u32 %v2042, 4294901760
        %v2044 = vsub.f32 %v2042, %v2043
        %v2045 = vand.u32 %v2044, 4294901760
        %2046 = vmatpush2.msra.mxu0 %v2045
        %2047 = vmatprep.subr.mxu0 0.0
        %v2048 = vand.u32 %v1799, 4294901760
        %v2049 = vsub.f32 %v1799, %v2048
        %v2050 = vand.u32 %v2049, 4294901760
        %v2051 = vsub.f32 %v2049, %v2050
        %v2052 = vand.u32 %v2051, 4294901760
        %2053 = vmatpush2.msra.mxu0 %v2052
        %2054 = vmatprep.subr.mxu0 0.0
        %v2055 = vand.u32 %v1798, 4294901760
        %v2056 = vsub.f32 %v1798, %v2055
        %v2057 = vand.u32 %v2056, 4294901760
        %v2058 = vsub.f32 %v2056, %v2057
        %v2059 = vand.u32 %v2058, 4294901760
        %2060 = vmatpush2.msra.mxu0 %v2059
        %2061 = vmatprep.subr.mxu0 0.0
        %v2062 = vand.u32 %v1797, 4294901760
        %v2063 = vsub.f32 %v1797, %v2062
        %v2064 = vand.u32 %v2063, 4294901760
        %v2065 = vsub.f32 %v2063, %v2064
        %v2066 = vand.u32 %v2065, 4294901760
        %2067 = vmatpush2.msra.mxu0 %v2066
        %2068 = vmatprep.subr.mxu0 0.0
        %v2069 = vand.u32 %v1796, 4294901760
        %v2070 = vsub.f32 %v1796, %v2069
        %v2071 = vand.u32 %v2070, 4294901760
        %v2072 = vsub.f32 %v2070, %v2071
        %v2073 = vand.u32 %v2072, 4294901760
        %2074 = vmatpush2.msra.mxu0 %v2073
        %2075 = vmatprep.subr.mxu0 0.0
        %v2076 = vand.u32 %v1795, 4294901760
        %v2077 = vsub.f32 %v1795, %v2076
        %v2078 = vand.u32 %v2077, 4294901760
        %v2079 = vsub.f32 %v2077, %v2078
        %v2080 = vand.u32 %v2079, 4294901760
        %2081 = vmatpush2.msra.mxu0 %v2080
        %2082 = vmatprep.subr.mxu0 0.0
        %v2083 = vand.u32 %v1794, 4294901760
        %v2084 = vsub.f32 %v1794, %v2083
        %v2085 = vand.u32 %v2084, 4294901760
        %v2086 = vsub.f32 %v2084, %v2085
        %v2087 = vand.u32 %v2086, 4294901760
        %2088 = vmatpush2.msra.mxu0 %v2087
        %2089 = vmatprep.subr.mxu0 0.0
        %v2090 = vand.u32 %v1793, 4294901760
        %v2091 = vsub.f32 %v1793, %v2090
        %v2092 = vand.u32 %v2091, 4294901760
        %v2093 = vsub.f32 %v2091, %v2092
        %v2094 = vand.u32 %v2093, 4294901760
        %2095 = vmatpush2.msra.mxu0 %v2094
        %2096 = vmatprep.subr.mxu0 0.0
        %v2097 = vand.u32 %v1792, 4294901760
        %v2098 = vsub.f32 %v1792, %v2097
        %v2099 = vand.u32 %v2098, 4294901760
        %v2100 = vsub.f32 %v2098, %v2099
        %v2101 = vand.u32 %v2100, 4294901760
        %2102 = vmatpush2.msra.mxu0 %v2101
        %2103 = vmatprep.subr.mxu0 0.0
        %v2104 = vand.u32 %v1791, 4294901760
        %v2105 = vsub.f32 %v1791, %v2104
        %v2106 = vand.u32 %v2105, 4294901760
        %v2107 = vsub.f32 %v2105, %v2106
        %v2108 = vand.u32 %v2107, 4294901760
        %2109 = vmatpush2.msra.mxu0 %v2108
        %2110 = vmatprep.subr.mxu0 0.0
        %v2111 = vand.u32 %v1790, 4294901760
        %v2112 = vsub.f32 %v1790, %v2111
        %v2113 = vand.u32 %v2112, 4294901760
        %v2114 = vsub.f32 %v2112, %v2113
        %v2115 = vand.u32 %v2114, 4294901760
        %2116 = vmatpush2.msra.mxu0 %v2115
        %2117 = vmatprep.subr.mxu0 0.0
        %v2118 = vand.u32 %v1789, 4294901760
        %v2119 = vsub.f32 %v1789, %v2118
        %v2120 = vand.u32 %v2119, 4294901760
        %v2121 = vsub.f32 %v2119, %v2120
        %v2122 = vand.u32 %v2121, 4294901760
        %2123 = vmatpush2.msra.mxu0 %v2122
        %2124 = vmatprep.subr.mxu0 0.0
        %v2125 = vand.u32 %v1788, 4294901760
        %v2126 = vsub.f32 %v1788, %v2125
        %v2127 = vand.u32 %v2126, 4294901760
        %v2128 = vsub.f32 %v2126, %v2127
        %v2129 = vand.u32 %v2128, 4294901760
        %2130 = vmatpush2.msra.mxu0 %v2129
        %2131 = vmatprep.subr.mxu0 0.0
        %v2132 = vand.u32 %v1787, 4294901760
        %v2133 = vsub.f32 %v1787, %v2132
        %v2134 = vand.u32 %v2133, 4294901760
        %v2135 = vsub.f32 %v2133, %v2134
        %v2136 = vand.u32 %v2135, 4294901760
        %2137 = vmatpush2.msra.mxu0 %v2136
        %2138 = vmatprep.subr.mxu0 0.0
        %v2139 = vand.u32 %v1786, 4294901760
        %v2140 = vsub.f32 %v1786, %v2139
        %v2141 = vand.u32 %v2140, 4294901760
        %v2142 = vsub.f32 %v2140, %v2141
        %v2143 = vand.u32 %v2142, 4294901760
        %2144 = vmatpush2.msra.mxu0 %v2143
        %2145 = vmatprep.subr.mxu0 0.0
        %v2146 = vand.u32 %v1785, 4294901760
        %v2147 = vsub.f32 %v1785, %v2146
        %v2148 = vand.u32 %v2147, 4294901760
        %v2149 = vsub.f32 %v2147, %v2148
        %v2150 = vand.u32 %v2149, 4294901760
        %2151 = vmatpush2.msra.mxu0 %v2150
        %v2152 = vand.u32 %v1759, 4294901760
        %2153 = vmatprep.mubr.f32.mxu0 %v2152
        %v2154 = vand.u32 %v1757, 4294901760
        %2155 = vmatmul.mubr.f32.gmra.mxu0 %v2154
        %v2156 = vpop.f32.mrf.mxu0
        %v2157 = vadd.f32 %v1910, %v2156
        %v2158 = vpop.f32.mrf.mxu0
        %v2159 = vand.u32 %v1766, 4294901760
        %2160 = vmatprep.mubr.f32.mxu0 %v2159
        %v2161 = vand.u32 %v1764, 4294901760
        %2162 = vmatmul.mubr.f32.gmra.mxu0 %v2161
        %v2163 = vpop.f32.mrf.mxu0
        %v2164 = vadd.f32 %v1925, %v2163
        %v2165 = vpop.f32.mrf.mxu0
        %2166 = vdwg.mxu0
        %2167 = vmatprep.subr.mxu0 0.0
        %v2168 = vand.u32 %v1784, 4294901760
        %v2169 = vsub.f32 %v1784, %v2168
        %2170 = vmatpush1.msra.mxu0 %v2169
        %2171 = vmatprep.subr.mxu0 0.0
        %v2172 = vand.u32 %v1783, 4294901760
        %v2173 = vsub.f32 %v1783, %v2172
        %2174 = vmatpush1.msra.mxu0 %v2173
        %2175 = vmatprep.subr.mxu0 0.0
        %v2176 = vand.u32 %v1782, 4294901760
        %v2177 = vsub.f32 %v1782, %v2176
        %2178 = vmatpush1.msra.mxu0 %v2177
        %2179 = vmatprep.subr.mxu0 0.0
        %v2180 = vand.u32 %v1781, 4294901760
        %v2181 = vsub.f32 %v1781, %v2180
        %2182 = vmatpush1.msra.mxu0 %v2181
        %2183 = vmatprep.subr.mxu0 0.0
        %v2184 = vand.u32 %v1780, 4294901760
        %v2185 = vsub.f32 %v1780, %v2184
        %2186 = vmatpush1.msra.mxu0 %v2185
        %2187 = vmatprep.subr.mxu0 0.0
        %v2188 = vand.u32 %v1779, 4294901760
        %v2189 = vsub.f32 %v1779, %v2188
        %2190 = vmatpush1.msra.mxu0 %v2189
        %2191 = vmatprep.subr.mxu0 0.0
        %v2192 = vand.u32 %v1778, 4294901760
        %v2193 = vsub.f32 %v1778, %v2192
        %2194 = vmatpush1.msra.mxu0 %v2193
        %2195 = vmatprep.subr.mxu0 0.0
        %v2196 = vand.u32 %v1777, 4294901760
        %v2197 = vsub.f32 %v1777, %v2196
        %2198 = vmatpush1.msra.mxu0 %v2197
        %2199 = vmatprep.subr.mxu0 0.0
        %v2200 = vand.u32 %v1776, 4294901760
        %v2201 = vsub.f32 %v1776, %v2200
        %2202 = vmatpush1.msra.mxu0 %v2201
        %2203 = vmatprep.subr.mxu0 0.0
        %v2204 = vand.u32 %v1775, 4294901760
        %v2205 = vsub.f32 %v1775, %v2204
        %2206 = vmatpush1.msra.mxu0 %v2205
        %2207 = vmatprep.subr.mxu0 0.0
        %v2208 = vand.u32 %v1774, 4294901760
        %v2209 = vsub.f32 %v1774, %v2208
        %2210 = vmatpush1.msra.mxu0 %v2209
        %2211 = vmatprep.subr.mxu0 0.0
        %v2212 = vand.u32 %v1773, 4294901760
        %v2213 = vsub.f32 %v1773, %v2212
        %2214 = vmatpush1.msra.mxu0 %v2213
        %2215 = vmatprep.subr.mxu0 0.0
        %v2216 = vand.u32 %v1772, 4294901760
        %v2217 = vsub.f32 %v1772, %v2216
        %2218 = vmatpush1.msra.mxu0 %v2217
        %2219 = vmatprep.subr.mxu0 0.0
        %v2220 = vand.u32 %v1771, 4294901760
        %v2221 = vsub.f32 %v1771, %v2220
        %2222 = vmatpush1.msra.mxu0 %v2221
        %2223 = vmatprep.subr.mxu0 0.0
        %v2224 = vand.u32 %v1770, 4294901760
        %v2225 = vsub.f32 %v1770, %v2224
        %2226 = vmatpush1.msra.mxu0 %v2225
        %2227 = vmatprep.subr.mxu0 0.0
        %v2228 = vand.u32 %v1769, 4294901760
        %v2229 = vsub.f32 %v1769, %v2228
        %2230 = vmatpush1.msra.mxu0 %v2229
        %2231 = vmatprep.subr.mxu0 0.0
        %v2232 = vand.u32 %v1800, 4294901760
        %v2233 = vsub.f32 %v1800, %v2232
        %2234 = vmatpush2.msra.mxu0 %v2233
        %2235 = vmatprep.subr.mxu0 0.0
        %v2236 = vand.u32 %v1799, 4294901760
        %v2237 = vsub.f32 %v1799, %v2236
        %2238 = vmatpush2.msra.mxu0 %v2237
        %2239 = vmatprep.subr.mxu0 0.0
        %v2240 = vand.u32 %v1798, 4294901760
        %v2241 = vsub.f32 %v1798, %v2240
        %2242 = vmatpush2.msra.mxu0 %v2241
        %2243 = vmatprep.subr.mxu0 0.0
        %v2244 = vand.u32 %v1797, 4294901760
        %v2245 = vsub.f32 %v1797, %v2244
        %2246 = vmatpush2.msra.mxu0 %v2245
        %2247 = vmatprep.subr.mxu0 0.0
        %v2248 = vand.u32 %v1796, 4294901760
        %v2249 = vsub.f32 %v1796, %v2248
        %2250 = vmatpush2.msra.mxu0 %v2249
        %2251 = vmatprep.subr.mxu0 0.0
        %v2252 = vand.u32 %v1795, 4294901760
        %v2253 = vsub.f32 %v1795, %v2252
        %2254 = vmatpush2.msra.mxu0 %v2253
        %2255 = vmatprep.subr.mxu0 0.0
        %v2256 = vand.u32 %v1794, 4294901760
        %v2257 = vsub.f32 %v1794, %v2256
        %2258 = vmatpush2.msra.mxu0 %v2257
        %2259 = vmatprep.subr.mxu0 0.0
        %v2260 = vand.u32 %v1793, 4294901760
        %v2261 = vsub.f32 %v1793, %v2260
        %2262 = vmatpush2.msra.mxu0 %v2261
        %2263 = vmatprep.subr.mxu0 0.0
        %v2264 = vand.u32 %v1792, 4294901760
        %v2265 = vsub.f32 %v1792, %v2264
        %2266 = vmatpush2.msra.mxu0 %v2265
        %2267 = vmatprep.subr.mxu0 0.0
        %v2268 = vand.u32 %v1791, 4294901760
        %v2269 = vsub.f32 %v1791, %v2268
        %2270 = vmatpush2.msra.mxu0 %v2269
        %2271 = vmatprep.subr.mxu0 0.0
        %v2272 = vand.u32 %v1790, 4294901760
        %v2273 = vsub.f32 %v1790, %v2272
        %2274 = vmatpush2.msra.mxu0 %v2273
        %2275 = vmatprep.subr.mxu0 0.0
        %v2276 = vand.u32 %v1789, 4294901760
        %v2277 = vsub.f32 %v1789, %v2276
        %2278 = vmatpush2.msra.mxu0 %v2277
        %2279 = vmatprep.subr.mxu0 0.0
        %v2280 = vand.u32 %v1788, 4294901760
        %v2281 = vsub.f32 %v1788, %v2280
        %2282 = vmatpush2.msra.mxu0 %v2281
        %2283 = vmatprep.subr.mxu0 0.0
        %v2284 = vand.u32 %v1787, 4294901760
        %v2285 = vsub.f32 %v1787, %v2284
        %2286 = vmatpush2.msra.mxu0 %v2285
        %2287 = vmatprep.subr.mxu0 0.0
        %v2288 = vand.u32 %v1786, 4294901760
        %v2289 = vsub.f32 %v1786, %v2288
        %2290 = vmatpush2.msra.mxu0 %v2289
        %2291 = vmatprep.subr.mxu0 0.0
        %v2292 = vand.u32 %v1785, 4294901760
        %v2293 = vsub.f32 %v1785, %v2292
        %2294 = vmatpush2.msra.mxu0 %v2293
        %v2295 = vand.u32 %v1759, 4294901760
        %v2296 = vsub.f32 %v1759, %v2295
        %2297 = vmatprep.mubr.f32.mxu0 %v2296
        %v2298 = vand.u32 %v1757, 4294901760
        %v2299 = vsub.f32 %v1757, %v2298
        %2300 = vmatmul.mubr.f32.gmra.mxu0 %v2299
        %v2301 = vpop.f32.mrf.mxu0
        %v2302 = vadd.f32 %v2157, %v2301
        %v2303 = vpop.f32.mrf.mxu0
        %v2304 = vand.u32 %v1766, 4294901760
        %v2305 = vsub.f32 %v1766, %v2304
        %2306 = vmatprep.mubr.f32.mxu0 %v2305
        %v2307 = vand.u32 %v1764, 4294901760
        %v2308 = vsub.f32 %v1764, %v2307
        %2309 = vmatmul.mubr.f32.gmra.mxu0 %v2308
        %v2310 = vpop.f32.mrf.mxu0
        %v2311 = vadd.f32 %v2164, %v2310
        %v2312 = vpop.f32.mrf.mxu0
        %2313 = vdwg.mxu0
        %2314 = vmatprep.subr.mxu0 0.0
        %v2315 = vand.u32 %v1784, 4294901760
        %2316 = vmatpush1.msra.mxu0 %v2315
        %2317 = vmatprep.subr.mxu0 0.0
        %v2318 = vand.u32 %v1783, 4294901760
        %2319 = vmatpush1.msra.mxu0 %v2318
        %2320 = vmatprep.subr.mxu0 0.0
        %v2321 = vand.u32 %v1782, 4294901760
        %2322 = vmatpush1.msra.mxu0 %v2321
        %2323 = vmatprep.subr.mxu0 0.0
        %v2324 = vand.u32 %v1781, 4294901760
        %2325 = vmatpush1.msra.mxu0 %v2324
        %2326 = vmatprep.subr.mxu0 0.0
        %v2327 = vand.u32 %v1780, 4294901760
        %2328 = vmatpush1.msra.mxu0 %v2327
        %2329 = vmatprep.subr.mxu0 0.0
        %v2330 = vand.u32 %v1779, 4294901760
        %2331 = vmatpush1.msra.mxu0 %v2330
        %2332 = vmatprep.subr.mxu0 0.0
        %v2333 = vand.u32 %v1778, 4294901760
        %2334 = vmatpush1.msra.mxu0 %v2333
        %2335 = vmatprep.subr.mxu0 0.0
        %v2336 = vand.u32 %v1777, 4294901760
        %2337 = vmatpush1.msra.mxu0 %v2336
        %2338 = vmatprep.subr.mxu0 0.0
        %v2339 = vand.u32 %v1776, 4294901760
        %2340 = vmatpush1.msra.mxu0 %v2339
        %2341 = vmatprep.subr.mxu0 0.0
        %v2342 = vand.u32 %v1775, 4294901760
        %2343 = vmatpush1.msra.mxu0 %v2342
        %2344 = vmatprep.subr.mxu0 0.0
        %v2345 = vand.u32 %v1774, 4294901760
        %2346 = vmatpush1.msra.mxu0 %v2345
        %2347 = vmatprep.subr.mxu0 0.0
        %v2348 = vand.u32 %v1773, 4294901760
        %2349 = vmatpush1.msra.mxu0 %v2348
        %2350 = vmatprep.subr.mxu0 0.0
        %v2351 = vand.u32 %v1772, 4294901760
        %2352 = vmatpush1.msra.mxu0 %v2351
        %2353 = vmatprep.subr.mxu0 0.0
        %v2354 = vand.u32 %v1771, 4294901760
        %2355 = vmatpush1.msra.mxu0 %v2354
        %2356 = vmatprep.subr.mxu0 0.0
        %v2357 = vand.u32 %v1770, 4294901760
        %2358 = vmatpush1.msra.mxu0 %v2357
        %2359 = vmatprep.subr.mxu0 0.0
        %v2360 = vand.u32 %v1769, 4294901760
        %2361 = vmatpush1.msra.mxu0 %v2360
        %2362 = vmatprep.subr.mxu0 0.0
        %v2363 = vand.u32 %v1800, 4294901760
        %2364 = vmatpush2.msra.mxu0 %v2363
        %2365 = vmatprep.subr.mxu0 0.0
        %v2366 = vand.u32 %v1799, 4294901760
        %2367 = vmatpush2.msra.mxu0 %v2366
        %2368 = vmatprep.subr.mxu0 0.0
        %v2369 = vand.u32 %v1798, 4294901760
        %2370 = vmatpush2.msra.mxu0 %v2369
        %2371 = vmatprep.subr.mxu0 0.0
        %v2372 = vand.u32 %v1797, 4294901760
        %2373 = vmatpush2.msra.mxu0 %v2372
        %2374 = vmatprep.subr.mxu0 0.0
        %v2375 = vand.u32 %v1796, 4294901760
        %2376 = vmatpush2.msra.mxu0 %v2375
        %2377 = vmatprep.subr.mxu0 0.0
        %v2378 = vand.u32 %v1795, 4294901760
        %2379 = vmatpush2.msra.mxu0 %v2378
        %2380 = vmatprep.subr.mxu0 0.0
        %v2381 = vand.u32 %v1794, 4294901760
        %2382 = vmatpush2.msra.mxu0 %v2381
        %2383 = vmatprep.subr.mxu0 0.0
        %v2384 = vand.u32 %v1793, 4294901760
        %2385 = vmatpush2.msra.mxu0 %v2384
        %2386 = vmatprep.subr.mxu0 0.0
        %v2387 = vand.u32 %v1792, 4294901760
        %2388 = vmatpush2.msra.mxu0 %v2387
        %2389 = vmatprep.subr.mxu0 0.0
        %v2390 = vand.u32 %v1791, 4294901760
        %2391 = vmatpush2.msra.mxu0 %v2390
        %2392 = vmatprep.subr.mxu0 0.0
        %v2393 = vand.u32 %v1790, 4294901760
        %2394 = vmatpush2.msra.mxu0 %v2393
        %2395 = vmatprep.subr.mxu0 0.0
        %v2396 = vand.u32 %v1789, 4294901760
        %2397 = vmatpush2.msra.mxu0 %v2396
        %2398 = vmatprep.subr.mxu0 0.0
        %v2399 = vand.u32 %v1788, 4294901760
        %2400 = vmatpush2.msra.mxu0 %v2399
        %2401 = vmatprep.subr.mxu0 0.0
        %v2402 = vand.u32 %v1787, 4294901760
        %2403 = vmatpush2.msra.mxu0 %v2402
        %2404 = vmatprep.subr.mxu0 0.0
        %v2405 = vand.u32 %v1786, 4294901760
        %2406 = vmatpush2.msra.mxu0 %v2405
        %2407 = vmatprep.subr.mxu0 0.0
        %v2408 = vand.u32 %v1785, 4294901760
        %2409 = vmatpush2.msra.mxu0 %v2408
        %v2410 = vand.u32 %v1759, 4294901760
        %v2411 = vsub.f32 %v1759, %v2410
        %v2412 = vand.u32 %v2411, 4294901760
        %2413 = vmatprep.mubr.f32.mxu0 %v2412
        %v2414 = vand.u32 %v1757, 4294901760
        %v2415 = vsub.f32 %v1757, %v2414
        %v2416 = vand.u32 %v2415, 4294901760
        %2417 = vmatmul.mubr.f32.gmra.mxu0 %v2416
        %v2418 = vpop.f32.mrf.mxu0
        %v2419 = vadd.f32 %v2302, %v2418
        %v2420 = vpop.f32.mrf.mxu0
        %v2421 = vand.u32 %v1766, 4294901760
        %v2422 = vsub.f32 %v1766, %v2421
        %v2423 = vand.u32 %v2422, 4294901760
        %2424 = vmatprep.mubr.f32.mxu0 %v2423
        %v2425 = vand.u32 %v1764, 4294901760
        %v2426 = vsub.f32 %v1764, %v2425
        %v2427 = vand.u32 %v2426, 4294901760
        %2428 = vmatmul.mubr.f32.gmra.mxu0 %v2427
        %v2429 = vpop.f32.mrf.mxu0
        %v2430 = vadd.f32 %v2311, %v2429
        %v2431 = vpop.f32.mrf.mxu0
        %2432 = vdwg.mxu0
        %2433 = vmatprep.subr.mxu0 0.0
        %v2434 = vand.u32 %v1784, 4294901760
        %v2435 = vsub.f32 %v1784, %v2434
        %v2436 = vand.u32 %v2435, 4294901760
        %2437 = vmatpush1.msra.mxu0 %v2436
        %2438 = vmatprep.subr.mxu0 0.0
        %v2439 = vand.u32 %v1783, 4294901760
        %v2440 = vsub.f32 %v1783, %v2439
        %v2441 = vand.u32 %v2440, 4294901760
        %2442 = vmatpush1.msra.mxu0 %v2441
        %2443 = vmatprep.subr.mxu0 0.0
        %v2444 = vand.u32 %v1782, 4294901760
        %v2445 = vsub.f32 %v1782, %v2444
        %v2446 = vand.u32 %v2445, 4294901760
        %2447 = vmatpush1.msra.mxu0 %v2446
        %2448 = vmatprep.subr.mxu0 0.0
        %v2449 = vand.u32 %v1781, 4294901760
        %v2450 = vsub.f32 %v1781, %v2449
        %v2451 = vand.u32 %v2450, 4294901760
        %2452 = vmatpush1.msra.mxu0 %v2451
        %2453 = vmatprep.subr.mxu0 0.0
        %v2454 = vand.u32 %v1780, 4294901760
        %v2455 = vsub.f32 %v1780, %v2454
        %v2456 = vand.u32 %v2455, 4294901760
        %2457 = vmatpush1.msra.mxu0 %v2456
        %2458 = vmatprep.subr.mxu0 0.0
        %v2459 = vand.u32 %v1779, 4294901760
        %v2460 = vsub.f32 %v1779, %v2459
        %v2461 = vand.u32 %v2460, 4294901760
        %2462 = vmatpush1.msra.mxu0 %v2461
        %2463 = vmatprep.subr.mxu0 0.0
        %v2464 = vand.u32 %v1778, 4294901760
        %v2465 = vsub.f32 %v1778, %v2464
        %v2466 = vand.u32 %v2465, 4294901760
        %2467 = vmatpush1.msra.mxu0 %v2466
        %2468 = vmatprep.subr.mxu0 0.0
        %v2469 = vand.u32 %v1777, 4294901760
        %v2470 = vsub.f32 %v1777, %v2469
        %v2471 = vand.u32 %v2470, 4294901760
        %2472 = vmatpush1.msra.mxu0 %v2471
        %2473 = vmatprep.subr.mxu0 0.0
        %v2474 = vand.u32 %v1776, 4294901760
        %v2475 = vsub.f32 %v1776, %v2474
        %v2476 = vand.u32 %v2475, 4294901760
        %2477 = vmatpush1.msra.mxu0 %v2476
        %2478 = vmatprep.subr.mxu0 0.0
        %v2479 = vand.u32 %v1775, 4294901760
        %v2480 = vsub.f32 %v1775, %v2479
        %v2481 = vand.u32 %v2480, 4294901760
        %2482 = vmatpush1.msra.mxu0 %v2481
        %2483 = vmatprep.subr.mxu0 0.0
        %v2484 = vand.u32 %v1774, 4294901760
        %v2485 = vsub.f32 %v1774, %v2484
        %v2486 = vand.u32 %v2485, 4294901760
        %2487 = vmatpush1.msra.mxu0 %v2486
        %2488 = vmatprep.subr.mxu0 0.0
        %v2489 = vand.u32 %v1773, 4294901760
        %v2490 = vsub.f32 %v1773, %v2489
        %v2491 = vand.u32 %v2490, 4294901760
        %2492 = vmatpush1.msra.mxu0 %v2491
        %2493 = vmatprep.subr.mxu0 0.0
        %v2494 = vand.u32 %v1772, 4294901760
        %v2495 = vsub.f32 %v1772, %v2494
        %v2496 = vand.u32 %v2495, 4294901760
        %2497 = vmatpush1.msra.mxu0 %v2496
        %2498 = vmatprep.subr.mxu0 0.0
        %v2499 = vand.u32 %v1771, 4294901760
        %v2500 = vsub.f32 %v1771, %v2499
        %v2501 = vand.u32 %v2500, 4294901760
        %2502 = vmatpush1.msra.mxu0 %v2501
        %2503 = vmatprep.subr.mxu0 0.0
        %v2504 = vand.u32 %v1770, 4294901760
        %v2505 = vsub.f32 %v1770, %v2504
        %v2506 = vand.u32 %v2505, 4294901760
        %2507 = vmatpush1.msra.mxu0 %v2506
        %2508 = vmatprep.subr.mxu0 0.0
        %v2509 = vand.u32 %v1769, 4294901760
        %v2510 = vsub.f32 %v1769, %v2509
        %v2511 = vand.u32 %v2510, 4294901760
        %2512 = vmatpush1.msra.mxu0 %v2511
        %2513 = vmatprep.subr.mxu0 0.0
        %v2514 = vand.u32 %v1800, 4294901760
        %v2515 = vsub.f32 %v1800, %v2514
        %v2516 = vand.u32 %v2515, 4294901760
        %2517 = vmatpush2.msra.mxu0 %v2516
        %2518 = vmatprep.subr.mxu0 0.0
        %v2519 = vand.u32 %v1799, 4294901760
        %v2520 = vsub.f32 %v1799, %v2519
        %v2521 = vand.u32 %v2520, 4294901760
        %2522 = vmatpush2.msra.mxu0 %v2521
        %2523 = vmatprep.subr.mxu0 0.0
        %v2524 = vand.u32 %v1798, 4294901760
        %v2525 = vsub.f32 %v1798, %v2524
        %v2526 = vand.u32 %v2525, 4294901760
        %2527 = vmatpush2.msra.mxu0 %v2526
        %2528 = vmatprep.subr.mxu0 0.0
        %v2529 = vand.u32 %v1797, 4294901760
        %v2530 = vsub.f32 %v1797, %v2529
        %v2531 = vand.u32 %v2530, 4294901760
        %2532 = vmatpush2.msra.mxu0 %v2531
        %2533 = vmatprep.subr.mxu0 0.0
        %v2534 = vand.u32 %v1796, 4294901760
        %v2535 = vsub.f32 %v1796, %v2534
        %v2536 = vand.u32 %v2535, 4294901760
        %2537 = vmatpush2.msra.mxu0 %v2536
        %2538 = vmatprep.subr.mxu0 0.0
        %v2539 = vand.u32 %v1795, 4294901760
        %v2540 = vsub.f32 %v1795, %v2539
        %v2541 = vand.u32 %v2540, 4294901760
        %2542 = vmatpush2.msra.mxu0 %v2541
        %2543 = vmatprep.subr.mxu0 0.0
        %v2544 = vand.u32 %v1794, 4294901760
        %v2545 = vsub.f32 %v1794, %v2544
        %v2546 = vand.u32 %v2545, 4294901760
        %2547 = vmatpush2.msra.mxu0 %v2546
        %2548 = vmatprep.subr.mxu0 0.0
        %v2549 = vand.u32 %v1793, 4294901760
        %v2550 = vsub.f32 %v1793, %v2549
        %v2551 = vand.u32 %v2550, 4294901760
        %2552 = vmatpush2.msra.mxu0 %v2551
        %2553 = vmatprep.subr.mxu0 0.0
        %v2554 = vand.u32 %v1792, 4294901760
        %v2555 = vsub.f32 %v1792, %v2554
        %v2556 = vand.u32 %v2555, 4294901760
        %2557 = vmatpush2.msra.mxu0 %v2556
        %2558 = vmatprep.subr.mxu0 0.0
        %v2559 = vand.u32 %v1791, 4294901760
        %v2560 = vsub.f32 %v1791, %v2559
        %v2561 = vand.u32 %v2560, 4294901760
        %2562 = vmatpush2.msra.mxu0 %v2561
        %2563 = vmatprep.subr.mxu0 0.0
        %v2564 = vand.u32 %v1790, 4294901760
        %v2565 = vsub.f32 %v1790, %v2564
        %v2566 = vand.u32 %v2565, 4294901760
        %2567 = vmatpush2.msra.mxu0 %v2566
        %2568 = vmatprep.subr.mxu0 0.0
        %v2569 = vand.u32 %v1789, 4294901760
        %v2570 = vsub.f32 %v1789, %v2569
        %v2571 = vand.u32 %v2570, 4294901760
        %2572 = vmatpush2.msra.mxu0 %v2571
        %2573 = vmatprep.subr.mxu0 0.0
        %v2574 = vand.u32 %v1788, 4294901760
        %v2575 = vsub.f32 %v1788, %v2574
        %v2576 = vand.u32 %v2575, 4294901760
        %2577 = vmatpush2.msra.mxu0 %v2576
        %2578 = vmatprep.subr.mxu0 0.0
        %v2579 = vand.u32 %v1787, 4294901760
        %v2580 = vsub.f32 %v1787, %v2579
        %v2581 = vand.u32 %v2580, 4294901760
        %2582 = vmatpush2.msra.mxu0 %v2581
        %2583 = vmatprep.subr.mxu0 0.0
        %v2584 = vand.u32 %v1786, 4294901760
        %v2585 = vsub.f32 %v1786, %v2584
        %v2586 = vand.u32 %v2585, 4294901760
        %2587 = vmatpush2.msra.mxu0 %v2586
        %2588 = vmatprep.subr.mxu0 0.0
        %v2589 = vand.u32 %v1785, 4294901760
        %v2590 = vsub.f32 %v1785, %v2589
        %v2591 = vand.u32 %v2590, 4294901760
        %2592 = vmatpush2.msra.mxu0 %v2591
        %v2593 = vand.u32 %v1759, 4294901760
        %2594 = vmatprep.mubr.f32.mxu0 %v2593
        %v2595 = vand.u32 %v1757, 4294901760
        %2596 = vmatmul.mubr.f32.gmra.mxu0 %v2595
        %v2597 = vpop.f32.mrf.mxu0
        %v2598 = vadd.f32 %v2419, %v2597
        %v2599 = vpop.f32.mrf.mxu0
        %v2600 = vand.u32 %v1766, 4294901760
        %2601 = vmatprep.mubr.f32.mxu0 %v2600
        %v2602 = vand.u32 %v1764, 4294901760
        %2603 = vmatmul.mubr.f32.gmra.mxu0 %v2602
        %v2604 = vpop.f32.mrf.mxu0
        %v2605 = vadd.f32 %v2430, %v2604
        %v2606 = vpop.f32.mrf.mxu0
        %2607 = vdwg.mxu0
        %2608 = vmatprep.subr.mxu0 0.0
        %v2609 = vand.u32 %v1784, 4294901760
        %2610 = vmatpush1.msra.mxu0 %v2609
        %2611 = vmatprep.subr.mxu0 0.0
        %v2612 = vand.u32 %v1783, 4294901760
        %2613 = vmatpush1.msra.mxu0 %v2612
        %2614 = vmatprep.subr.mxu0 0.0
        %v2615 = vand.u32 %v1782, 4294901760
        %2616 = vmatpush1.msra.mxu0 %v2615
        %2617 = vmatprep.subr.mxu0 0.0
        %v2618 = vand.u32 %v1781, 4294901760
        %2619 = vmatpush1.msra.mxu0 %v2618
        %2620 = vmatprep.subr.mxu0 0.0
        %v2621 = vand.u32 %v1780, 4294901760
        %2622 = vmatpush1.msra.mxu0 %v2621
        %2623 = vmatprep.subr.mxu0 0.0
        %v2624 = vand.u32 %v1779, 4294901760
        %2625 = vmatpush1.msra.mxu0 %v2624
        %2626 = vmatprep.subr.mxu0 0.0
        %v2627 = vand.u32 %v1778, 4294901760
        %2628 = vmatpush1.msra.mxu0 %v2627
        %2629 = vmatprep.subr.mxu0 0.0
        %v2630 = vand.u32 %v1777, 4294901760
        %2631 = vmatpush1.msra.mxu0 %v2630
        %2632 = vmatprep.subr.mxu0 0.0
        %v2633 = vand.u32 %v1776, 4294901760
        %2634 = vmatpush1.msra.mxu0 %v2633
        %2635 = vmatprep.subr.mxu0 0.0
        %v2636 = vand.u32 %v1775, 4294901760
        %2637 = vmatpush1.msra.mxu0 %v2636
        %2638 = vmatprep.subr.mxu0 0.0
        %v2639 = vand.u32 %v1774, 4294901760
        %2640 = vmatpush1.msra.mxu0 %v2639
        %2641 = vmatprep.subr.mxu0 0.0
        %v2642 = vand.u32 %v1773, 4294901760
        %2643 = vmatpush1.msra.mxu0 %v2642
        %2644 = vmatprep.subr.mxu0 0.0
        %v2645 = vand.u32 %v1772, 4294901760
        %2646 = vmatpush1.msra.mxu0 %v2645
        %2647 = vmatprep.subr.mxu0 0.0
        %v2648 = vand.u32 %v1771, 4294901760
        %2649 = vmatpush1.msra.mxu0 %v2648
        %2650 = vmatprep.subr.mxu0 0.0
        %v2651 = vand.u32 %v1770, 4294901760
        %2652 = vmatpush1.msra.mxu0 %v2651
        %2653 = vmatprep.subr.mxu0 0.0
        %v2654 = vand.u32 %v1769, 4294901760
        %2655 = vmatpush1.msra.mxu0 %v2654
        %2656 = vmatprep.subr.mxu0 0.0
        %v2657 = vand.u32 %v1800, 4294901760
        %2658 = vmatpush2.msra.mxu0 %v2657
        %2659 = vmatprep.subr.mxu0 0.0
        %v2660 = vand.u32 %v1799, 4294901760
        %2661 = vmatpush2.msra.mxu0 %v2660
        %2662 = vmatprep.subr.mxu0 0.0
        %v2663 = vand.u32 %v1798, 4294901760
        %2664 = vmatpush2.msra.mxu0 %v2663
        %2665 = vmatprep.subr.mxu0 0.0
        %v2666 = vand.u32 %v1797, 4294901760
        %2667 = vmatpush2.msra.mxu0 %v2666
        %2668 = vmatprep.subr.mxu0 0.0
        %v2669 = vand.u32 %v1796, 4294901760
        %2670 = vmatpush2.msra.mxu0 %v2669
        %2671 = vmatprep.subr.mxu0 0.0
        %v2672 = vand.u32 %v1795, 4294901760
        %2673 = vmatpush2.msra.mxu0 %v2672
        %2674 = vmatprep.subr.mxu0 0.0
        %v2675 = vand.u32 %v1794, 4294901760
        %2676 = vmatpush2.msra.mxu0 %v2675
        %2677 = vmatprep.subr.mxu0 0.0
        %v2678 = vand.u32 %v1793, 4294901760
        %2679 = vmatpush2.msra.mxu0 %v2678
        %2680 = vmatprep.subr.mxu0 0.0
        %v2681 = vand.u32 %v1792, 4294901760
        %2682 = vmatpush2.msra.mxu0 %v2681
        %2683 = vmatprep.subr.mxu0 0.0
        %v2684 = vand.u32 %v1791, 4294901760
        %2685 = vmatpush2.msra.mxu0 %v2684
        %2686 = vmatprep.subr.mxu0 0.0
        %v2687 = vand.u32 %v1790, 4294901760
        %2688 = vmatpush2.msra.mxu0 %v2687
        %2689 = vmatprep.subr.mxu0 0.0
        %v2690 = vand.u32 %v1789, 4294901760
        %2691 = vmatpush2.msra.mxu0 %v2690
        %2692 = vmatprep.subr.mxu0 0.0
        %v2693 = vand.u32 %v1788, 4294901760
        %2694 = vmatpush2.msra.mxu0 %v2693
        %2695 = vmatprep.subr.mxu0 0.0
        %v2696 = vand.u32 %v1787, 4294901760
        %2697 = vmatpush2.msra.mxu0 %v2696
        %2698 = vmatprep.subr.mxu0 0.0
        %v2699 = vand.u32 %v1786, 4294901760
        %2700 = vmatpush2.msra.mxu0 %v2699
        %2701 = vmatprep.subr.mxu0 0.0
        %v2702 = vand.u32 %v1785, 4294901760
        %2703 = vmatpush2.msra.mxu0 %v2702
        %v2704 = vand.u32 %v1759, 4294901760
        %2705 = vmatprep.mubr.f32.mxu0 %v2704
        %v2706 = vand.u32 %v1757, 4294901760
        %2707 = vmatmul.mubr.f32.gmra.mxu0 %v2706
        %v2708 = vpop.f32.mrf.mxu0
        %v2709 = vadd.f32 %v2598, %v2708
        %v2710 = vpop.f32.mrf.mxu0
        %v2711 = vand.u32 %v1766, 4294901760
        %2712 = vmatprep.mubr.f32.mxu0 %v2711
        %v2713 = vand.u32 %v1764, 4294901760
        %2714 = vmatmul.mubr.f32.gmra.mxu0 %v2713
        %v2715 = vpop.f32.mrf.mxu0
        %v2716 = vadd.f32 %v2605, %v2715
        %v2717 = vpop.f32.mrf.mxu0
        %2718 = vdwg.mxu0
        %v2719 = vadd.f32 %v1217, %v2709
        %v2720 = vadd.f32 %v1218, %v2716
        %2721 = vmatprep.subr.mxu0 0.0
        %2722 = vmatpush1.msra.mxu0 0.0
        %2723 = vmatprep.subr.mxu0 0.0
        %2724 = vmatpush1.msra.mxu0 0.0
        %2725 = vmatprep.subr.mxu0 0.0
        %2726 = vmatpush1.msra.mxu0 0.0
        %2727 = vmatprep.subr.mxu0 0.0
        %2728 = vmatpush1.msra.mxu0 0.0
        %2729 = vmatprep.subr.mxu0 0.0
        %2730 = vmatpush1.msra.mxu0 0.0
        %2731 = vmatprep.subr.mxu0 0.0
        %2732 = vmatpush1.msra.mxu0 0.0
        %2733 = vmatprep.subr.mxu0 0.0
        %2734 = vmatpush1.msra.mxu0 0.0
        %2735 = vmatprep.subr.mxu0 0.0
        %2736 = vmatpush1.msra.mxu0 0.0
        %2737 = vmatprep.subr.mxu0 0.0
        %2738 = vmatpush1.msra.mxu0 0.0
        %2739 = vmatprep.subr.mxu0 0.0
        %2740 = vmatpush1.msra.mxu0 0.0
        %2741 = vmatprep.subr.mxu0 0.0
        %2742 = vmatpush1.msra.mxu0 0.0
        %2743 = vmatprep.subr.mxu0 0.0
        %2744 = vmatpush1.msra.mxu0 0.0
        %2745 = vmatprep.subr.mxu0 0.0
        %2746 = vmatpush1.msra.mxu0 0.0
        %2747 = vmatprep.subr.mxu0 0.0
        %2748 = vmatpush1.msra.mxu0 0.0
        %v2749 = vand.u32 %v1766, 4294901760
        %2750 = vmatprep.subr.mxu0 %v2749
        %v2751 = vand.u32 %v1764, 4294901760
        %2752 = vmatpush1.msra.mxu0 %v2751
        %v2753 = vand.u32 %v1759, 4294901760
        %2754 = vmatprep.subr.mxu0 %v2753
        %v2755 = vand.u32 %v1757, 4294901760
        %2756 = vmatpush1.msra.mxu0 %v2755
        %2757 = vmatprep.subr.mxu0 0.0
        %2758 = vmatpush2.msra.mxu0 0.0
        %2759 = vmatprep.subr.mxu0 0.0
        %2760 = vmatpush2.msra.mxu0 0.0
        %2761 = vmatprep.subr.mxu0 0.0
        %2762 = vmatpush2.msra.mxu0 0.0
        %2763 = vmatprep.subr.mxu0 0.0
        %2764 = vmatpush2.msra.mxu0 0.0
        %2765 = vmatprep.subr.mxu0 0.0
        %2766 = vmatpush2.msra.mxu0 0.0
        %2767 = vmatprep.subr.mxu0 0.0
        %2768 = vmatpush2.msra.mxu0 0.0
        %2769 = vmatprep.subr.mxu0 0.0
        %2770 = vmatpush2.msra.mxu0 0.0
        %2771 = vmatprep.subr.mxu0 0.0
        %2772 = vmatpush2.msra.mxu0 0.0
        %2773 = vmatprep.subr.mxu0 0.0
        %2774 = vmatpush2.msra.mxu0 0.0
        %2775 = vmatprep.subr.mxu0 0.0
        %2776 = vmatpush2.msra.mxu0 0.0
        %2777 = vmatprep.subr.mxu0 0.0
        %2778 = vmatpush2.msra.mxu0 0.0
        %2779 = vmatprep.subr.mxu0 0.0
        %2780 = vmatpush2.msra.mxu0 0.0
        %2781 = vmatprep.subr.mxu0 0.0
        %2782 = vmatpush2.msra.mxu0 0.0
        %2783 = vmatprep.subr.mxu0 0.0
        %2784 = vmatpush2.msra.mxu0 0.0
        %2785 = vmatprep.subr.mxu0 0.0
        %2786 = vmatpush2.msra.mxu0 0.0
        %2787 = vmatprep.subr.mxu0 0.0
        %2788 = vmatpush2.msra.mxu0 0.0
        %2789 = vmatprep.mubr.f32.mxu0 0.0
        %v2790 = vand.u32 %v1223, 4294901760
        %v2791 = vsub.f32 %v1223, %v2790
        %v2792 = vand.u32 %v2791, 4294901760
        %v2793 = vsub.f32 %v2791, %v2792
        %v2794 = vand.u32 %v2793, 4294901760
        %2795 = vmatmul.mubr.f32.gmra.mxu0 %v2794
        %v2796 = vpop.f32.mrf.mxu0
        %v2797 = vadd.f32 0.0, %v2796
        %v2798 = vpop.f32.mrf.mxu0
        %v2799 = vadd.f32 0.0, %v2798
        %2800 = vmatprep.mubr.f32.mxu0 0.0
        %v2801 = vand.u32 %v1226, 4294901760
        %v2802 = vsub.f32 %v1226, %v2801
        %v2803 = vand.u32 %v2802, 4294901760
        %v2804 = vsub.f32 %v2802, %v2803
        %v2805 = vand.u32 %v2804, 4294901760
        %2806 = vmatmul.mubr.f32.gmra.mxu0 %v2805
        %v2807 = vpop.f32.mrf.mxu0
        %v2808 = vadd.f32 0.0, %v2807
        %v2809 = vpop.f32.mrf.mxu0
        %v2810 = vadd.f32 0.0, %v2809
        %2811 = vdwg.mxu0
        %2812 = vmatprep.subr.mxu0 0.0
        %2813 = vmatpush1.msra.mxu0 0.0
        %2814 = vmatprep.subr.mxu0 0.0
        %2815 = vmatpush1.msra.mxu0 0.0
        %2816 = vmatprep.subr.mxu0 0.0
        %2817 = vmatpush1.msra.mxu0 0.0
        %2818 = vmatprep.subr.mxu0 0.0
        %2819 = vmatpush1.msra.mxu0 0.0
        %2820 = vmatprep.subr.mxu0 0.0
        %2821 = vmatpush1.msra.mxu0 0.0
        %2822 = vmatprep.subr.mxu0 0.0
        %2823 = vmatpush1.msra.mxu0 0.0
        %2824 = vmatprep.subr.mxu0 0.0
        %2825 = vmatpush1.msra.mxu0 0.0
        %2826 = vmatprep.subr.mxu0 0.0
        %2827 = vmatpush1.msra.mxu0 0.0
        %2828 = vmatprep.subr.mxu0 0.0
        %2829 = vmatpush1.msra.mxu0 0.0
        %2830 = vmatprep.subr.mxu0 0.0
        %2831 = vmatpush1.msra.mxu0 0.0
        %2832 = vmatprep.subr.mxu0 0.0
        %2833 = vmatpush1.msra.mxu0 0.0
        %2834 = vmatprep.subr.mxu0 0.0
        %2835 = vmatpush1.msra.mxu0 0.0
        %2836 = vmatprep.subr.mxu0 0.0
        %2837 = vmatpush1.msra.mxu0 0.0
        %2838 = vmatprep.subr.mxu0 0.0
        %2839 = vmatpush1.msra.mxu0 0.0
        %v2840 = vand.u32 %v1766, 4294901760
        %v2841 = vsub.f32 %v1766, %v2840
        %v2842 = vand.u32 %v2841, 4294901760
        %v2843 = vsub.f32 %v2841, %v2842
        %v2844 = vand.u32 %v2843, 4294901760
        %2845 = vmatprep.subr.mxu0 %v2844
        %v2846 = vand.u32 %v1764, 4294901760
        %v2847 = vsub.f32 %v1764, %v2846
        %v2848 = vand.u32 %v2847, 4294901760
        %v2849 = vsub.f32 %v2847, %v2848
        %v2850 = vand.u32 %v2849, 4294901760
        %2851 = vmatpush1.msra.mxu0 %v2850
        %v2852 = vand.u32 %v1759, 4294901760
        %v2853 = vsub.f32 %v1759, %v2852
        %v2854 = vand.u32 %v2853, 4294901760
        %v2855 = vsub.f32 %v2853, %v2854
        %v2856 = vand.u32 %v2855, 4294901760
        %2857 = vmatprep.subr.mxu0 %v2856
        %v2858 = vand.u32 %v1757, 4294901760
        %v2859 = vsub.f32 %v1757, %v2858
        %v2860 = vand.u32 %v2859, 4294901760
        %v2861 = vsub.f32 %v2859, %v2860
        %v2862 = vand.u32 %v2861, 4294901760
        %2863 = vmatpush1.msra.mxu0 %v2862
        %2864 = vmatprep.subr.mxu0 0.0
        %2865 = vmatpush2.msra.mxu0 0.0
        %2866 = vmatprep.subr.mxu0 0.0
        %2867 = vmatpush2.msra.mxu0 0.0
        %2868 = vmatprep.subr.mxu0 0.0
        %2869 = vmatpush2.msra.mxu0 0.0
        %2870 = vmatprep.subr.mxu0 0.0
        %2871 = vmatpush2.msra.mxu0 0.0
        %2872 = vmatprep.subr.mxu0 0.0
        %2873 = vmatpush2.msra.mxu0 0.0
        %2874 = vmatprep.subr.mxu0 0.0
        %2875 = vmatpush2.msra.mxu0 0.0
        %2876 = vmatprep.subr.mxu0 0.0
        %2877 = vmatpush2.msra.mxu0 0.0
        %2878 = vmatprep.subr.mxu0 0.0
        %2879 = vmatpush2.msra.mxu0 0.0
        %2880 = vmatprep.subr.mxu0 0.0
        %2881 = vmatpush2.msra.mxu0 0.0
        %2882 = vmatprep.subr.mxu0 0.0
        %2883 = vmatpush2.msra.mxu0 0.0
        %2884 = vmatprep.subr.mxu0 0.0
        %2885 = vmatpush2.msra.mxu0 0.0
        %2886 = vmatprep.subr.mxu0 0.0
        %2887 = vmatpush2.msra.mxu0 0.0
        %2888 = vmatprep.subr.mxu0 0.0
        %2889 = vmatpush2.msra.mxu0 0.0
        %2890 = vmatprep.subr.mxu0 0.0
        %2891 = vmatpush2.msra.mxu0 0.0
        %2892 = vmatprep.subr.mxu0 0.0
        %2893 = vmatpush2.msra.mxu0 0.0
        %2894 = vmatprep.subr.mxu0 0.0
        %2895 = vmatpush2.msra.mxu0 0.0
        %2896 = vmatprep.mubr.f32.mxu0 0.0
        %v2897 = vand.u32 %v1223, 4294901760
        %2898 = vmatmul.mubr.f32.gmra.mxu0 %v2897
        %v2899 = vpop.f32.mrf.mxu0
        %v2900 = vadd.f32 %v2797, %v2899
        %v2901 = vpop.f32.mrf.mxu0
        %v2902 = vadd.f32 %v2799, %v2901
        %2903 = vmatprep.mubr.f32.mxu0 0.0
        %v2904 = vand.u32 %v1226, 4294901760
        %2905 = vmatmul.mubr.f32.gmra.mxu0 %v2904
        %v2906 = vpop.f32.mrf.mxu0
        %v2907 = vadd.f32 %v2808, %v2906
        %v2908 = vpop.f32.mrf.mxu0
        %v2909 = vadd.f32 %v2810, %v2908
        %2910 = vdwg.mxu0
        %2911 = vmatprep.subr.mxu0 0.0
        %2912 = vmatpush1.msra.mxu0 0.0
        %2913 = vmatprep.subr.mxu0 0.0
        %2914 = vmatpush1.msra.mxu0 0.0
        %2915 = vmatprep.subr.mxu0 0.0
        %2916 = vmatpush1.msra.mxu0 0.0
        %2917 = vmatprep.subr.mxu0 0.0
        %2918 = vmatpush1.msra.mxu0 0.0
        %2919 = vmatprep.subr.mxu0 0.0
        %2920 = vmatpush1.msra.mxu0 0.0
        %2921 = vmatprep.subr.mxu0 0.0
        %2922 = vmatpush1.msra.mxu0 0.0
        %2923 = vmatprep.subr.mxu0 0.0
        %2924 = vmatpush1.msra.mxu0 0.0
        %2925 = vmatprep.subr.mxu0 0.0
        %2926 = vmatpush1.msra.mxu0 0.0
        %2927 = vmatprep.subr.mxu0 0.0
        %2928 = vmatpush1.msra.mxu0 0.0
        %2929 = vmatprep.subr.mxu0 0.0
        %2930 = vmatpush1.msra.mxu0 0.0
        %2931 = vmatprep.subr.mxu0 0.0
        %2932 = vmatpush1.msra.mxu0 0.0
        %2933 = vmatprep.subr.mxu0 0.0
        %2934 = vmatpush1.msra.mxu0 0.0
        %2935 = vmatprep.subr.mxu0 0.0
        %2936 = vmatpush1.msra.mxu0 0.0
        %2937 = vmatprep.subr.mxu0 0.0
        %2938 = vmatpush1.msra.mxu0 0.0
        %v2939 = vand.u32 %v1766, 4294901760
        %v2940 = vsub.f32 %v1766, %v2939
        %2941 = vmatprep.subr.mxu0 %v2940
        %v2942 = vand.u32 %v1764, 4294901760
        %v2943 = vsub.f32 %v1764, %v2942
        %2944 = vmatpush1.msra.mxu0 %v2943
        %v2945 = vand.u32 %v1759, 4294901760
        %v2946 = vsub.f32 %v1759, %v2945
        %2947 = vmatprep.subr.mxu0 %v2946
        %v2948 = vand.u32 %v1757, 4294901760
        %v2949 = vsub.f32 %v1757, %v2948
        %2950 = vmatpush1.msra.mxu0 %v2949
        %2951 = vmatprep.subr.mxu0 0.0
        %2952 = vmatpush2.msra.mxu0 0.0
        %2953 = vmatprep.subr.mxu0 0.0
        %2954 = vmatpush2.msra.mxu0 0.0
        %2955 = vmatprep.subr.mxu0 0.0
        %2956 = vmatpush2.msra.mxu0 0.0
        %2957 = vmatprep.subr.mxu0 0.0
        %2958 = vmatpush2.msra.mxu0 0.0
        %2959 = vmatprep.subr.mxu0 0.0
        %2960 = vmatpush2.msra.mxu0 0.0
        %2961 = vmatprep.subr.mxu0 0.0
        %2962 = vmatpush2.msra.mxu0 0.0
        %2963 = vmatprep.subr.mxu0 0.0
        %2964 = vmatpush2.msra.mxu0 0.0
        %2965 = vmatprep.subr.mxu0 0.0
        %2966 = vmatpush2.msra.mxu0 0.0
        %2967 = vmatprep.subr.mxu0 0.0
        %2968 = vmatpush2.msra.mxu0 0.0
        %2969 = vmatprep.subr.mxu0 0.0
        %2970 = vmatpush2.msra.mxu0 0.0
        %2971 = vmatprep.subr.mxu0 0.0
        %2972 = vmatpush2.msra.mxu0 0.0
        %2973 = vmatprep.subr.mxu0 0.0
        %2974 = vmatpush2.msra.mxu0 0.0
        %2975 = vmatprep.subr.mxu0 0.0
        %2976 = vmatpush2.msra.mxu0 0.0
        %2977 = vmatprep.subr.mxu0 0.0
        %2978 = vmatpush2.msra.mxu0 0.0
        %2979 = vmatprep.subr.mxu0 0.0
        %2980 = vmatpush2.msra.mxu0 0.0
        %2981 = vmatprep.subr.mxu0 0.0
        %2982 = vmatpush2.msra.mxu0 0.0
        %2983 = vmatprep.mubr.f32.mxu0 0.0
        %v2984 = vand.u32 %v1223, 4294901760
        %v2985 = vsub.f32 %v1223, %v2984
        %2986 = vmatmul.mubr.f32.gmra.mxu0 %v2985
        %v2987 = vpop.f32.mrf.mxu0
        %v2988 = vadd.f32 %v2900, %v2987
        %v2989 = vpop.f32.mrf.mxu0
        %v2990 = vadd.f32 %v2902, %v2989
        %2991 = vmatprep.mubr.f32.mxu0 0.0
        %v2992 = vand.u32 %v1226, 4294901760
        %v2993 = vsub.f32 %v1226, %v2992
        %2994 = vmatmul.mubr.f32.gmra.mxu0 %v2993
        %v2995 = vpop.f32.mrf.mxu0
        %v2996 = vadd.f32 %v2907, %v2995
        %v2997 = vpop.f32.mrf.mxu0
        %v2998 = vadd.f32 %v2909, %v2997
        %2999 = vdwg.mxu0
        %3000 = vmatprep.subr.mxu0 0.0
        %3001 = vmatpush1.msra.mxu0 0.0
        %3002 = vmatprep.subr.mxu0 0.0
        %3003 = vmatpush1.msra.mxu0 0.0
        %3004 = vmatprep.subr.mxu0 0.0
        %3005 = vmatpush1.msra.mxu0 0.0
        %3006 = vmatprep.subr.mxu0 0.0
        %3007 = vmatpush1.msra.mxu0 0.0
        %3008 = vmatprep.subr.mxu0 0.0
        %3009 = vmatpush1.msra.mxu0 0.0
        %3010 = vmatprep.subr.mxu0 0.0
        %3011 = vmatpush1.msra.mxu0 0.0
        %3012 = vmatprep.subr.mxu0 0.0
        %3013 = vmatpush1.msra.mxu0 0.0
        %3014 = vmatprep.subr.mxu0 0.0
        %3015 = vmatpush1.msra.mxu0 0.0
        %3016 = vmatprep.subr.mxu0 0.0
        %3017 = vmatpush1.msra.mxu0 0.0
        %3018 = vmatprep.subr.mxu0 0.0
        %3019 = vmatpush1.msra.mxu0 0.0
        %3020 = vmatprep.subr.mxu0 0.0
        %3021 = vmatpush1.msra.mxu0 0.0
        %3022 = vmatprep.subr.mxu0 0.0
        %3023 = vmatpush1.msra.mxu0 0.0
        %3024 = vmatprep.subr.mxu0 0.0
        %3025 = vmatpush1.msra.mxu0 0.0
        %3026 = vmatprep.subr.mxu0 0.0
        %3027 = vmatpush1.msra.mxu0 0.0
        %v3028 = vand.u32 %v1766, 4294901760
        %3029 = vmatprep.subr.mxu0 %v3028
        %v3030 = vand.u32 %v1764, 4294901760
        %3031 = vmatpush1.msra.mxu0 %v3030
        %v3032 = vand.u32 %v1759, 4294901760
        %3033 = vmatprep.subr.mxu0 %v3032
        %v3034 = vand.u32 %v1757, 4294901760
        %3035 = vmatpush1.msra.mxu0 %v3034
        %3036 = vmatprep.subr.mxu0 0.0
        %3037 = vmatpush2.msra.mxu0 0.0
        %3038 = vmatprep.subr.mxu0 0.0
        %3039 = vmatpush2.msra.mxu0 0.0
        %3040 = vmatprep.subr.mxu0 0.0
        %3041 = vmatpush2.msra.mxu0 0.0
        %3042 = vmatprep.subr.mxu0 0.0
        %3043 = vmatpush2.msra.mxu0 0.0
        %3044 = vmatprep.subr.mxu0 0.0
        %3045 = vmatpush2.msra.mxu0 0.0
        %3046 = vmatprep.subr.mxu0 0.0
        %3047 = vmatpush2.msra.mxu0 0.0
        %3048 = vmatprep.subr.mxu0 0.0
        %3049 = vmatpush2.msra.mxu0 0.0
        %3050 = vmatprep.subr.mxu0 0.0
        %3051 = vmatpush2.msra.mxu0 0.0
        %3052 = vmatprep.subr.mxu0 0.0
        %3053 = vmatpush2.msra.mxu0 0.0
        %3054 = vmatprep.subr.mxu0 0.0
        %3055 = vmatpush2.msra.mxu0 0.0
        %3056 = vmatprep.subr.mxu0 0.0
        %3057 = vmatpush2.msra.mxu0 0.0
        %3058 = vmatprep.subr.mxu0 0.0
        %3059 = vmatpush2.msra.mxu0 0.0
        %3060 = vmatprep.subr.mxu0 0.0
        %3061 = vmatpush2.msra.mxu0 0.0
        %3062 = vmatprep.subr.mxu0 0.0
        %3063 = vmatpush2.msra.mxu0 0.0
        %3064 = vmatprep.subr.mxu0 0.0
        %3065 = vmatpush2.msra.mxu0 0.0
        %3066 = vmatprep.subr.mxu0 0.0
        %3067 = vmatpush2.msra.mxu0 0.0
        %3068 = vmatprep.mubr.f32.mxu0 0.0
        %v3069 = vand.u32 %v1223, 4294901760
        %v3070 = vsub.f32 %v1223, %v3069
        %v3071 = vand.u32 %v3070, 4294901760
        %3072 = vmatmul.mubr.f32.gmra.mxu0 %v3071
        %v3073 = vpop.f32.mrf.mxu0
        %v3074 = vadd.f32 %v2988, %v3073
        %v3075 = vpop.f32.mrf.mxu0
        %v3076 = vadd.f32 %v2990, %v3075
        %3077 = vmatprep.mubr.f32.mxu0 0.0
        %v3078 = vand.u32 %v1226, 4294901760
        %v3079 = vsub.f32 %v1226, %v3078
        %v3080 = vand.u32 %v3079, 4294901760
        %3081 = vmatmul.mubr.f32.gmra.mxu0 %v3080
        %v3082 = vpop.f32.mrf.mxu0
        %v3083 = vadd.f32 %v2996, %v3082
        %v3084 = vpop.f32.mrf.mxu0
        %v3085 = vadd.f32 %v2998, %v3084
        %3086 = vdwg.mxu0
        %3087 = vmatprep.subr.mxu0 0.0
        %3088 = vmatpush1.msra.mxu0 0.0
        %3089 = vmatprep.subr.mxu0 0.0
        %3090 = vmatpush1.msra.mxu0 0.0
        %3091 = vmatprep.subr.mxu0 0.0
        %3092 = vmatpush1.msra.mxu0 0.0
        %3093 = vmatprep.subr.mxu0 0.0
        %3094 = vmatpush1.msra.mxu0 0.0
        %3095 = vmatprep.subr.mxu0 0.0
        %3096 = vmatpush1.msra.mxu0 0.0
        %3097 = vmatprep.subr.mxu0 0.0
        %3098 = vmatpush1.msra.mxu0 0.0
        %3099 = vmatprep.subr.mxu0 0.0
        %3100 = vmatpush1.msra.mxu0 0.0
        %3101 = vmatprep.subr.mxu0 0.0
        %3102 = vmatpush1.msra.mxu0 0.0
        %3103 = vmatprep.subr.mxu0 0.0
        %3104 = vmatpush1.msra.mxu0 0.0
        %3105 = vmatprep.subr.mxu0 0.0
        %3106 = vmatpush1.msra.mxu0 0.0
        %3107 = vmatprep.subr.mxu0 0.0
        %3108 = vmatpush1.msra.mxu0 0.0
        %3109 = vmatprep.subr.mxu0 0.0
        %3110 = vmatpush1.msra.mxu0 0.0
        %3111 = vmatprep.subr.mxu0 0.0
        %3112 = vmatpush1.msra.mxu0 0.0
        %3113 = vmatprep.subr.mxu0 0.0
        %3114 = vmatpush1.msra.mxu0 0.0
        %v3115 = vand.u32 %v1766, 4294901760
        %v3116 = vsub.f32 %v1766, %v3115
        %v3117 = vand.u32 %v3116, 4294901760
        %3118 = vmatprep.subr.mxu0 %v3117
        %v3119 = vand.u32 %v1764, 4294901760
        %v3120 = vsub.f32 %v1764, %v3119
        %v3121 = vand.u32 %v3120, 4294901760
        %3122 = vmatpush1.msra.mxu0 %v3121
        %v3123 = vand.u32 %v1759, 4294901760
        %v3124 = vsub.f32 %v1759, %v3123
        %v3125 = vand.u32 %v3124, 4294901760
        %3126 = vmatprep.subr.mxu0 %v3125
        %v3127 = vand.u32 %v1757, 4294901760
        %v3128 = vsub.f32 %v1757, %v3127
        %v3129 = vand.u32 %v3128, 4294901760
        %3130 = vmatpush1.msra.mxu0 %v3129
        %3131 = vmatprep.subr.mxu0 0.0
        %3132 = vmatpush2.msra.mxu0 0.0
        %3133 = vmatprep.subr.mxu0 0.0
        %3134 = vmatpush2.msra.mxu0 0.0
        %3135 = vmatprep.subr.mxu0 0.0
        %3136 = vmatpush2.msra.mxu0 0.0
        %3137 = vmatprep.subr.mxu0 0.0
        %3138 = vmatpush2.msra.mxu0 0.0
        %3139 = vmatprep.subr.mxu0 0.0
        %3140 = vmatpush2.msra.mxu0 0.0
        %3141 = vmatprep.subr.mxu0 0.0
        %3142 = vmatpush2.msra.mxu0 0.0
        %3143 = vmatprep.subr.mxu0 0.0
        %3144 = vmatpush2.msra.mxu0 0.0
        %3145 = vmatprep.subr.mxu0 0.0
        %3146 = vmatpush2.msra.mxu0 0.0
        %3147 = vmatprep.subr.mxu0 0.0
        %3148 = vmatpush2.msra.mxu0 0.0
        %3149 = vmatprep.subr.mxu0 0.0
        %3150 = vmatpush2.msra.mxu0 0.0
        %3151 = vmatprep.subr.mxu0 0.0
        %3152 = vmatpush2.msra.mxu0 0.0
        %3153 = vmatprep.subr.mxu0 0.0
        %3154 = vmatpush2.msra.mxu0 0.0
        %3155 = vmatprep.subr.mxu0 0.0
        %3156 = vmatpush2.msra.mxu0 0.0
        %3157 = vmatprep.subr.mxu0 0.0
        %3158 = vmatpush2.msra.mxu0 0.0
        %3159 = vmatprep.subr.mxu0 0.0
        %3160 = vmatpush2.msra.mxu0 0.0
        %3161 = vmatprep.subr.mxu0 0.0
        %3162 = vmatpush2.msra.mxu0 0.0
        %3163 = vmatprep.mubr.f32.mxu0 0.0
        %v3164 = vand.u32 %v1223, 4294901760
        %3165 = vmatmul.mubr.f32.gmra.mxu0 %v3164
        %v3166 = vpop.f32.mrf.mxu0
        %v3167 = vadd.f32 %v3074, %v3166
        %v3168 = vpop.f32.mrf.mxu0
        %v3169 = vadd.f32 %v3076, %v3168
        %3170 = vmatprep.mubr.f32.mxu0 0.0
        %v3171 = vand.u32 %v1226, 4294901760
        %3172 = vmatmul.mubr.f32.gmra.mxu0 %v3171
        %v3173 = vpop.f32.mrf.mxu0
        %v3174 = vadd.f32 %v3083, %v3173
        %v3175 = vpop.f32.mrf.mxu0
        %v3176 = vadd.f32 %v3085, %v3175
        %3177 = vdwg.mxu0
        %3178 = vmatprep.subr.mxu0 0.0
        %3179 = vmatpush1.msra.mxu0 0.0
        %3180 = vmatprep.subr.mxu0 0.0
        %3181 = vmatpush1.msra.mxu0 0.0
        %3182 = vmatprep.subr.mxu0 0.0
        %3183 = vmatpush1.msra.mxu0 0.0
        %3184 = vmatprep.subr.mxu0 0.0
        %3185 = vmatpush1.msra.mxu0 0.0
        %3186 = vmatprep.subr.mxu0 0.0
        %3187 = vmatpush1.msra.mxu0 0.0
        %3188 = vmatprep.subr.mxu0 0.0
        %3189 = vmatpush1.msra.mxu0 0.0
        %3190 = vmatprep.subr.mxu0 0.0
        %3191 = vmatpush1.msra.mxu0 0.0
        %3192 = vmatprep.subr.mxu0 0.0
        %3193 = vmatpush1.msra.mxu0 0.0
        %3194 = vmatprep.subr.mxu0 0.0
        %3195 = vmatpush1.msra.mxu0 0.0
        %3196 = vmatprep.subr.mxu0 0.0
        %3197 = vmatpush1.msra.mxu0 0.0
        %3198 = vmatprep.subr.mxu0 0.0
        %3199 = vmatpush1.msra.mxu0 0.0
        %3200 = vmatprep.subr.mxu0 0.0
        %3201 = vmatpush1.msra.mxu0 0.0
        %3202 = vmatprep.subr.mxu0 0.0
        %3203 = vmatpush1.msra.mxu0 0.0
        %3204 = vmatprep.subr.mxu0 0.0
        %3205 = vmatpush1.msra.mxu0 0.0
        %v3206 = vand.u32 %v1766, 4294901760
        %3207 = vmatprep.subr.mxu0 %v3206
        %v3208 = vand.u32 %v1764, 4294901760
        %3209 = vmatpush1.msra.mxu0 %v3208
        %v3210 = vand.u32 %v1759, 4294901760
        %3211 = vmatprep.subr.mxu0 %v3210
        %v3212 = vand.u32 %v1757, 4294901760
        %3213 = vmatpush1.msra.mxu0 %v3212
        %3214 = vmatprep.subr.mxu0 0.0
        %3215 = vmatpush2.msra.mxu0 0.0
        %3216 = vmatprep.subr.mxu0 0.0
        %3217 = vmatpush2.msra.mxu0 0.0
        %3218 = vmatprep.subr.mxu0 0.0
        %3219 = vmatpush2.msra.mxu0 0.0
        %3220 = vmatprep.subr.mxu0 0.0
        %3221 = vmatpush2.msra.mxu0 0.0
        %3222 = vmatprep.subr.mxu0 0.0
        %3223 = vmatpush2.msra.mxu0 0.0
        %3224 = vmatprep.subr.mxu0 0.0
        %3225 = vmatpush2.msra.mxu0 0.0
        %3226 = vmatprep.subr.mxu0 0.0
        %3227 = vmatpush2.msra.mxu0 0.0
        %3228 = vmatprep.subr.mxu0 0.0
        %3229 = vmatpush2.msra.mxu0 0.0
        %3230 = vmatprep.subr.mxu0 0.0
        %3231 = vmatpush2.msra.mxu0 0.0
        %3232 = vmatprep.subr.mxu0 0.0
        %3233 = vmatpush2.msra.mxu0 0.0
        %3234 = vmatprep.subr.mxu0 0.0
        %3235 = vmatpush2.msra.mxu0 0.0
        %3236 = vmatprep.subr.mxu0 0.0
        %3237 = vmatpush2.msra.mxu0 0.0
        %3238 = vmatprep.subr.mxu0 0.0
        %3239 = vmatpush2.msra.mxu0 0.0
        %3240 = vmatprep.subr.mxu0 0.0
        %3241 = vmatpush2.msra.mxu0 0.0
        %3242 = vmatprep.subr.mxu0 0.0
        %3243 = vmatpush2.msra.mxu0 0.0
        %3244 = vmatprep.subr.mxu0 0.0
        %3245 = vmatpush2.msra.mxu0 0.0
        %3246 = vmatprep.mubr.f32.mxu0 0.0
        %v3247 = vand.u32 %v1223, 4294901760
        %3248 = vmatmul.mubr.f32.gmra.mxu0 %v3247
        %v3249 = vpop.f32.mrf.mxu0
        %v3250 = vadd.f32 %v3167, %v3249
        %v3251 = vpop.f32.mrf.mxu0
        %v3252 = vadd.f32 %v3169, %v3251
        %3253 = vmatprep.mubr.f32.mxu0 0.0
        %v3254 = vand.u32 %v1226, 4294901760
        %3255 = vmatmul.mubr.f32.gmra.mxu0 %v3254
        %v3256 = vpop.f32.mrf.mxu0
        %v3257 = vadd.f32 %v3174, %v3256
        %v3258 = vpop.f32.mrf.mxu0
        %v3259 = vadd.f32 %v3176, %v3258
        %3260 = vdwg.mxu0
        %v3261 = vmul.f32 %v3250, 2.0
        %v3262 = vmul.f32 %v3252, 2.0
        %v3263 = vmul.f32 %v3257, 2.0
        %v3264 = vmul.f32 %v3259, 2.0
        %v3265 = vsub.f32 %v3261, %v263
        %v3266 = vsub.f32 %v3262, %v264
        %v3267 = vsub.f32 %v3263, %v265
        %v3268 = vsub.f32 %v3264, %v266
        %s3269 = scalar_lea.vmem [#allocation7], 512
        %v3270 = vld [vmem:[%s3269] sm:$0xff]
        %v3271 = vld [vmem:[%s3269 + $0x8] sm:$0xff]
        %v3272 = vld [vmem:[%s3269 + $0x10] sm:$0xff]
        %v3273 = vld [vmem:[%s3269 + $0x18] sm:$0xff]
        %v3274 = vld [vmem:[%s3269 + $0x20] sm:$0xff]
        %v3275 = vld [vmem:[%s3269 + $0x28] sm:$0xff]
        %v3276 = vld [vmem:[%s3269 + $0x30] sm:$0xff]
        %v3277 = vld [vmem:[%s3269 + $0x38] sm:$0xff]
        %v3278 = vld [vmem:[%s3269 + $0x40] sm:$0xff]
        %v3279 = vld [vmem:[%s3269 + $0x48] sm:$0xff]
        %v3280 = vld [vmem:[%s3269 + $0x50] sm:$0xff]
        %v3281 = vld [vmem:[%s3269 + $0x58] sm:$0xff]
        %v3282 = vld [vmem:[%s3269 + $0x60] sm:$0xff]
        %v3283 = vld [vmem:[%s3269 + $0x68] sm:$0xff]
        %v3284 = vld [vmem:[%s3269 + $0x70] sm:$0xff]
        %v3285 = vld [vmem:[%s3269 + $0x78] sm:$0xff]
        %v3286 = vld [vmem:[%s3269 + $0x80] sm:$0xff]
        %v3287 = vld [vmem:[%s3269 + $0x88] sm:$0xff]
        %v3288 = vld [vmem:[%s3269 + $0x90] sm:$0xff]
        %v3289 = vld [vmem:[%s3269 + $0x98] sm:$0xff]
        %v3290 = vld [vmem:[%s3269 + $0xa0] sm:$0xff]
        %v3291 = vld [vmem:[%s3269 + $0xa8] sm:$0xff]
        %v3292 = vld [vmem:[%s3269 + $0xb0] sm:$0xff]
        %v3293 = vld [vmem:[%s3269 + $0xb8] sm:$0xff]
        %v3294 = vld [vmem:[%s3269 + $0xc0] sm:$0xff]
        %v3295 = vld [vmem:[%s3269 + $0xc8] sm:$0xff]
        %v3296 = vld [vmem:[%s3269 + $0xd0] sm:$0xff]
        %v3297 = vld [vmem:[%s3269 + $0xd8] sm:$0xff]
        %v3298 = vld [vmem:[%s3269 + $0xe0] sm:$0xff]
        %v3299 = vld [vmem:[%s3269 + $0xe8] sm:$0xff]
        %v3300 = vld [vmem:[%s3269 + $0xf0] sm:$0xff]
        %v3301 = vld [vmem:[%s3269 + $0xf8] sm:$0xff]
        %3302 = vmatprep.subr.mxu0 0.0
        %v3303 = vand.u32 %v3285, 4294901760
        %3304 = vmatpush1.msra.mxu0 %v3303
        %3305 = vmatprep.subr.mxu0 0.0
        %v3306 = vand.u32 %v3284, 4294901760
        %3307 = vmatpush1.msra.mxu0 %v3306
        %3308 = vmatprep.subr.mxu0 0.0
        %v3309 = vand.u32 %v3283, 4294901760
        %3310 = vmatpush1.msra.mxu0 %v3309
        %3311 = vmatprep.subr.mxu0 0.0
        %v3312 = vand.u32 %v3282, 4294901760
        %3313 = vmatpush1.msra.mxu0 %v3312
        %3314 = vmatprep.subr.mxu0 0.0
        %v3315 = vand.u32 %v3281, 4294901760
        %3316 = vmatpush1.msra.mxu0 %v3315
        %3317 = vmatprep.subr.mxu0 0.0
        %v3318 = vand.u32 %v3280, 4294901760
        %3319 = vmatpush1.msra.mxu0 %v3318
        %3320 = vmatprep.subr.mxu0 0.0
        %v3321 = vand.u32 %v3279, 4294901760
        %3322 = vmatpush1.msra.mxu0 %v3321
        %3323 = vmatprep.subr.mxu0 0.0
        %v3324 = vand.u32 %v3278, 4294901760
        %3325 = vmatpush1.msra.mxu0 %v3324
        %3326 = vmatprep.subr.mxu0 0.0
        %v3327 = vand.u32 %v3277, 4294901760
        %3328 = vmatpush1.msra.mxu0 %v3327
        %3329 = vmatprep.subr.mxu0 0.0
        %v3330 = vand.u32 %v3276, 4294901760
        %3331 = vmatpush1.msra.mxu0 %v3330
        %3332 = vmatprep.subr.mxu0 0.0
        %v3333 = vand.u32 %v3275, 4294901760
        %3334 = vmatpush1.msra.mxu0 %v3333
        %3335 = vmatprep.subr.mxu0 0.0
        %v3336 = vand.u32 %v3274, 4294901760
        %3337 = vmatpush1.msra.mxu0 %v3336
        %3338 = vmatprep.subr.mxu0 0.0
        %v3339 = vand.u32 %v3273, 4294901760
        %3340 = vmatpush1.msra.mxu0 %v3339
        %3341 = vmatprep.subr.mxu0 0.0
        %v3342 = vand.u32 %v3272, 4294901760
        %3343 = vmatpush1.msra.mxu0 %v3342
        %3344 = vmatprep.subr.mxu0 0.0
        %v3345 = vand.u32 %v3271, 4294901760
        %3346 = vmatpush1.msra.mxu0 %v3345
        %3347 = vmatprep.subr.mxu0 0.0
        %v3348 = vand.u32 %v3270, 4294901760
        %3349 = vmatpush1.msra.mxu0 %v3348
        %3350 = vmatprep.subr.mxu0 0.0
        %v3351 = vand.u32 %v3301, 4294901760
        %3352 = vmatpush2.msra.mxu0 %v3351
        %3353 = vmatprep.subr.mxu0 0.0
        %v3354 = vand.u32 %v3300, 4294901760
        %3355 = vmatpush2.msra.mxu0 %v3354
        %3356 = vmatprep.subr.mxu0 0.0
        %v3357 = vand.u32 %v3299, 4294901760
        %3358 = vmatpush2.msra.mxu0 %v3357
        %3359 = vmatprep.subr.mxu0 0.0
        %v3360 = vand.u32 %v3298, 4294901760
        %3361 = vmatpush2.msra.mxu0 %v3360
        %3362 = vmatprep.subr.mxu0 0.0
        %v3363 = vand.u32 %v3297, 4294901760
        %3364 = vmatpush2.msra.mxu0 %v3363
        %3365 = vmatprep.subr.mxu0 0.0
        %v3366 = vand.u32 %v3296, 4294901760
        %3367 = vmatpush2.msra.mxu0 %v3366
        %3368 = vmatprep.subr.mxu0 0.0
        %v3369 = vand.u32 %v3295, 4294901760
        %3370 = vmatpush2.msra.mxu0 %v3369
        %3371 = vmatprep.subr.mxu0 0.0
        %v3372 = vand.u32 %v3294, 4294901760
        %3373 = vmatpush2.msra.mxu0 %v3372
        %3374 = vmatprep.subr.mxu0 0.0
        %v3375 = vand.u32 %v3293, 4294901760
        %3376 = vmatpush2.msra.mxu0 %v3375
        %3377 = vmatprep.subr.mxu0 0.0
        %v3378 = vand.u32 %v3292, 4294901760
        %3379 = vmatpush2.msra.mxu0 %v3378
        %3380 = vmatprep.subr.mxu0 0.0
        %v3381 = vand.u32 %v3291, 4294901760
        %3382 = vmatpush2.msra.mxu0 %v3381
        %3383 = vmatprep.subr.mxu0 0.0
        %v3384 = vand.u32 %v3290, 4294901760
        %3385 = vmatpush2.msra.mxu0 %v3384
        %3386 = vmatprep.subr.mxu0 0.0
        %v3387 = vand.u32 %v3289, 4294901760
        %3388 = vmatpush2.msra.mxu0 %v3387
        %3389 = vmatprep.subr.mxu0 0.0
        %v3390 = vand.u32 %v3288, 4294901760
        %3391 = vmatpush2.msra.mxu0 %v3390
        %3392 = vmatprep.subr.mxu0 0.0
        %v3393 = vand.u32 %v3287, 4294901760
        %3394 = vmatpush2.msra.mxu0 %v3393
        %3395 = vmatprep.subr.mxu0 0.0
        %v3396 = vand.u32 %v3286, 4294901760
        %3397 = vmatpush2.msra.mxu0 %v3396
        %v3398 = vand.u32 %v3266, 4294901760
        %v3399 = vsub.f32 %v3266, %v3398
        %v3400 = vand.u32 %v3399, 4294901760
        %v3401 = vsub.f32 %v3399, %v3400
        %v3402 = vand.u32 %v3401, 4294901760
        %3403 = vmatprep.mubr.f32.mxu0 %v3402
        %v3404 = vand.u32 %v3265, 4294901760
        %v3405 = vsub.f32 %v3265, %v3404
        %v3406 = vand.u32 %v3405, 4294901760
        %v3407 = vsub.f32 %v3405, %v3406
        %v3408 = vand.u32 %v3407, 4294901760
        %3409 = vmatmul.mubr.f32.gmra.mxu0 %v3408
        %v3410 = vpop.f32.mrf.mxu0
        %v3411 = vadd.f32 0.0, %v3410
        %v3412 = vpop.f32.mrf.mxu0
        %v3413 = vand.u32 %v3268, 4294901760
        %v3414 = vsub.f32 %v3268, %v3413
        %v3415 = vand.u32 %v3414, 4294901760
        %v3416 = vsub.f32 %v3414, %v3415
        %v3417 = vand.u32 %v3416, 4294901760
        %3418 = vmatprep.mubr.f32.mxu0 %v3417
        %v3419 = vand.u32 %v3267, 4294901760
        %v3420 = vsub.f32 %v3267, %v3419
        %v3421 = vand.u32 %v3420, 4294901760
        %v3422 = vsub.f32 %v3420, %v3421
        %v3423 = vand.u32 %v3422, 4294901760
        %3424 = vmatmul.mubr.f32.gmra.mxu0 %v3423
        %v3425 = vpop.f32.mrf.mxu0
        %v3426 = vadd.f32 0.0, %v3425
        %v3427 = vpop.f32.mrf.mxu0
        %3428 = vdwg.mxu0
        %3429 = vmatprep.subr.mxu0 0.0
        %v3430 = vand.u32 %v3285, 4294901760
        %v3431 = vsub.f32 %v3285, %v3430
        %v3432 = vand.u32 %v3431, 4294901760
        %v3433 = vsub.f32 %v3431, %v3432
        %v3434 = vand.u32 %v3433, 4294901760
        %3435 = vmatpush1.msra.mxu0 %v3434
        %3436 = vmatprep.subr.mxu0 0.0
        %v3437 = vand.u32 %v3284, 4294901760
        %v3438 = vsub.f32 %v3284, %v3437
        %v3439 = vand.u32 %v3438, 4294901760
        %v3440 = vsub.f32 %v3438, %v3439
        %v3441 = vand.u32 %v3440, 4294901760
        %3442 = vmatpush1.msra.mxu0 %v3441
        %3443 = vmatprep.subr.mxu0 0.0
        %v3444 = vand.u32 %v3283, 4294901760
        %v3445 = vsub.f32 %v3283, %v3444
        %v3446 = vand.u32 %v3445, 4294901760
        %v3447 = vsub.f32 %v3445, %v3446
        %v3448 = vand.u32 %v3447, 4294901760
        %3449 = vmatpush1.msra.mxu0 %v3448
        %3450 = vmatprep.subr.mxu0 0.0
        %v3451 = vand.u32 %v3282, 4294901760
        %v3452 = vsub.f32 %v3282, %v3451
        %v3453 = vand.u32 %v3452, 4294901760
        %v3454 = vsub.f32 %v3452, %v3453
        %v3455 = vand.u32 %v3454, 4294901760
        %3456 = vmatpush1.msra.mxu0 %v3455
        %3457 = vmatprep.subr.mxu0 0.0
        %v3458 = vand.u32 %v3281, 4294901760
        %v3459 = vsub.f32 %v3281, %v3458
        %v3460 = vand.u32 %v3459, 4294901760
        %v3461 = vsub.f32 %v3459, %v3460
        %v3462 = vand.u32 %v3461, 4294901760
        %3463 = vmatpush1.msra.mxu0 %v3462
        %3464 = vmatprep.subr.mxu0 0.0
        %v3465 = vand.u32 %v3280, 4294901760
        %v3466 = vsub.f32 %v3280, %v3465
        %v3467 = vand.u32 %v3466, 4294901760
        %v3468 = vsub.f32 %v3466, %v3467
        %v3469 = vand.u32 %v3468, 4294901760
        %3470 = vmatpush1.msra.mxu0 %v3469
        %3471 = vmatprep.subr.mxu0 0.0
        %v3472 = vand.u32 %v3279, 4294901760
        %v3473 = vsub.f32 %v3279, %v3472
        %v3474 = vand.u32 %v3473, 4294901760
        %v3475 = vsub.f32 %v3473, %v3474
        %v3476 = vand.u32 %v3475, 4294901760
        %3477 = vmatpush1.msra.mxu0 %v3476
        %3478 = vmatprep.subr.mxu0 0.0
        %v3479 = vand.u32 %v3278, 4294901760
        %v3480 = vsub.f32 %v3278, %v3479
        %v3481 = vand.u32 %v3480, 4294901760
        %v3482 = vsub.f32 %v3480, %v3481
        %v3483 = vand.u32 %v3482, 4294901760
        %3484 = vmatpush1.msra.mxu0 %v3483
        %3485 = vmatprep.subr.mxu0 0.0
        %v3486 = vand.u32 %v3277, 4294901760
        %v3487 = vsub.f32 %v3277, %v3486
        %v3488 = vand.u32 %v3487, 4294901760
        %v3489 = vsub.f32 %v3487, %v3488
        %v3490 = vand.u32 %v3489, 4294901760
        %3491 = vmatpush1.msra.mxu0 %v3490
        %3492 = vmatprep.subr.mxu0 0.0
        %v3493 = vand.u32 %v3276, 4294901760
        %v3494 = vsub.f32 %v3276, %v3493
        %v3495 = vand.u32 %v3494, 4294901760
        %v3496 = vsub.f32 %v3494, %v3495
        %v3497 = vand.u32 %v3496, 4294901760
        %3498 = vmatpush1.msra.mxu0 %v3497
        %3499 = vmatprep.subr.mxu0 0.0
        %v3500 = vand.u32 %v3275, 4294901760
        %v3501 = vsub.f32 %v3275, %v3500
        %v3502 = vand.u32 %v3501, 4294901760
        %v3503 = vsub.f32 %v3501, %v3502
        %v3504 = vand.u32 %v3503, 4294901760
        %3505 = vmatpush1.msra.mxu0 %v3504
        %3506 = vmatprep.subr.mxu0 0.0
        %v3507 = vand.u32 %v3274, 4294901760
        %v3508 = vsub.f32 %v3274, %v3507
        %v3509 = vand.u32 %v3508, 4294901760
        %v3510 = vsub.f32 %v3508, %v3509
        %v3511 = vand.u32 %v3510, 4294901760
        %3512 = vmatpush1.msra.mxu0 %v3511
        %3513 = vmatprep.subr.mxu0 0.0
        %v3514 = vand.u32 %v3273, 4294901760
        %v3515 = vsub.f32 %v3273, %v3514
        %v3516 = vand.u32 %v3515, 4294901760
        %v3517 = vsub.f32 %v3515, %v3516
        %v3518 = vand.u32 %v3517, 4294901760
        %3519 = vmatpush1.msra.mxu0 %v3518
        %3520 = vmatprep.subr.mxu0 0.0
        %v3521 = vand.u32 %v3272, 4294901760
        %v3522 = vsub.f32 %v3272, %v3521
        %v3523 = vand.u32 %v3522, 4294901760
        %v3524 = vsub.f32 %v3522, %v3523
        %v3525 = vand.u32 %v3524, 4294901760
        %3526 = vmatpush1.msra.mxu0 %v3525
        %3527 = vmatprep.subr.mxu0 0.0
        %v3528 = vand.u32 %v3271, 4294901760
        %v3529 = vsub.f32 %v3271, %v3528
        %v3530 = vand.u32 %v3529, 4294901760
        %v3531 = vsub.f32 %v3529, %v3530
        %v3532 = vand.u32 %v3531, 4294901760
        %3533 = vmatpush1.msra.mxu0 %v3532
        %3534 = vmatprep.subr.mxu0 0.0
        %v3535 = vand.u32 %v3270, 4294901760
        %v3536 = vsub.f32 %v3270, %v3535
        %v3537 = vand.u32 %v3536, 4294901760
        %v3538 = vsub.f32 %v3536, %v3537
        %v3539 = vand.u32 %v3538, 4294901760
        %3540 = vmatpush1.msra.mxu0 %v3539
        %3541 = vmatprep.subr.mxu0 0.0
        %v3542 = vand.u32 %v3301, 4294901760
        %v3543 = vsub.f32 %v3301, %v3542
        %v3544 = vand.u32 %v3543, 4294901760
        %v3545 = vsub.f32 %v3543, %v3544
        %v3546 = vand.u32 %v3545, 4294901760
        %3547 = vmatpush2.msra.mxu0 %v3546
        %3548 = vmatprep.subr.mxu0 0.0
        %v3549 = vand.u32 %v3300, 4294901760
        %v3550 = vsub.f32 %v3300, %v3549
        %v3551 = vand.u32 %v3550, 4294901760
        %v3552 = vsub.f32 %v3550, %v3551
        %v3553 = vand.u32 %v3552, 4294901760
        %3554 = vmatpush2.msra.mxu0 %v3553
        %3555 = vmatprep.subr.mxu0 0.0
        %v3556 = vand.u32 %v3299, 4294901760
        %v3557 = vsub.f32 %v3299, %v3556
        %v3558 = vand.u32 %v3557, 4294901760
        %v3559 = vsub.f32 %v3557, %v3558
        %v3560 = vand.u32 %v3559, 4294901760
        %3561 = vmatpush2.msra.mxu0 %v3560
        %3562 = vmatprep.subr.mxu0 0.0
        %v3563 = vand.u32 %v3298, 4294901760
        %v3564 = vsub.f32 %v3298, %v3563
        %v3565 = vand.u32 %v3564, 4294901760
        %v3566 = vsub.f32 %v3564, %v3565
        %v3567 = vand.u32 %v3566, 4294901760
        %3568 = vmatpush2.msra.mxu0 %v3567
        %3569 = vmatprep.subr.mxu0 0.0
        %v3570 = vand.u32 %v3297, 4294901760
        %v3571 = vsub.f32 %v3297, %v3570
        %v3572 = vand.u32 %v3571, 4294901760
        %v3573 = vsub.f32 %v3571, %v3572
        %v3574 = vand.u32 %v3573, 4294901760
        %3575 = vmatpush2.msra.mxu0 %v3574
        %3576 = vmatprep.subr.mxu0 0.0
        %v3577 = vand.u32 %v3296, 4294901760
        %v3578 = vsub.f32 %v3296, %v3577
        %v3579 = vand.u32 %v3578, 4294901760
        %v3580 = vsub.f32 %v3578, %v3579
        %v3581 = vand.u32 %v3580, 4294901760
        %3582 = vmatpush2.msra.mxu0 %v3581
        %3583 = vmatprep.subr.mxu0 0.0
        %v3584 = vand.u32 %v3295, 4294901760
        %v3585 = vsub.f32 %v3295, %v3584
        %v3586 = vand.u32 %v3585, 4294901760
        %v3587 = vsub.f32 %v3585, %v3586
        %v3588 = vand.u32 %v3587, 4294901760
        %3589 = vmatpush2.msra.mxu0 %v3588
        %3590 = vmatprep.subr.mxu0 0.0
        %v3591 = vand.u32 %v3294, 4294901760
        %v3592 = vsub.f32 %v3294, %v3591
        %v3593 = vand.u32 %v3592, 4294901760
        %v3594 = vsub.f32 %v3592, %v3593
        %v3595 = vand.u32 %v3594, 4294901760
        %3596 = vmatpush2.msra.mxu0 %v3595
        %3597 = vmatprep.subr.mxu0 0.0
        %v3598 = vand.u32 %v3293, 4294901760
        %v3599 = vsub.f32 %v3293, %v3598
        %v3600 = vand.u32 %v3599, 4294901760
        %v3601 = vsub.f32 %v3599, %v3600
        %v3602 = vand.u32 %v3601, 4294901760
        %3603 = vmatpush2.msra.mxu0 %v3602
        %3604 = vmatprep.subr.mxu0 0.0
        %v3605 = vand.u32 %v3292, 4294901760
        %v3606 = vsub.f32 %v3292, %v3605
        %v3607 = vand.u32 %v3606, 4294901760
        %v3608 = vsub.f32 %v3606, %v3607
        %v3609 = vand.u32 %v3608, 4294901760
        %3610 = vmatpush2.msra.mxu0 %v3609
        %3611 = vmatprep.subr.mxu0 0.0
        %v3612 = vand.u32 %v3291, 4294901760
        %v3613 = vsub.f32 %v3291, %v3612
        %v3614 = vand.u32 %v3613, 4294901760
        %v3615 = vsub.f32 %v3613, %v3614
        %v3616 = vand.u32 %v3615, 4294901760
        %3617 = vmatpush2.msra.mxu0 %v3616
        %3618 = vmatprep.subr.mxu0 0.0
        %v3619 = vand.u32 %v3290, 4294901760
        %v3620 = vsub.f32 %v3290, %v3619
        %v3621 = vand.u32 %v3620, 4294901760
        %v3622 = vsub.f32 %v3620, %v3621
        %v3623 = vand.u32 %v3622, 4294901760
        %3624 = vmatpush2.msra.mxu0 %v3623
        %3625 = vmatprep.subr.mxu0 0.0
        %v3626 = vand.u32 %v3289, 4294901760
        %v3627 = vsub.f32 %v3289, %v3626
        %v3628 = vand.u32 %v3627, 4294901760
        %v3629 = vsub.f32 %v3627, %v3628
        %v3630 = vand.u32 %v3629, 4294901760
        %3631 = vmatpush2.msra.mxu0 %v3630
        %3632 = vmatprep.subr.mxu0 0.0
        %v3633 = vand.u32 %v3288, 4294901760
        %v3634 = vsub.f32 %v3288, %v3633
        %v3635 = vand.u32 %v3634, 4294901760
        %v3636 = vsub.f32 %v3634, %v3635
        %v3637 = vand.u32 %v3636, 4294901760
        %3638 = vmatpush2.msra.mxu0 %v3637
        %3639 = vmatprep.subr.mxu0 0.0
        %v3640 = vand.u32 %v3287, 4294901760
        %v3641 = vsub.f32 %v3287, %v3640
        %v3642 = vand.u32 %v3641, 4294901760
        %v3643 = vsub.f32 %v3641, %v3642
        %v3644 = vand.u32 %v3643, 4294901760
        %3645 = vmatpush2.msra.mxu0 %v3644
        %3646 = vmatprep.subr.mxu0 0.0
        %v3647 = vand.u32 %v3286, 4294901760
        %v3648 = vsub.f32 %v3286, %v3647
        %v3649 = vand.u32 %v3648, 4294901760
        %v3650 = vsub.f32 %v3648, %v3649
        %v3651 = vand.u32 %v3650, 4294901760
        %3652 = vmatpush2.msra.mxu0 %v3651
        %v3653 = vand.u32 %v3266, 4294901760
        %3654 = vmatprep.mubr.f32.mxu0 %v3653
        %v3655 = vand.u32 %v3265, 4294901760
        %3656 = vmatmul.mubr.f32.gmra.mxu0 %v3655
        %v3657 = vpop.f32.mrf.mxu0
        %v3658 = vadd.f32 %v3411, %v3657
        %v3659 = vpop.f32.mrf.mxu0
        %v3660 = vand.u32 %v3268, 4294901760
        %3661 = vmatprep.mubr.f32.mxu0 %v3660
        %v3662 = vand.u32 %v3267, 4294901760
        %3663 = vmatmul.mubr.f32.gmra.mxu0 %v3662
        %v3664 = vpop.f32.mrf.mxu0
        %v3665 = vadd.f32 %v3426, %v3664
        %v3666 = vpop.f32.mrf.mxu0
        %3667 = vdwg.mxu0
        %3668 = vmatprep.subr.mxu0 0.0
        %v3669 = vand.u32 %v3285, 4294901760
        %v3670 = vsub.f32 %v3285, %v3669
        %3671 = vmatpush1.msra.mxu0 %v3670
        %3672 = vmatprep.subr.mxu0 0.0
        %v3673 = vand.u32 %v3284, 4294901760
        %v3674 = vsub.f32 %v3284, %v3673
        %3675 = vmatpush1.msra.mxu0 %v3674
        %3676 = vmatprep.subr.mxu0 0.0
        %v3677 = vand.u32 %v3283, 4294901760
        %v3678 = vsub.f32 %v3283, %v3677
        %3679 = vmatpush1.msra.mxu0 %v3678
        %3680 = vmatprep.subr.mxu0 0.0
        %v3681 = vand.u32 %v3282, 4294901760
        %v3682 = vsub.f32 %v3282, %v3681
        %3683 = vmatpush1.msra.mxu0 %v3682
        %3684 = vmatprep.subr.mxu0 0.0
        %v3685 = vand.u32 %v3281, 4294901760
        %v3686 = vsub.f32 %v3281, %v3685
        %3687 = vmatpush1.msra.mxu0 %v3686
        %3688 = vmatprep.subr.mxu0 0.0
        %v3689 = vand.u32 %v3280, 4294901760
        %v3690 = vsub.f32 %v3280, %v3689
        %3691 = vmatpush1.msra.mxu0 %v3690
        %3692 = vmatprep.subr.mxu0 0.0
        %v3693 = vand.u32 %v3279, 4294901760
        %v3694 = vsub.f32 %v3279, %v3693
        %3695 = vmatpush1.msra.mxu0 %v3694
        %3696 = vmatprep.subr.mxu0 0.0
        %v3697 = vand.u32 %v3278, 4294901760
        %v3698 = vsub.f32 %v3278, %v3697
        %3699 = vmatpush1.msra.mxu0 %v3698
        %3700 = vmatprep.subr.mxu0 0.0
        %v3701 = vand.u32 %v3277, 4294901760
        %v3702 = vsub.f32 %v3277, %v3701
        %3703 = vmatpush1.msra.mxu0 %v3702
        %3704 = vmatprep.subr.mxu0 0.0
        %v3705 = vand.u32 %v3276, 4294901760
        %v3706 = vsub.f32 %v3276, %v3705
        %3707 = vmatpush1.msra.mxu0 %v3706
        %3708 = vmatprep.subr.mxu0 0.0
        %v3709 = vand.u32 %v3275, 4294901760
        %v3710 = vsub.f32 %v3275, %v3709
        %3711 = vmatpush1.msra.mxu0 %v3710
        %3712 = vmatprep.subr.mxu0 0.0
        %v3713 = vand.u32 %v3274, 4294901760
        %v3714 = vsub.f32 %v3274, %v3713
        %3715 = vmatpush1.msra.mxu0 %v3714
        %3716 = vmatprep.subr.mxu0 0.0
        %v3717 = vand.u32 %v3273, 4294901760
        %v3718 = vsub.f32 %v3273, %v3717
        %3719 = vmatpush1.msra.mxu0 %v3718
        %3720 = vmatprep.subr.mxu0 0.0
        %v3721 = vand.u32 %v3272, 4294901760
        %v3722 = vsub.f32 %v3272, %v3721
        %3723 = vmatpush1.msra.mxu0 %v3722
        %3724 = vmatprep.subr.mxu0 0.0
        %v3725 = vand.u32 %v3271, 4294901760
        %v3726 = vsub.f32 %v3271, %v3725
        %3727 = vmatpush1.msra.mxu0 %v3726
        %3728 = vmatprep.subr.mxu0 0.0
        %v3729 = vand.u32 %v3270, 4294901760
        %v3730 = vsub.f32 %v3270, %v3729
        %3731 = vmatpush1.msra.mxu0 %v3730
        %3732 = vmatprep.subr.mxu0 0.0
        %v3733 = vand.u32 %v3301, 4294901760
        %v3734 = vsub.f32 %v3301, %v3733
        %3735 = vmatpush2.msra.mxu0 %v3734
        %3736 = vmatprep.subr.mxu0 0.0
        %v3737 = vand.u32 %v3300, 4294901760
        %v3738 = vsub.f32 %v3300, %v3737
        %3739 = vmatpush2.msra.mxu0 %v3738
        %3740 = vmatprep.subr.mxu0 0.0
        %v3741 = vand.u32 %v3299, 4294901760
        %v3742 = vsub.f32 %v3299, %v3741
        %3743 = vmatpush2.msra.mxu0 %v3742
        %3744 = vmatprep.subr.mxu0 0.0
        %v3745 = vand.u32 %v3298, 4294901760
        %v3746 = vsub.f32 %v3298, %v3745
        %3747 = vmatpush2.msra.mxu0 %v3746
        %3748 = vmatprep.subr.mxu0 0.0
        %v3749 = vand.u32 %v3297, 4294901760
        %v3750 = vsub.f32 %v3297, %v3749
        %3751 = vmatpush2.msra.mxu0 %v3750
        %3752 = vmatprep.subr.mxu0 0.0
        %v3753 = vand.u32 %v3296, 4294901760
        %v3754 = vsub.f32 %v3296, %v3753
        %3755 = vmatpush2.msra.mxu0 %v3754
        %3756 = vmatprep.subr.mxu0 0.0
        %v3757 = vand.u32 %v3295, 4294901760
        %v3758 = vsub.f32 %v3295, %v3757
        %3759 = vmatpush2.msra.mxu0 %v3758
        %3760 = vmatprep.subr.mxu0 0.0
        %v3761 = vand.u32 %v3294, 4294901760
        %v3762 = vsub.f32 %v3294, %v3761
        %3763 = vmatpush2.msra.mxu0 %v3762
        %3764 = vmatprep.subr.mxu0 0.0
        %v3765 = vand.u32 %v3293, 4294901760
        %v3766 = vsub.f32 %v3293, %v3765
        %3767 = vmatpush2.msra.mxu0 %v3766
        %3768 = vmatprep.subr.mxu0 0.0
        %v3769 = vand.u32 %v3292, 4294901760
        %v3770 = vsub.f32 %v3292, %v3769
        %3771 = vmatpush2.msra.mxu0 %v3770
        %3772 = vmatprep.subr.mxu0 0.0
        %v3773 = vand.u32 %v3291, 4294901760
        %v3774 = vsub.f32 %v3291, %v3773
        %3775 = vmatpush2.msra.mxu0 %v3774
        %3776 = vmatprep.subr.mxu0 0.0
        %v3777 = vand.u32 %v3290, 4294901760
        %v3778 = vsub.f32 %v3290, %v3777
        %3779 = vmatpush2.msra.mxu0 %v3778
        %3780 = vmatprep.subr.mxu0 0.0
        %v3781 = vand.u32 %v3289, 4294901760
        %v3782 = vsub.f32 %v3289, %v3781
        %3783 = vmatpush2.msra.mxu0 %v3782
        %3784 = vmatprep.subr.mxu0 0.0
        %v3785 = vand.u32 %v3288, 4294901760
        %v3786 = vsub.f32 %v3288, %v3785
        %3787 = vmatpush2.msra.mxu0 %v3786
        %3788 = vmatprep.subr.mxu0 0.0
        %v3789 = vand.u32 %v3287, 4294901760
        %v3790 = vsub.f32 %v3287, %v3789
        %3791 = vmatpush2.msra.mxu0 %v3790
        %3792 = vmatprep.subr.mxu0 0.0
        %v3793 = vand.u32 %v3286, 4294901760
        %v3794 = vsub.f32 %v3286, %v3793
        %3795 = vmatpush2.msra.mxu0 %v3794
        %v3796 = vand.u32 %v3266, 4294901760
        %v3797 = vsub.f32 %v3266, %v3796
        %3798 = vmatprep.mubr.f32.mxu0 %v3797
        %v3799 = vand.u32 %v3265, 4294901760
        %v3800 = vsub.f32 %v3265, %v3799
        %3801 = vmatmul.mubr.f32.gmra.mxu0 %v3800
        %v3802 = vpop.f32.mrf.mxu0
        %v3803 = vadd.f32 %v3658, %v3802
        %v3804 = vpop.f32.mrf.mxu0
        %v3805 = vand.u32 %v3268, 4294901760
        %v3806 = vsub.f32 %v3268, %v3805
        %3807 = vmatprep.mubr.f32.mxu0 %v3806
        %v3808 = vand.u32 %v3267, 4294901760
        %v3809 = vsub.f32 %v3267, %v3808
        %3810 = vmatmul.mubr.f32.gmra.mxu0 %v3809
        %v3811 = vpop.f32.mrf.mxu0
        %v3812 = vadd.f32 %v3665, %v3811
        %v3813 = vpop.f32.mrf.mxu0
        %3814 = vdwg.mxu0
        %3815 = vmatprep.subr.mxu0 0.0
        %v3816 = vand.u32 %v3285, 4294901760
        %3817 = vmatpush1.msra.mxu0 %v3816
        %3818 = vmatprep.subr.mxu0 0.0
        %v3819 = vand.u32 %v3284, 4294901760
        %3820 = vmatpush1.msra.mxu0 %v3819
        %3821 = vmatprep.subr.mxu0 0.0
        %v3822 = vand.u32 %v3283, 4294901760
        %3823 = vmatpush1.msra.mxu0 %v3822
        %3824 = vmatprep.subr.mxu0 0.0
        %v3825 = vand.u32 %v3282, 4294901760
        %3826 = vmatpush1.msra.mxu0 %v3825
        %3827 = vmatprep.subr.mxu0 0.0
        %v3828 = vand.u32 %v3281, 4294901760
        %3829 = vmatpush1.msra.mxu0 %v3828
        %3830 = vmatprep.subr.mxu0 0.0
        %v3831 = vand.u32 %v3280, 4294901760
        %3832 = vmatpush1.msra.mxu0 %v3831
        %3833 = vmatprep.subr.mxu0 0.0
        %v3834 = vand.u32 %v3279, 4294901760
        %3835 = vmatpush1.msra.mxu0 %v3834
        %3836 = vmatprep.subr.mxu0 0.0
        %v3837 = vand.u32 %v3278, 4294901760
        %3838 = vmatpush1.msra.mxu0 %v3837
        %3839 = vmatprep.subr.mxu0 0.0
        %v3840 = vand.u32 %v3277, 4294901760
        %3841 = vmatpush1.msra.mxu0 %v3840
        %3842 = vmatprep.subr.mxu0 0.0
        %v3843 = vand.u32 %v3276, 4294901760
        %3844 = vmatpush1.msra.mxu0 %v3843
        %3845 = vmatprep.subr.mxu0 0.0
        %v3846 = vand.u32 %v3275, 4294901760
        %3847 = vmatpush1.msra.mxu0 %v3846
        %3848 = vmatprep.subr.mxu0 0.0
        %v3849 = vand.u32 %v3274, 4294901760
        %3850 = vmatpush1.msra.mxu0 %v3849
        %3851 = vmatprep.subr.mxu0 0.0
        %v3852 = vand.u32 %v3273, 4294901760
        %3853 = vmatpush1.msra.mxu0 %v3852
        %3854 = vmatprep.subr.mxu0 0.0
        %v3855 = vand.u32 %v3272, 4294901760
        %3856 = vmatpush1.msra.mxu0 %v3855
        %3857 = vmatprep.subr.mxu0 0.0
        %v3858 = vand.u32 %v3271, 4294901760
        %3859 = vmatpush1.msra.mxu0 %v3858
        %3860 = vmatprep.subr.mxu0 0.0
        %v3861 = vand.u32 %v3270, 4294901760
        %3862 = vmatpush1.msra.mxu0 %v3861
        %3863 = vmatprep.subr.mxu0 0.0
        %v3864 = vand.u32 %v3301, 4294901760
        %3865 = vmatpush2.msra.mxu0 %v3864
        %3866 = vmatprep.subr.mxu0 0.0
        %v3867 = vand.u32 %v3300, 4294901760
        %3868 = vmatpush2.msra.mxu0 %v3867
        %3869 = vmatprep.subr.mxu0 0.0
        %v3870 = vand.u32 %v3299, 4294901760
        %3871 = vmatpush2.msra.mxu0 %v3870
        %3872 = vmatprep.subr.mxu0 0.0
        %v3873 = vand.u32 %v3298, 4294901760
        %3874 = vmatpush2.msra.mxu0 %v3873
        %3875 = vmatprep.subr.mxu0 0.0
        %v3876 = vand.u32 %v3297, 4294901760
        %3877 = vmatpush2.msra.mxu0 %v3876
        %3878 = vmatprep.subr.mxu0 0.0
        %v3879 = vand.u32 %v3296, 4294901760
        %3880 = vmatpush2.msra.mxu0 %v3879
        %3881 = vmatprep.subr.mxu0 0.0
        %v3882 = vand.u32 %v3295, 4294901760
        %3883 = vmatpush2.msra.mxu0 %v3882
        %3884 = vmatprep.subr.mxu0 0.0
        %v3885 = vand.u32 %v3294, 4294901760
        %3886 = vmatpush2.msra.mxu0 %v3885
        %3887 = vmatprep.subr.mxu0 0.0
        %v3888 = vand.u32 %v3293, 4294901760
        %3889 = vmatpush2.msra.mxu0 %v3888
        %3890 = vmatprep.subr.mxu0 0.0
        %v3891 = vand.u32 %v3292, 4294901760
        %3892 = vmatpush2.msra.mxu0 %v3891
        %3893 = vmatprep.subr.mxu0 0.0
        %v3894 = vand.u32 %v3291, 4294901760
        %3895 = vmatpush2.msra.mxu0 %v3894
        %3896 = vmatprep.subr.mxu0 0.0
        %v3897 = vand.u32 %v3290, 4294901760
        %3898 = vmatpush2.msra.mxu0 %v3897
        %3899 = vmatprep.subr.mxu0 0.0
        %v3900 = vand.u32 %v3289, 4294901760
        %3901 = vmatpush2.msra.mxu0 %v3900
        %3902 = vmatprep.subr.mxu0 0.0
        %v3903 = vand.u32 %v3288, 4294901760
        %3904 = vmatpush2.msra.mxu0 %v3903
        %3905 = vmatprep.subr.mxu0 0.0
        %v3906 = vand.u32 %v3287, 4294901760
        %3907 = vmatpush2.msra.mxu0 %v3906
        %3908 = vmatprep.subr.mxu0 0.0
        %v3909 = vand.u32 %v3286, 4294901760
        %3910 = vmatpush2.msra.mxu0 %v3909
        %v3911 = vand.u32 %v3266, 4294901760
        %v3912 = vsub.f32 %v3266, %v3911
        %v3913 = vand.u32 %v3912, 4294901760
        %3914 = vmatprep.mubr.f32.mxu0 %v3913
        %v3915 = vand.u32 %v3265, 4294901760
        %v3916 = vsub.f32 %v3265, %v3915
        %v3917 = vand.u32 %v3916, 4294901760
        %3918 = vmatmul.mubr.f32.gmra.mxu0 %v3917
        %v3919 = vpop.f32.mrf.mxu0
        %v3920 = vadd.f32 %v3803, %v3919
        %v3921 = vpop.f32.mrf.mxu0
        %v3922 = vand.u32 %v3268, 4294901760
        %v3923 = vsub.f32 %v3268, %v3922
        %v3924 = vand.u32 %v3923, 4294901760
        %3925 = vmatprep.mubr.f32.mxu0 %v3924
        %v3926 = vand.u32 %v3267, 4294901760
        %v3927 = vsub.f32 %v3267, %v3926
        %v3928 = vand.u32 %v3927, 4294901760
        %3929 = vmatmul.mubr.f32.gmra.mxu0 %v3928
        %v3930 = vpop.f32.mrf.mxu0
        %v3931 = vadd.f32 %v3812, %v3930
        %v3932 = vpop.f32.mrf.mxu0
        %3933 = vdwg.mxu0
        %3934 = vmatprep.subr.mxu0 0.0
        %v3935 = vand.u32 %v3285, 4294901760
        %v3936 = vsub.f32 %v3285, %v3935
        %v3937 = vand.u32 %v3936, 4294901760
        %3938 = vmatpush1.msra.mxu0 %v3937
        %3939 = vmatprep.subr.mxu0 0.0
        %v3940 = vand.u32 %v3284, 4294901760
        %v3941 = vsub.f32 %v3284, %v3940
        %v3942 = vand.u32 %v3941, 4294901760
        %3943 = vmatpush1.msra.mxu0 %v3942
        %3944 = vmatprep.subr.mxu0 0.0
        %v3945 = vand.u32 %v3283, 4294901760
        %v3946 = vsub.f32 %v3283, %v3945
        %v3947 = vand.u32 %v3946, 4294901760
        %3948 = vmatpush1.msra.mxu0 %v3947
        %3949 = vmatprep.subr.mxu0 0.0
        %v3950 = vand.u32 %v3282, 4294901760
        %v3951 = vsub.f32 %v3282, %v3950
        %v3952 = vand.u32 %v3951, 4294901760
        %3953 = vmatpush1.msra.mxu0 %v3952
        %3954 = vmatprep.subr.mxu0 0.0
        %v3955 = vand.u32 %v3281, 4294901760
        %v3956 = vsub.f32 %v3281, %v3955
        %v3957 = vand.u32 %v3956, 4294901760
        %3958 = vmatpush1.msra.mxu0 %v3957
        %3959 = vmatprep.subr.mxu0 0.0
        %v3960 = vand.u32 %v3280, 4294901760
        %v3961 = vsub.f32 %v3280, %v3960
        %v3962 = vand.u32 %v3961, 4294901760
        %3963 = vmatpush1.msra.mxu0 %v3962
        %3964 = vmatprep.subr.mxu0 0.0
        %v3965 = vand.u32 %v3279, 4294901760
        %v3966 = vsub.f32 %v3279, %v3965
        %v3967 = vand.u32 %v3966, 4294901760
        %3968 = vmatpush1.msra.mxu0 %v3967
        %3969 = vmatprep.subr.mxu0 0.0
        %v3970 = vand.u32 %v3278, 4294901760
        %v3971 = vsub.f32 %v3278, %v3970
        %v3972 = vand.u32 %v3971, 4294901760
        %3973 = vmatpush1.msra.mxu0 %v3972
        %3974 = vmatprep.subr.mxu0 0.0
        %v3975 = vand.u32 %v3277, 4294901760
        %v3976 = vsub.f32 %v3277, %v3975
        %v3977 = vand.u32 %v3976, 4294901760
        %3978 = vmatpush1.msra.mxu0 %v3977
        %3979 = vmatprep.subr.mxu0 0.0
        %v3980 = vand.u32 %v3276, 4294901760
        %v3981 = vsub.f32 %v3276, %v3980
        %v3982 = vand.u32 %v3981, 4294901760
        %3983 = vmatpush1.msra.mxu0 %v3982
        %3984 = vmatprep.subr.mxu0 0.0
        %v3985 = vand.u32 %v3275, 4294901760
        %v3986 = vsub.f32 %v3275, %v3985
        %v3987 = vand.u32 %v3986, 4294901760
        %3988 = vmatpush1.msra.mxu0 %v3987
        %3989 = vmatprep.subr.mxu0 0.0
        %v3990 = vand.u32 %v3274, 4294901760
        %v3991 = vsub.f32 %v3274, %v3990
        %v3992 = vand.u32 %v3991, 4294901760
        %3993 = vmatpush1.msra.mxu0 %v3992
        %3994 = vmatprep.subr.mxu0 0.0
        %v3995 = vand.u32 %v3273, 4294901760
        %v3996 = vsub.f32 %v3273, %v3995
        %v3997 = vand.u32 %v3996, 4294901760
        %3998 = vmatpush1.msra.mxu0 %v3997
        %3999 = vmatprep.subr.mxu0 0.0
        %v4000 = vand.u32 %v3272, 4294901760
        %v4001 = vsub.f32 %v3272, %v4000
        %v4002 = vand.u32 %v4001, 4294901760
        %4003 = vmatpush1.msra.mxu0 %v4002
        %4004 = vmatprep.subr.mxu0 0.0
        %v4005 = vand.u32 %v3271, 4294901760
        %v4006 = vsub.f32 %v3271, %v4005
        %v4007 = vand.u32 %v4006, 4294901760
        %4008 = vmatpush1.msra.mxu0 %v4007
        %4009 = vmatprep.subr.mxu0 0.0
        %v4010 = vand.u32 %v3270, 4294901760
        %v4011 = vsub.f32 %v3270, %v4010
        %v4012 = vand.u32 %v4011, 4294901760
        %4013 = vmatpush1.msra.mxu0 %v4012
        %4014 = vmatprep.subr.mxu0 0.0
        %v4015 = vand.u32 %v3301, 4294901760
        %v4016 = vsub.f32 %v3301, %v4015
        %v4017 = vand.u32 %v4016, 4294901760
        %4018 = vmatpush2.msra.mxu0 %v4017
        %4019 = vmatprep.subr.mxu0 0.0
        %v4020 = vand.u32 %v3300, 4294901760
        %v4021 = vsub.f32 %v3300, %v4020
        %v4022 = vand.u32 %v4021, 4294901760
        %4023 = vmatpush2.msra.mxu0 %v4022
        %4024 = vmatprep.subr.mxu0 0.0
        %v4025 = vand.u32 %v3299, 4294901760
        %v4026 = vsub.f32 %v3299, %v4025
        %v4027 = vand.u32 %v4026, 4294901760
        %4028 = vmatpush2.msra.mxu0 %v4027
        %4029 = vmatprep.subr.mxu0 0.0
        %v4030 = vand.u32 %v3298, 4294901760
        %v4031 = vsub.f32 %v3298, %v4030
        %v4032 = vand.u32 %v4031, 4294901760
        %4033 = vmatpush2.msra.mxu0 %v4032
        %4034 = vmatprep.subr.mxu0 0.0
        %v4035 = vand.u32 %v3297, 4294901760
        %v4036 = vsub.f32 %v3297, %v4035
        %v4037 = vand.u32 %v4036, 4294901760
        %4038 = vmatpush2.msra.mxu0 %v4037
        %4039 = vmatprep.subr.mxu0 0.0
        %v4040 = vand.u32 %v3296, 4294901760
        %v4041 = vsub.f32 %v3296, %v4040
        %v4042 = vand.u32 %v4041, 4294901760
        %4043 = vmatpush2.msra.mxu0 %v4042
        %4044 = vmatprep.subr.mxu0 0.0
        %v4045 = vand.u32 %v3295, 4294901760
        %v4046 = vsub.f32 %v3295, %v4045
        %v4047 = vand.u32 %v4046, 4294901760
        %4048 = vmatpush2.msra.mxu0 %v4047
        %4049 = vmatprep.subr.mxu0 0.0
        %v4050 = vand.u32 %v3294, 4294901760
        %v4051 = vsub.f32 %v3294, %v4050
        %v4052 = vand.u32 %v4051, 4294901760
        %4053 = vmatpush2.msra.mxu0 %v4052
        %4054 = vmatprep.subr.mxu0 0.0
        %v4055 = vand.u32 %v3293, 4294901760
        %v4056 = vsub.f32 %v3293, %v4055
        %v4057 = vand.u32 %v4056, 4294901760
        %4058 = vmatpush2.msra.mxu0 %v4057
        %4059 = vmatprep.subr.mxu0 0.0
        %v4060 = vand.u32 %v3292, 4294901760
        %v4061 = vsub.f32 %v3292, %v4060
        %v4062 = vand.u32 %v4061, 4294901760
        %4063 = vmatpush2.msra.mxu0 %v4062
        %4064 = vmatprep.subr.mxu0 0.0
        %v4065 = vand.u32 %v3291, 4294901760
        %v4066 = vsub.f32 %v3291, %v4065
        %v4067 = vand.u32 %v4066, 4294901760
        %4068 = vmatpush2.msra.mxu0 %v4067
        %4069 = vmatprep.subr.mxu0 0.0
        %v4070 = vand.u32 %v3290, 4294901760
        %v4071 = vsub.f32 %v3290, %v4070
        %v4072 = vand.u32 %v4071, 4294901760
        %4073 = vmatpush2.msra.mxu0 %v4072
        %4074 = vmatprep.subr.mxu0 0.0
        %v4075 = vand.u32 %v3289, 4294901760
        %v4076 = vsub.f32 %v3289, %v4075
        %v4077 = vand.u32 %v4076, 4294901760
        %4078 = vmatpush2.msra.mxu0 %v4077
        %4079 = vmatprep.subr.mxu0 0.0
        %v4080 = vand.u32 %v3288, 4294901760
        %v4081 = vsub.f32 %v3288, %v4080
        %v4082 = vand.u32 %v4081, 4294901760
        %4083 = vmatpush2.msra.mxu0 %v4082
        %4084 = vmatprep.subr.mxu0 0.0
        %v4085 = vand.u32 %v3287, 4294901760
        %v4086 = vsub.f32 %v3287, %v4085
        %v4087 = vand.u32 %v4086, 4294901760
        %4088 = vmatpush2.msra.mxu0 %v4087
        %4089 = vmatprep.subr.mxu0 0.0
        %v4090 = vand.u32 %v3286, 4294901760
        %v4091 = vsub.f32 %v3286, %v4090
        %v4092 = vand.u32 %v4091, 4294901760
        %4093 = vmatpush2.msra.mxu0 %v4092
        %v4094 = vand.u32 %v3266, 4294901760
        %4095 = vmatprep.mubr.f32.mxu0 %v4094
        %v4096 = vand.u32 %v3265, 4294901760
        %4097 = vmatmul.mubr.f32.gmra.mxu0 %v4096
        %v4098 = vpop.f32.mrf.mxu0
        %v4099 = vadd.f32 %v3920, %v4098
        %v4100 = vpop.f32.mrf.mxu0
        %v4101 = vand.u32 %v3268, 4294901760
        %4102 = vmatprep.mubr.f32.mxu0 %v4101
        %v4103 = vand.u32 %v3267, 4294901760
        %4104 = vmatmul.mubr.f32.gmra.mxu0 %v4103
        %v4105 = vpop.f32.mrf.mxu0
        %v4106 = vadd.f32 %v3931, %v4105
        %v4107 = vpop.f32.mrf.mxu0
        %4108 = vdwg.mxu0
        %4109 = vmatprep.subr.mxu0 0.0
        %v4110 = vand.u32 %v3285, 4294901760
        %4111 = vmatpush1.msra.mxu0 %v4110
        %4112 = vmatprep.subr.mxu0 0.0
        %v4113 = vand.u32 %v3284, 4294901760
        %4114 = vmatpush1.msra.mxu0 %v4113
        %4115 = vmatprep.subr.mxu0 0.0
        %v4116 = vand.u32 %v3283, 4294901760
        %4117 = vmatpush1.msra.mxu0 %v4116
        %4118 = vmatprep.subr.mxu0 0.0
        %v4119 = vand.u32 %v3282, 4294901760
        %4120 = vmatpush1.msra.mxu0 %v4119
        %4121 = vmatprep.subr.mxu0 0.0
        %v4122 = vand.u32 %v3281, 4294901760
        %4123 = vmatpush1.msra.mxu0 %v4122
        %4124 = vmatprep.subr.mxu0 0.0
        %v4125 = vand.u32 %v3280, 4294901760
        %4126 = vmatpush1.msra.mxu0 %v4125
        %4127 = vmatprep.subr.mxu0 0.0
        %v4128 = vand.u32 %v3279, 4294901760
        %4129 = vmatpush1.msra.mxu0 %v4128
        %4130 = vmatprep.subr.mxu0 0.0
        %v4131 = vand.u32 %v3278, 4294901760
        %4132 = vmatpush1.msra.mxu0 %v4131
        %4133 = vmatprep.subr.mxu0 0.0
        %v4134 = vand.u32 %v3277, 4294901760
        %4135 = vmatpush1.msra.mxu0 %v4134
        %4136 = vmatprep.subr.mxu0 0.0
        %v4137 = vand.u32 %v3276, 4294901760
        %4138 = vmatpush1.msra.mxu0 %v4137
        %4139 = vmatprep.subr.mxu0 0.0
        %v4140 = vand.u32 %v3275, 4294901760
        %4141 = vmatpush1.msra.mxu0 %v4140
        %4142 = vmatprep.subr.mxu0 0.0
        %v4143 = vand.u32 %v3274, 4294901760
        %4144 = vmatpush1.msra.mxu0 %v4143
        %4145 = vmatprep.subr.mxu0 0.0
        %v4146 = vand.u32 %v3273, 4294901760
        %4147 = vmatpush1.msra.mxu0 %v4146
        %4148 = vmatprep.subr.mxu0 0.0
        %v4149 = vand.u32 %v3272, 4294901760
        %4150 = vmatpush1.msra.mxu0 %v4149
        %4151 = vmatprep.subr.mxu0 0.0
        %v4152 = vand.u32 %v3271, 4294901760
        %4153 = vmatpush1.msra.mxu0 %v4152
        %4154 = vmatprep.subr.mxu0 0.0
        %v4155 = vand.u32 %v3270, 4294901760
        %4156 = vmatpush1.msra.mxu0 %v4155
        %4157 = vmatprep.subr.mxu0 0.0
        %v4158 = vand.u32 %v3301, 4294901760
        %4159 = vmatpush2.msra.mxu0 %v4158
        %4160 = vmatprep.subr.mxu0 0.0
        %v4161 = vand.u32 %v3300, 4294901760
        %4162 = vmatpush2.msra.mxu0 %v4161
        %4163 = vmatprep.subr.mxu0 0.0
        %v4164 = vand.u32 %v3299, 4294901760
        %4165 = vmatpush2.msra.mxu0 %v4164
        %4166 = vmatprep.subr.mxu0 0.0
        %v4167 = vand.u32 %v3298, 4294901760
        %4168 = vmatpush2.msra.mxu0 %v4167
        %4169 = vmatprep.subr.mxu0 0.0
        %v4170 = vand.u32 %v3297, 4294901760
        %4171 = vmatpush2.msra.mxu0 %v4170
        %4172 = vmatprep.subr.mxu0 0.0
        %v4173 = vand.u32 %v3296, 4294901760
        %4174 = vmatpush2.msra.mxu0 %v4173
        %4175 = vmatprep.subr.mxu0 0.0
        %v4176 = vand.u32 %v3295, 4294901760
        %4177 = vmatpush2.msra.mxu0 %v4176
        %4178 = vmatprep.subr.mxu0 0.0
        %v4179 = vand.u32 %v3294, 4294901760
        %4180 = vmatpush2.msra.mxu0 %v4179
        %4181 = vmatprep.subr.mxu0 0.0
        %v4182 = vand.u32 %v3293, 4294901760
        %4183 = vmatpush2.msra.mxu0 %v4182
        %4184 = vmatprep.subr.mxu0 0.0
        %v4185 = vand.u32 %v3292, 4294901760
        %4186 = vmatpush2.msra.mxu0 %v4185
        %4187 = vmatprep.subr.mxu0 0.0
        %v4188 = vand.u32 %v3291, 4294901760
        %4189 = vmatpush2.msra.mxu0 %v4188
        %4190 = vmatprep.subr.mxu0 0.0
        %v4191 = vand.u32 %v3290, 4294901760
        %4192 = vmatpush2.msra.mxu0 %v4191
        %4193 = vmatprep.subr.mxu0 0.0
        %v4194 = vand.u32 %v3289, 4294901760
        %4195 = vmatpush2.msra.mxu0 %v4194
        %4196 = vmatprep.subr.mxu0 0.0
        %v4197 = vand.u32 %v3288, 4294901760
        %4198 = vmatpush2.msra.mxu0 %v4197
        %4199 = vmatprep.subr.mxu0 0.0
        %v4200 = vand.u32 %v3287, 4294901760
        %4201 = vmatpush2.msra.mxu0 %v4200
        %4202 = vmatprep.subr.mxu0 0.0
        %v4203 = vand.u32 %v3286, 4294901760
        %4204 = vmatpush2.msra.mxu0 %v4203
        %v4205 = vand.u32 %v3266, 4294901760
        %4206 = vmatprep.mubr.f32.mxu0 %v4205
        %v4207 = vand.u32 %v3265, 4294901760
        %4208 = vmatmul.mubr.f32.gmra.mxu0 %v4207
        %v4209 = vpop.f32.mrf.mxu0
        %v4210 = vadd.f32 %v4099, %v4209
        %v4211 = vpop.f32.mrf.mxu0
        %v4212 = vand.u32 %v3268, 4294901760
        %4213 = vmatprep.mubr.f32.mxu0 %v4212
        %v4214 = vand.u32 %v3267, 4294901760
        %4215 = vmatmul.mubr.f32.gmra.mxu0 %v4214
        %v4216 = vpop.f32.mrf.mxu0
        %v4217 = vadd.f32 %v4106, %v4216
        %v4218 = vpop.f32.mrf.mxu0
        %4219 = vdwg.mxu0
        %v4220 = vadd.f32 %v2719, %v4210
        %v4221 = vadd.f32 %v2720, %v4217
        %4222 = vst [vmem:[%s259] sm:$0xff] %v4220
        %4223 = vst [vmem:[%s259 + $0x8] sm:$0xff] %v4221
        %s4224 = sand.u32 %s120, 1
        %s4225 = scalar_lea.sflag [#allocation4], %s4224
        %s4226 = sand.u32 %s120, 1
        %s4227 = smul.addr %s4226, 16
        %s4228 = scalar_lea.vmem [#allocation10], %s4227
        // Predicated region
        $region53: #{tpu_custom_call.1} parent=35 // pred_check
          %p4229 = pneg %p130
        $region54: #{tpu_custom_call.1} parent=35 // pred_check_branch
          %4231 = sbr.rel (%p4229) target = $region56
        $region55: #{tpu_custom_call.1} parent=35 // pred_region
          %s4233 = ssub.s32 256, 256
          %4234 = vsyncadd %s4225, %s4233
          %s4235 = smul.addr %s23, 128
          %s4236 = scalar_lea.hbm %s4, %s4235
          %s4237 = sshll.u32 %s4228, 4
          %s4238 = int_to_ptr.vmem [resolvable:$true] %s4237
          %4243 = dma.vmem_to_hbm [thread:$0]  %s4238, 256, %s4236, %s4225, 128, 512, 8
        $region56: #{tpu_custom_call.1} parent=35 // pred_fallthru
          _
      $region36: #{tpu_custom_call.1} parent=5 // pred_fallthru
        _
      %p4244 = scmp.le.s32.totalorder 2, %s18
      // Predicated region
      $region57: #{tpu_custom_call.1} parent=5 // pred_check
        %p4245 = pneg %p4244
      $region58: #{tpu_custom_call.1} parent=5 // pred_check_branch
        %4247 = sbr.rel (%p4245) target = $region60
      $region59: #{tpu_custom_call.1} parent=5 // pred_region
        %s4248 = ssub.s32 %s18, 2
        // Predicated region
        $region61: #{tpu_custom_call.1} parent=59 // pred_check
          %p4249 = pneg %p136
        $region62: #{tpu_custom_call.1} parent=59 // pred_check_branch
          %4251 = sbr.rel (%p4249) target = $region64
        $region63: #{tpu_custom_call.1} parent=59 // pred_region
          %s4252 = sand.u32 %s121, 1
          %s4253 = scalar_lea.sflag [#allocation4], %s4252
          %s4254 = sand.u32 %s121, 1
          %s4255 = smul.addr %s4254, 16
          %s4256 = scalar_lea.vmem [#allocation10], %s4255
          %4257 = dma.done %s4253, 256
        $region64: #{tpu_custom_call.1} parent=59 // pred_fallthru
          _
      $region60: #{tpu_custom_call.1} parent=5 // pred_fallthru
        _
    $region6: #{tpu_custom_call.1} parent=1 // loop_footer
      %s22 = sadd.s32 1, %s18
    $region7: #{tpu_custom_call.1} parent=1 // loop_footer_branch
      %17 = sbr.rel target = $region3
    $region8: #{tpu_custom_call.1} parent=1 // loop_exit
      _
    %4258 = vsyncpa [#allocation3], 1
    %s4259 = scalar_lea.sflag [#allocation3], 1
    %4260 = vsyncpa %s4259, 1
    %4261 = vsyncpa [#allocation6], 1
    %4262 = vsyncpa [#allocation9], 1
    %4263 = vsyncpa [#allocation4], 1
    %s4264 = scalar_lea.sflag [#allocation4], 1
    %4265 = vsyncpa %s4264, 1

</llo_original>
